<compile_context>
chip_gen: v6e
topology: v6e:2x2x1
jax: 0.10.0
libtpu: 0.0.40
codegen_flags: <defaults>
</compile_context>

<pallas_src>
import math

import jax
import jax.numpy as jnp
from jax import lax
from jax.experimental import pallas as pl
from jax.experimental.pallas import tpu as pltpu


# --------------------------------------------------------------------------------------
# helpers
# --------------------------------------------------------------------------------------
def _const_spec(arr):
    """BlockSpec: whole array, same block for every grid step (loaded once, stays in VMEM)."""
    nd = arr.ndim
    return pl.BlockSpec(arr.shape, lambda l, _n=nd: (0,) * _n)


def _layer_spec(arr):
    """BlockSpec: one layer-slab of a [L, ...] stacked parameter per grid step."""
    nd = arr.ndim
    return pl.BlockSpec((1,) + tuple(arr.shape[1:]),
                        lambda l, _n=nd: (l,) + (0,) * (_n - 1))


def _gelu_tanh(x):
    c = math.sqrt(2.0 / math.pi)
    return 0.5 * x * (1.0 + jnp.tanh(c * (x + 0.044715 * x * x * x)))


def _layer_norm(x, w, b, eps=1e-5):
    mu = jnp.mean(x, axis=-1, keepdims=True)
    var = jnp.mean(jnp.square(x - mu), axis=-1, keepdims=True)
    return (x - mu) * lax.rsqrt(var + eps) * w + b


# --------------------------------------------------------------------------------------
# fully fused kernel: emb-LN + depth x (MHA + LN + FFN + LN) + pooler + classifier
#   grid = (depth,)   (layer axis, "arbitrary"); activation resident in VMEM scratch
# --------------------------------------------------------------------------------------
def _make_fused_kernel(*, batch, seq_len, num_heads, head_dim):
    B, S, H, hd = batch, seq_len, num_heads, head_dim
    D = H * hd
    M = B * S

    def kernel(x0_ref, mask_ref, eln_w_ref, eln_b_ref,
               wqkv_ref, bqkv_ref, wo_ref, bo_ref,
               ln1w_ref, ln1b_ref, w1_ref, b1_ref, w2_ref, b2_ref,
               ln2w_ref, ln2b_ref,
               pool_w_ref, pool_b_ref, cls_w_ref, cls_b_ref,
               logits_ref, x_scr):
        layer = pl.program_id(0)

        # ---- first grid step: fused embedding LayerNorm into the resident activation ----
        @pl.when(layer == 0)
        def _():
            x_scr[...] = _layer_norm(x0_ref[...], eln_w_ref[...], eln_b_ref[...])

        x = x_scr[...]                        # (M, D) f32, resident across layers
        mask = mask_ref[...]                  # (M, M) additive mask (block-diag + key padding)

        # ---- multi-head self-attention (batch flattened into M) --------------------------
        qkv = jnp.dot(x.astype(jnp.bfloat16), wqkv_ref[0],
                      preferred_element_type=jnp.float32) + bqkv_ref[0]       # (M, 3D) f32
        qkv_bf = qkv.astype(jnp.bfloat16)                                     # cast once
        wo = wo_ref[0]                                                        # (D, D) bf16

        attn = jnp.zeros((M, D), jnp.float32)
        for h in range(H):                    # per-head scores/context; no lane-concat
            lo = h * hd
            qh = qkv_bf[:, lo:lo + hd]
            kh = qkv_bf[:, D + lo:D + lo + hd]
            vh = qkv_bf[:, 2 * D + lo:2 * D + lo + hd]
            # 1/sqrt(head_dim) is pre-folded into the Q weights/bias.
            s = lax.dot_general(qh, kh, (((1,), (1,)), ((), ())),
                                preferred_element_type=jnp.float32)           # (M, M)
            s = s + mask
            s = s - jnp.max(s, axis=-1, keepdims=True)
            p = jnp.exp(s)
            p = p * pl.reciprocal(jnp.sum(p, axis=-1, keepdims=True), approx=True)
            ctx = jnp.dot(p.astype(jnp.bfloat16), vh,
                          preferred_element_type=jnp.float32)                 # (M, hd)
            # accumulate through the sublane-aligned row slice of Wo (no concat relayout)
            attn = attn + jnp.dot(ctx.astype(jnp.bfloat16), wo[lo:lo + hd, :],
                                  preferred_element_type=jnp.float32)

        x = _layer_norm(x + attn + bo_ref[0], ln1w_ref[0], ln1b_ref[0])       # post-LN (BERT)

        # ---- feed-forward ----------------------------------------------------------------
        h1 = jnp.dot(x.astype(jnp.bfloat16), w1_ref[0],
                     preferred_element_type=jnp.float32) + b1_ref[0]
        h1 = _gelu_tanh(h1)
        ff = jnp.dot(h1.astype(jnp.bfloat16), w2_ref[0],
                     preferred_element_type=jnp.float32) + b2_ref[0]
        x = _layer_norm(x + ff, ln2w_ref[0], ln2b_ref[0])
        x_scr[...] = x

        # ---- last grid step: fused pooler (dense+tanh) + classifier ----------------------
        @pl.when(layer == pl.num_programs(0) - 1)
        def _():
            cls = jnp.concatenate([x[b * S:b * S + 1, :] for b in range(B)], axis=0)  # (B, D)
            pooled = jnp.tanh(jnp.dot(cls.astype(jnp.bfloat16), pool_w_ref[...],
                                      preferred_element_type=jnp.float32) + pool_b_ref[...])
            logits_ref[...] = jnp.dot(pooled.astype(jnp.bfloat16), cls_w_ref[...],
                                      preferred_element_type=jnp.float32) + cls_b_ref[...]

    return kernel


# --------------------------------------------------------------------------------------
# parameter construction (deterministic, synthetic stand-in for the pretrained encoder)
# per-layer parameters are stacked on a leading layer axis for the fused kernel.
# --------------------------------------------------------------------------------------
def init_params(key, *, vocab_size, unique_annotators, num_labels,
                d_model, num_heads, d_ff, depth, max_seq_len):
    head_dim = d_model // num_heads
    keys = iter(jax.random.split(key, 256))

    def nrm(shape, scale=0.05):
        return (scale * jax.random.normal(next(keys), shape)).astype(jnp.float32)

    p = {}
    # resize_token_embeddings(vocab_size + unique_annotators)
    p["tok_emb"] = nrm((vocab_size + unique_annotators, d_model), 0.1)
    p["pos_emb"] = nrm((max_seq_len, d_model), 0.02)
    p["emb_ln_w"] = 1.0 + nrm((1, d_model), 0.02)
    p["emb_ln_b"] = nrm((1, d_model), 0.02)

    sc = 1.0 / math.sqrt(head_dim)          # fold attention scale into Q projection
    wqkv, bqkv = [], []
    for _ in range(depth):
        wq, wk, wv = nrm((d_model, d_model)), nrm((d_model, d_model)), nrm((d_model, d_model))
        bq, bk, bv = nrm((1, d_model), 0.02), nrm((1, d_model), 0.02), nrm((1, d_model), 0.02)
        wqkv.append(jnp.concatenate([wq * sc, wk, wv], axis=1))
        bqkv.append(jnp.concatenate([bq * sc, bk, bv], axis=1))
    p["wqkv"] = jnp.stack(wqkv).astype(jnp.bfloat16)                        # (L, D, 3D)
    p["bqkv"] = jnp.stack(bqkv)                                             # (L, 1, 3D)
    p["wo"] = jnp.stack([nrm((d_model, d_model)) for _ in range(depth)]).astype(jnp.bfloat16)
    p["bo"] = jnp.stack([nrm((1, d_model), 0.02) for _ in range(depth)])
    p["ln1_w"] = jnp.stack([1.0 + nrm((1, d_model), 0.02) for _ in range(depth)])
    p["ln1_b"] = jnp.stack([nrm((1, d_model), 0.02) for _ in range(depth)])
    p["w1"] = jnp.stack([nrm((d_model, d_ff)) for _ in range(depth)]).astype(jnp.bfloat16)
    p["b1"] = jnp.stack([nrm((1, d_ff), 0.02) for _ in range(depth)])
    p["w2"] = jnp.stack([nrm((d_ff, d_model)) for _ in range(depth)]).astype(jnp.bfloat16)
    p["b2"] = jnp.stack([nrm((1, d_model), 0.02) for _ in range(depth)])
    p["ln2_w"] = jnp.stack([1.0 + nrm((1, d_model), 0.02) for _ in range(depth)])
    p["ln2_b"] = jnp.stack([nrm((1, d_model), 0.02) for _ in range(depth)])

    # BERT-style pooler + classifier; classifier padded to 128 lanes (sliced in glue).
    v_pad = ((num_labels + 127) // 128) * 128
    p["pool_w"] = nrm((d_model, d_model)).astype(jnp.bfloat16)
    p["pool_b"] = nrm((1, d_model), 0.02)
    wc = jnp.zeros((d_model, v_pad), jnp.float32).at[:, :num_labels].set(
        nrm((d_model, num_labels)))
    bc = jnp.zeros((1, v_pad), jnp.float32).at[:, :num_labels].set(
        nrm((1, num_labels), 0.02))
    p["cls_w"] = wc.astype(jnp.bfloat16)
    p["cls_b"] = bc
    return p


# --------------------------------------------------------------------------------------
# forward pass (glue around the single fused Pallas kernel)
# --------------------------------------------------------------------------------------
def sequence_classification_forward(params, *, text_tokens, text_mask, num_heads,
                                    num_labels, annotator_tokens=None,
                                    annotator_mask=None):
    # SequenceClassificationModel.forward ignores annotator_tokens / annotator_mask.
    del annotator_tokens, annotator_mask
    B, S = text_tokens.shape
    D = params["tok_emb"].shape[1]
    head_dim = D // num_heads
    depth = params["wqkv"].shape[0]
    M = B * S
    v_pad = params["cls_w"].shape[1]

    # embeddings (gather stays in plain JAX); embedding LayerNorm is fused into grid step 0.
    x0 = (params["tok_emb"][text_tokens] + params["pos_emb"][None, :S, :])
    x0 = x0.reshape(M, D).astype(jnp.float32)                               # (B*S, D)

    # attention_mask = ~text_mask; batch flattened into M -> block-diagonal per-batch mask
    # plus -1e9 on padding keys (prevents cross-batch attention after flattening).
    batch_ids = jnp.repeat(jnp.arange(B), S)                                # (M,)
    valid_key = (~text_mask).reshape(M)                                     # True = real token
    same_batch = batch_ids[:, None] == batch_ids[None, :]
    mask_add = jnp.where(same_batch & valid_key[None, :], 0.0, -1e9).astype(jnp.float32)

    args = [x0, mask_add, params["emb_ln_w"], params["emb_ln_b"],
            params["wqkv"], params["bqkv"], params["wo"], params["bo"],
            params["ln1_w"], params["ln1_b"], params["w1"], params["b1"],
            params["w2"], params["b2"], params["ln2_w"], params["ln2_b"],
            params["pool_w"], params["pool_b"], params["cls_w"], params["cls_b"]]

    in_specs = [_const_spec(a) for a in args[:4]]           # activation, mask, emb LN
    in_specs += [_layer_spec(a) for a in args[4:16]]        # stacked per-layer weights
    in_specs += [_const_spec(a) for a in args[16:]]         # pooler + classifier

    kernel = _make_fused_kernel(batch=B, seq_len=S, num_heads=num_heads, head_dim=head_dim)

    logits_pad = pl.pallas_call(
        kernel,
        out_shape=jax.ShapeDtypeStruct((B, v_pad), jnp.float32),
        grid=(depth,),
        in_specs=in_specs,
        out_specs=pl.BlockSpec((B, v_pad), lambda l: (0, 0)),
        scratch_shapes=[pltpu.VMEM((M, D), jnp.float32)],    # resident activation
        compiler_params=pltpu.CompilerParams(dimension_semantics=("arbitrary",)),
    )(*args)

    return logits_pad[:, :num_labels]


# --------------------------------------------------------------------------------------
# main
# --------------------------------------------------------------------------------------
if __name__ == "__main__":
    B, S = 2, 16
    D_MODEL, NUM_HEADS, D_FF, DEPTH = 128, 4, 256, 2
    VOCAB, UNIQUE_ANN, NUM_LABELS = 50, 10, 16

    key = jax.random.PRNGKey(0)
    pkey, tkey = jax.random.split(key)

    params = init_params(pkey, vocab_size=VOCAB, unique_annotators=UNIQUE_ANN,
                         num_labels=NUM_LABELS, d_model=D_MODEL, num_heads=NUM_HEADS,
                         d_ff=D_FF, depth=DEPTH, max_seq_len=S)

    text_tokens = jax.random.randint(tkey, (B, S), 0, VOCAB + UNIQUE_ANN, dtype=jnp.int32)
    text_lens = jnp.array([12, 16])
    text_mask = jnp.arange(S)[None, :] >= text_lens[:, None]                # True = padding

    logits = sequence_classification_forward(
        params, text_tokens=text_tokens, text_mask=text_mask,
        num_heads=NUM_HEADS, num_labels=NUM_LABELS)
    logits = jax.block_until_ready(logits)

    assert logits.shape == (B, NUM_LABELS), logits.shape
    assert bool(jnp.all(jnp.isfinite(logits)))
    print("KERNEL_OK")
</pallas_src>

<mosaic_0001>
module attributes {stable_mosaic.version = 11 : i64} {
  func.func @kernel(%arg0: i32, %arg1: memref<32x128xf32, #tpu.memory_space<vmem>>, %arg2: memref<32x32xf32, #tpu.memory_space<vmem>>, %arg3: memref<1x128xf32, #tpu.memory_space<vmem>>, %arg4: memref<1x128xf32, #tpu.memory_space<vmem>>, %arg5: memref<1x128x384xbf16, #tpu.memory_space<vmem>>, %arg6: memref<1x1x384xf32, #tpu.memory_space<vmem>>, %arg7: memref<1x128x128xbf16, #tpu.memory_space<vmem>>, %arg8: memref<1x1x128xf32, #tpu.memory_space<vmem>>, %arg9: memref<1x1x128xf32, #tpu.memory_space<vmem>>, %arg10: memref<1x1x128xf32, #tpu.memory_space<vmem>>, %arg11: memref<1x128x256xbf16, #tpu.memory_space<vmem>>, %arg12: memref<1x1x256xf32, #tpu.memory_space<vmem>>, %arg13: memref<1x256x128xbf16, #tpu.memory_space<vmem>>, %arg14: memref<1x1x128xf32, #tpu.memory_space<vmem>>, %arg15: memref<1x1x128xf32, #tpu.memory_space<vmem>>, %arg16: memref<1x1x128xf32, #tpu.memory_space<vmem>>, %arg17: memref<128x128xbf16, #tpu.memory_space<vmem>>, %arg18: memref<1x128xf32, #tpu.memory_space<vmem>>, %arg19: memref<128x128xbf16, #tpu.memory_space<vmem>>, %arg20: memref<1x128xf32, #tpu.memory_space<vmem>>, %arg21: memref<2x128xf32, #tpu.memory_space<vmem>>, %arg22: memref<32x128xf32, #tpu.memory_space<vmem>>) attributes {dimension_semantics = [#tpu.dimension_semantics<arbitrary>], iteration_bounds = array<i64: 2>, scalar_prefetch = 0 : i64, scratch_operands = 1 : i64, tpu.core_type = #tpu.core_type<tc>, window_params = [{pipeline_mode = #tpu.pipeline_mode<synchronous>, transform_indices = @transform_0, window_bounds = array<i64: 32, 128>}, {pipeline_mode = #tpu.pipeline_mode<synchronous>, transform_indices = @transform_1, window_bounds = array<i64: 32, 32>}, {pipeline_mode = #tpu.pipeline_mode<synchronous>, transform_indices = @transform_2, window_bounds = array<i64: 1, 128>}, {pipeline_mode = #tpu.pipeline_mode<synchronous>, transform_indices = @transform_3, window_bounds = array<i64: 1, 128>}, {transform_indices = @transform_4, window_bounds = array<i64: 1, 128, 384>}, {transform_indices = @transform_5, window_bounds = array<i64: 1, 1, 384>}, {transform_indices = @transform_6, window_bounds = array<i64: 1, 128, 128>}, {transform_indices = @transform_7, window_bounds = array<i64: 1, 1, 128>}, {transform_indices = @transform_8, window_bounds = array<i64: 1, 1, 128>}, {transform_indices = @transform_9, window_bounds = array<i64: 1, 1, 128>}, {transform_indices = @transform_10, window_bounds = array<i64: 1, 128, 256>}, {transform_indices = @transform_11, window_bounds = array<i64: 1, 1, 256>}, {transform_indices = @transform_12, window_bounds = array<i64: 1, 256, 128>}, {transform_indices = @transform_13, window_bounds = array<i64: 1, 1, 128>}, {transform_indices = @transform_14, window_bounds = array<i64: 1, 1, 128>}, {transform_indices = @transform_15, window_bounds = array<i64: 1, 1, 128>}, {pipeline_mode = #tpu.pipeline_mode<synchronous>, transform_indices = @transform_16, window_bounds = array<i64: 128, 128>}, {pipeline_mode = #tpu.pipeline_mode<synchronous>, transform_indices = @transform_17, window_bounds = array<i64: 1, 128>}, {pipeline_mode = #tpu.pipeline_mode<synchronous>, transform_indices = @transform_18, window_bounds = array<i64: 128, 128>}, {pipeline_mode = #tpu.pipeline_mode<synchronous>, transform_indices = @transform_19, window_bounds = array<i64: 1, 128>}, {pipeline_mode = #tpu.pipeline_mode<synchronous>, transform_indices = @transform_20, window_bounds = array<i64: 2, 128>}]} {
    %c0_i32 = arith.constant 0 : i32
    %0 = arith.cmpi eq, %arg0, %c0_i32 : i32
    %1 = arith.extui %0 : i1 to i32
    %c0_i32_0 = arith.constant 0 : i32
    %2 = arith.cmpi ne, %1, %c0_i32_0 : i32
    scf.if %2 {
      %c0_80 = arith.constant 0 : index
      %c0_81 = arith.constant 0 : index
      %192 = vector.load %arg1[%c0_80, %c0_81] : memref<32x128xf32, #tpu.memory_space<vmem>>, vector<32x128xf32>
      %c0_82 = arith.constant 0 : index
      %c0_83 = arith.constant 0 : index
      %193 = vector.load %arg3[%c0_82, %c0_83] : memref<1x128xf32, #tpu.memory_space<vmem>>, vector<1x128xf32>
      %c0_84 = arith.constant 0 : index
      %c0_85 = arith.constant 0 : index
      %194 = vector.load %arg4[%c0_84, %c0_85] : memref<1x128xf32, #tpu.memory_space<vmem>>, vector<1x128xf32>
      %cst_86 = arith.constant dense<0.000000e+00> : vector<32xf32>
      %195 = vector.multi_reduction <add>, %192, %cst_86 [1] : vector<32x128xf32> to vector<32xf32>
      %196 = vector.shape_cast %195 : vector<32xf32> to vector<32x1xf32>
      %cst_87 = arith.constant 1.280000e+02 : f32
      %197 = vector.broadcast %cst_87 : f32 to vector<32x1xf32>
      %198 = arith.divf %196, %197 : vector<32x1xf32>
      %199 = vector.broadcast %198 : vector<32x1xf32> to vector<32x128xf32>
      %200 = arith.subf %192, %199 : vector<32x128xf32>
      %201 = arith.mulf %200, %200 : vector<32x128xf32>
      %cst_88 = arith.constant dense<0.000000e+00> : vector<32xf32>
      %202 = vector.multi_reduction <add>, %201, %cst_88 [1] : vector<32x128xf32> to vector<32xf32>
      %203 = vector.shape_cast %202 : vector<32xf32> to vector<32x1xf32>
      %cst_89 = arith.constant 1.280000e+02 : f32
      %204 = vector.broadcast %cst_89 : f32 to vector<32x1xf32>
      %205 = arith.divf %203, %204 : vector<32x1xf32>
      %206 = vector.broadcast %198 : vector<32x1xf32> to vector<32x128xf32>
      %207 = arith.subf %192, %206 : vector<32x128xf32>
      %cst_90 = arith.constant 9.99999974E-6 : f32
      %208 = vector.broadcast %cst_90 : f32 to vector<32x1xf32>
      %209 = arith.addf %205, %208 : vector<32x1xf32>
      %210 = math.rsqrt %209 : vector<32x1xf32>
      %211 = vector.broadcast %210 : vector<32x1xf32> to vector<32x128xf32>
      %212 = arith.mulf %207, %211 : vector<32x128xf32>
      %213 = vector.broadcast %193 : vector<1x128xf32> to vector<32x128xf32>
      %214 = arith.mulf %212, %213 : vector<32x128xf32>
      %215 = vector.broadcast %194 : vector<1x128xf32> to vector<32x128xf32>
      %216 = arith.addf %214, %215 : vector<32x128xf32>
      %c0_91 = arith.constant 0 : index
      %c0_92 = arith.constant 0 : index
      %217 = vector.load %arg22[%c0_91, %c0_92] : memref<32x128xf32, #tpu.memory_space<vmem>>, vector<32x128xf32>
      tpu.vector_store %arg22[%c0_91, %c0_92], %216 {strides = array<i32>} : memref<32x128xf32, #tpu.memory_space<vmem>>, vector<32x128xf32>,
    } else {
    }
    %c0 = arith.constant 0 : index
    %c0_1 = arith.constant 0 : index
    %3 = vector.load %arg22[%c0, %c0_1] : memref<32x128xf32, #tpu.memory_space<vmem>>, vector<32x128xf32>
    %c0_2 = arith.constant 0 : index
    %c0_3 = arith.constant 0 : index
    %4 = vector.load %arg2[%c0_2, %c0_3] : memref<32x32xf32, #tpu.memory_space<vmem>>, vector<32x32xf32>
    %5 = arith.truncf %3 : vector<32x128xf32> to vector<32x128xbf16>
    %c0_4 = arith.constant 0 : index
    %c0_5 = arith.constant 0 : index
    %c0_6 = arith.constant 0 : index
    %6 = vector.load %arg5[%c0_4, %c0_5, %c0_6] : memref<1x128x384xbf16, #tpu.memory_space<vmem>>, vector<1x128x384xbf16>
    %7 = vector.shape_cast %6 : vector<1x128x384xbf16> to vector<128x384xbf16>
    %cst = arith.constant dense<0.000000e+00> : vector<32x384xf32>
    %8 = tpu.matmul %5, %7, %cst {dimension_numbers = #tpu.dot_dimension_numbers<[1], [0], [0], [1], [0, 0, 1, 1], [], []>} : vector<32x128xbf16>, vector<128x384xbf16>, vector<32x384xf32> -> vector<32x384xf32>
    %c0_7 = arith.constant 0 : index
    %c0_8 = arith.constant 0 : index
    %c0_9 = arith.constant 0 : index
    %9 = vector.load %arg6[%c0_7, %c0_8, %c0_9] : memref<1x1x384xf32, #tpu.memory_space<vmem>>, vector<1x1x384xf32>
    %10 = vector.shape_cast %9 : vector<1x1x384xf32> to vector<1x384xf32>
    %11 = vector.broadcast %10 : vector<1x384xf32> to vector<32x384xf32>
    %12 = arith.addf %8, %11 : vector<32x384xf32>
    %13 = arith.truncf %12 : vector<32x384xf32> to vector<32x384xbf16>
    %c0_10 = arith.constant 0 : index
    %c0_11 = arith.constant 0 : index
    %c0_12 = arith.constant 0 : index
    %14 = vector.load %arg7[%c0_10, %c0_11, %c0_12] : memref<1x128x128xbf16, #tpu.memory_space<vmem>>, vector<1x128x128xbf16>
    %15 = vector.shape_cast %14 : vector<1x128x128xbf16> to vector<128x128xbf16>
    %cst_13 = arith.constant 0.000000e+00 : f32
    %16 = vector.broadcast %cst_13 : f32 to vector<32x128xf32>
    %17 = vector.extract_strided_slice %13 {offsets = [0, 0], sizes = [32, 32], strides = [1, 1]} : vector<32x384xbf16> to vector<32x32xbf16>
    %18 = vector.extract_strided_slice %13 {offsets = [0, 128], sizes = [32, 32], strides = [1, 1]} : vector<32x384xbf16> to vector<32x32xbf16>
    %19 = vector.extract_strided_slice %13 {offsets = [0, 256], sizes = [32, 32], strides = [1, 1]} : vector<32x384xbf16> to vector<32x32xbf16>
    %cst_14 = arith.constant dense<0.000000e+00> : vector<32x32xf32>
    %20 = tpu.matmul %17, %18, %cst_14 {dimension_numbers = #tpu.dot_dimension_numbers<[1], [1], [0], [0], [0, 0, 1, 0], [], []>} : vector<32x32xbf16>, vector<32x32xbf16>, vector<32x32xf32> -> vector<32x32xf32>
    %21 = arith.addf %20, %4 : vector<32x32xf32>
    %cst_15 = arith.constant dense<0xFF800000> : vector<32xf32>
    %22 = vector.multi_reduction <maximumf>, %21, %cst_15 [1] : vector<32x32xf32> to vector<32xf32>
    %23 = vector.shape_cast %22 : vector<32xf32> to vector<32x1xf32>
    %24 = vector.broadcast %23 : vector<32x1xf32> to vector<32x32xf32>
    %25 = arith.subf %21, %24 : vector<32x32xf32>
    %26 = math.exp %25 : vector<32x32xf32>
    %cst_16 = arith.constant dense<0.000000e+00> : vector<32xf32>
    %27 = vector.multi_reduction <add>, %26, %cst_16 [1] : vector<32x32xf32> to vector<32xf32>
    %28 = vector.shape_cast %27 : vector<32xf32> to vector<32x1xf32>
    %29 = tpu.reciprocal %28 {approx = true} : vector<32x1xf32> -> vector<32x1xf32>
    %30 = vector.broadcast %29 : vector<32x1xf32> to vector<32x32xf32>
    %31 = arith.mulf %26, %30 : vector<32x32xf32>
    %32 = arith.truncf %31 : vector<32x32xf32> to vector<32x32xbf16>
    %cst_17 = arith.constant dense<0.000000e+00> : vector<32x32xf32>
    %33 = tpu.matmul %32, %19, %cst_17 {dimension_numbers = #tpu.dot_dimension_numbers<[1], [0], [0], [1], [0, 0, 1, 1], [], []>} : vector<32x32xbf16>, vector<32x32xbf16>, vector<32x32xf32> -> vector<32x32xf32>
    %34 = arith.truncf %33 : vector<32x32xf32> to vector<32x32xbf16>
    %35 = vector.extract_strided_slice %15 {offsets = [0, 0], sizes = [32, 128], strides = [1, 1]} : vector<128x128xbf16> to vector<32x128xbf16>
    %cst_18 = arith.constant dense<0.000000e+00> : vector<32x128xf32>
    %36 = tpu.matmul %34, %35, %cst_18 {dimension_numbers = #tpu.dot_dimension_numbers<[1], [0], [0], [1], [0, 0, 1, 1], [], []>} : vector<32x32xbf16>, vector<32x128xbf16>, vector<32x128xf32> -> vector<32x128xf32>
    %37 = arith.addf %16, %36 : vector<32x128xf32>
    %38 = vector.extract_strided_slice %13 {offsets = [0, 32], sizes = [32, 32], strides = [1, 1]} : vector<32x384xbf16> to vector<32x32xbf16>
    %39 = vector.extract_strided_slice %13 {offsets = [0, 160], sizes = [32, 32], strides = [1, 1]} : vector<32x384xbf16> to vector<32x32xbf16>
    %40 = vector.extract_strided_slice %13 {offsets = [0, 288], sizes = [32, 32], strides = [1, 1]} : vector<32x384xbf16> to vector<32x32xbf16>
    %cst_19 = arith.constant dense<0.000000e+00> : vector<32x32xf32>
    %41 = tpu.matmul %38, %39, %cst_19 {dimension_numbers = #tpu.dot_dimension_numbers<[1], [1], [0], [0], [0, 0, 1, 0], [], []>} : vector<32x32xbf16>, vector<32x32xbf16>, vector<32x32xf32> -> vector<32x32xf32>
    %42 = arith.addf %41, %4 : vector<32x32xf32>
    %cst_20 = arith.constant dense<0xFF800000> : vector<32xf32>
    %43 = vector.multi_reduction <maximumf>, %42, %cst_20 [1] : vector<32x32xf32> to vector<32xf32>
    %44 = vector.shape_cast %43 : vector<32xf32> to vector<32x1xf32>
    %45 = vector.broadcast %44 : vector<32x1xf32> to vector<32x32xf32>
    %46 = arith.subf %42, %45 : vector<32x32xf32>
    %47 = math.exp %46 : vector<32x32xf32>
    %cst_21 = arith.constant dense<0.000000e+00> : vector<32xf32>
    %48 = vector.multi_reduction <add>, %47, %cst_21 [1] : vector<32x32xf32> to vector<32xf32>
    %49 = vector.shape_cast %48 : vector<32xf32> to vector<32x1xf32>
    %50 = tpu.reciprocal %49 {approx = true} : vector<32x1xf32> -> vector<32x1xf32>
    %51 = vector.broadcast %50 : vector<32x1xf32> to vector<32x32xf32>
    %52 = arith.mulf %47, %51 : vector<32x32xf32>
    %53 = arith.truncf %52 : vector<32x32xf32> to vector<32x32xbf16>
    %cst_22 = arith.constant dense<0.000000e+00> : vector<32x32xf32>
    %54 = tpu.matmul %53, %40, %cst_22 {dimension_numbers = #tpu.dot_dimension_numbers<[1], [0], [0], [1], [0, 0, 1, 1], [], []>} : vector<32x32xbf16>, vector<32x32xbf16>, vector<32x32xf32> -> vector<32x32xf32>
    %55 = arith.truncf %54 : vector<32x32xf32> to vector<32x32xbf16>
    %56 = vector.extract_strided_slice %15 {offsets = [32, 0], sizes = [32, 128], strides = [1, 1]} : vector<128x128xbf16> to vector<32x128xbf16>
    %cst_23 = arith.constant dense<0.000000e+00> : vector<32x128xf32>
    %57 = tpu.matmul %55, %56, %cst_23 {dimension_numbers = #tpu.dot_dimension_numbers<[1], [0], [0], [1], [0, 0, 1, 1], [], []>} : vector<32x32xbf16>, vector<32x128xbf16>, vector<32x128xf32> -> vector<32x128xf32>
    %58 = arith.addf %37, %57 : vector<32x128xf32>
    %59 = vector.extract_strided_slice %13 {offsets = [0, 64], sizes = [32, 32], strides = [1, 1]} : vector<32x384xbf16> to vector<32x32xbf16>
    %60 = vector.extract_strided_slice %13 {offsets = [0, 192], sizes = [32, 32], strides = [1, 1]} : vector<32x384xbf16> to vector<32x32xbf16>
    %61 = vector.extract_strided_slice %13 {offsets = [0, 320], sizes = [32, 32], strides = [1, 1]} : vector<32x384xbf16> to vector<32x32xbf16>
    %cst_24 = arith.constant dense<0.000000e+00> : vector<32x32xf32>
    %62 = tpu.matmul %59, %60, %cst_24 {dimension_numbers = #tpu.dot_dimension_numbers<[1], [1], [0], [0], [0, 0, 1, 0], [], []>} : vector<32x32xbf16>, vector<32x32xbf16>, vector<32x32xf32> -> vector<32x32xf32>
    %63 = arith.addf %62, %4 : vector<32x32xf32>
    %cst_25 = arith.constant dense<0xFF800000> : vector<32xf32>
    %64 = vector.multi_reduction <maximumf>, %63, %cst_25 [1] : vector<32x32xf32> to vector<32xf32>
    %65 = vector.shape_cast %64 : vector<32xf32> to vector<32x1xf32>
    %66 = vector.broadcast %65 : vector<32x1xf32> to vector<32x32xf32>
    %67 = arith.subf %63, %66 : vector<32x32xf32>
    %68 = math.exp %67 : vector<32x32xf32>
    %cst_26 = arith.constant dense<0.000000e+00> : vector<32xf32>
    %69 = vector.multi_reduction <add>, %68, %cst_26 [1] : vector<32x32xf32> to vector<32xf32>
    %70 = vector.shape_cast %69 : vector<32xf32> to vector<32x1xf32>
    %71 = tpu.reciprocal %70 {approx = true} : vector<32x1xf32> -> vector<32x1xf32>
    %72 = vector.broadcast %71 : vector<32x1xf32> to vector<32x32xf32>
    %73 = arith.mulf %68, %72 : vector<32x32xf32>
    %74 = arith.truncf %73 : vector<32x32xf32> to vector<32x32xbf16>
    %cst_27 = arith.constant dense<0.000000e+00> : vector<32x32xf32>
    %75 = tpu.matmul %74, %61, %cst_27 {dimension_numbers = #tpu.dot_dimension_numbers<[1], [0], [0], [1], [0, 0, 1, 1], [], []>} : vector<32x32xbf16>, vector<32x32xbf16>, vector<32x32xf32> -> vector<32x32xf32>
    %76 = arith.truncf %75 : vector<32x32xf32> to vector<32x32xbf16>
    %77 = vector.extract_strided_slice %15 {offsets = [64, 0], sizes = [32, 128], strides = [1, 1]} : vector<128x128xbf16> to vector<32x128xbf16>
    %cst_28 = arith.constant dense<0.000000e+00> : vector<32x128xf32>
    %78 = tpu.matmul %76, %77, %cst_28 {dimension_numbers = #tpu.dot_dimension_numbers<[1], [0], [0], [1], [0, 0, 1, 1], [], []>} : vector<32x32xbf16>, vector<32x128xbf16>, vector<32x128xf32> -> vector<32x128xf32>
    %79 = arith.addf %58, %78 : vector<32x128xf32>
    %80 = vector.extract_strided_slice %13 {offsets = [0, 96], sizes = [32, 32], strides = [1, 1]} : vector<32x384xbf16> to vector<32x32xbf16>
    %81 = vector.extract_strided_slice %13 {offsets = [0, 224], sizes = [32, 32], strides = [1, 1]} : vector<32x384xbf16> to vector<32x32xbf16>
    %82 = vector.extract_strided_slice %13 {offsets = [0, 352], sizes = [32, 32], strides = [1, 1]} : vector<32x384xbf16> to vector<32x32xbf16>
    %cst_29 = arith.constant dense<0.000000e+00> : vector<32x32xf32>
    %83 = tpu.matmul %80, %81, %cst_29 {dimension_numbers = #tpu.dot_dimension_numbers<[1], [1], [0], [0], [0, 0, 1, 0], [], []>} : vector<32x32xbf16>, vector<32x32xbf16>, vector<32x32xf32> -> vector<32x32xf32>
    %84 = arith.addf %83, %4 : vector<32x32xf32>
    %cst_30 = arith.constant dense<0xFF800000> : vector<32xf32>
    %85 = vector.multi_reduction <maximumf>, %84, %cst_30 [1] : vector<32x32xf32> to vector<32xf32>
    %86 = vector.shape_cast %85 : vector<32xf32> to vector<32x1xf32>
    %87 = vector.broadcast %86 : vector<32x1xf32> to vector<32x32xf32>
    %88 = arith.subf %84, %87 : vector<32x32xf32>
    %89 = math.exp %88 : vector<32x32xf32>
    %cst_31 = arith.constant dense<0.000000e+00> : vector<32xf32>
    %90 = vector.multi_reduction <add>, %89, %cst_31 [1] : vector<32x32xf32> to vector<32xf32>
    %91 = vector.shape_cast %90 : vector<32xf32> to vector<32x1xf32>
    %92 = tpu.reciprocal %91 {approx = true} : vector<32x1xf32> -> vector<32x1xf32>
    %93 = vector.broadcast %92 : vector<32x1xf32> to vector<32x32xf32>
    %94 = arith.mulf %89, %93 : vector<32x32xf32>
    %95 = arith.truncf %94 : vector<32x32xf32> to vector<32x32xbf16>
    %cst_32 = arith.constant dense<0.000000e+00> : vector<32x32xf32>
    %96 = tpu.matmul %95, %82, %cst_32 {dimension_numbers = #tpu.dot_dimension_numbers<[1], [0], [0], [1], [0, 0, 1, 1], [], []>} : vector<32x32xbf16>, vector<32x32xbf16>, vector<32x32xf32> -> vector<32x32xf32>
    %97 = arith.truncf %96 : vector<32x32xf32> to vector<32x32xbf16>
    %98 = vector.extract_strided_slice %15 {offsets = [96, 0], sizes = [32, 128], strides = [1, 1]} : vector<128x128xbf16> to vector<32x128xbf16>
    %cst_33 = arith.constant dense<0.000000e+00> : vector<32x128xf32>
    %99 = tpu.matmul %97, %98, %cst_33 {dimension_numbers = #tpu.dot_dimension_numbers<[1], [0], [0], [1], [0, 0, 1, 1], [], []>} : vector<32x32xbf16>, vector<32x128xbf16>, vector<32x128xf32> -> vector<32x128xf32>
    %100 = arith.addf %79, %99 : vector<32x128xf32>
    %101 = arith.addf %3, %100 : vector<32x128xf32>
    %c0_34 = arith.constant 0 : index
    %c0_35 = arith.constant 0 : index
    %c0_36 = arith.constant 0 : index
    %102 = vector.load %arg8[%c0_34, %c0_35, %c0_36] : memref<1x1x128xf32, #tpu.memory_space<vmem>>, vector<1x1x128xf32>
    %103 = vector.shape_cast %102 : vector<1x1x128xf32> to vector<1x128xf32>
    %104 = vector.broadcast %103 : vector<1x128xf32> to vector<32x128xf32>
    %105 = arith.addf %101, %104 : vector<32x128xf32>
    %c0_37 = arith.constant 0 : index
    %c0_38 = arith.constant 0 : index
    %c0_39 = arith.constant 0 : index
    %106 = vector.load %arg9[%c0_37, %c0_38, %c0_39] : memref<1x1x128xf32, #tpu.memory_space<vmem>>, vector<1x1x128xf32>
    %107 = vector.shape_cast %106 : vector<1x1x128xf32> to vector<1x128xf32>
    %c0_40 = arith.constant 0 : index
    %c0_41 = arith.constant 0 : index
    %c0_42 = arith.constant 0 : index
    %108 = vector.load %arg10[%c0_40, %c0_41, %c0_42] : memref<1x1x128xf32, #tpu.memory_space<vmem>>, vector<1x1x128xf32>
    %109 = vector.shape_cast %108 : vector<1x1x128xf32> to vector<1x128xf32>
    %cst_43 = arith.constant dense<0.000000e+00> : vector<32xf32>
    %110 = vector.multi_reduction <add>, %105, %cst_43 [1] : vector<32x128xf32> to vector<32xf32>
    %111 = vector.shape_cast %110 : vector<32xf32> to vector<32x1xf32>
    %cst_44 = arith.constant 1.280000e+02 : f32
    %112 = vector.broadcast %cst_44 : f32 to vector<32x1xf32>
    %113 = arith.divf %111, %112 : vector<32x1xf32>
    %114 = vector.broadcast %113 : vector<32x1xf32> to vector<32x128xf32>
    %115 = arith.subf %105, %114 : vector<32x128xf32>
    %116 = arith.mulf %115, %115 : vector<32x128xf32>
    %cst_45 = arith.constant dense<0.000000e+00> : vector<32xf32>
    %117 = vector.multi_reduction <add>, %116, %cst_45 [1] : vector<32x128xf32> to vector<32xf32>
    %118 = vector.shape_cast %117 : vector<32xf32> to vector<32x1xf32>
    %cst_46 = arith.constant 1.280000e+02 : f32
    %119 = vector.broadcast %cst_46 : f32 to vector<32x1xf32>
    %120 = arith.divf %118, %119 : vector<32x1xf32>
    %121 = vector.broadcast %113 : vector<32x1xf32> to vector<32x128xf32>
    %122 = arith.subf %105, %121 : vector<32x128xf32>
    %cst_47 = arith.constant 9.99999974E-6 : f32
    %123 = vector.broadcast %cst_47 : f32 to vector<32x1xf32>
    %124 = arith.addf %120, %123 : vector<32x1xf32>
    %125 = math.rsqrt %124 : vector<32x1xf32>
    %126 = vector.broadcast %125 : vector<32x1xf32> to vector<32x128xf32>
    %127 = arith.mulf %122, %126 : vector<32x128xf32>
    %128 = vector.broadcast %107 : vector<1x128xf32> to vector<32x128xf32>
    %129 = arith.mulf %127, %128 : vector<32x128xf32>
    %130 = vector.broadcast %109 : vector<1x128xf32> to vector<32x128xf32>
    %131 = arith.addf %129, %130 : vector<32x128xf32>
    %132 = arith.truncf %131 : vector<32x128xf32> to vector<32x128xbf16>
    %c0_48 = arith.constant 0 : index
    %c0_49 = arith.constant 0 : index
    %c0_50 = arith.constant 0 : index
    %133 = vector.load %arg11[%c0_48, %c0_49, %c0_50] : memref<1x128x256xbf16, #tpu.memory_space<vmem>>, vector<1x128x256xbf16>
    %134 = vector.shape_cast %133 : vector<1x128x256xbf16> to vector<128x256xbf16>
    %cst_51 = arith.constant dense<0.000000e+00> : vector<32x256xf32>
    %135 = tpu.matmul %132, %134, %cst_51 {dimension_numbers = #tpu.dot_dimension_numbers<[1], [0], [0], [1], [0, 0, 1, 1], [], []>} : vector<32x128xbf16>, vector<128x256xbf16>, vector<32x256xf32> -> vector<32x256xf32>
    %c0_52 = arith.constant 0 : index
    %c0_53 = arith.constant 0 : index
    %c0_54 = arith.constant 0 : index
    %136 = vector.load %arg12[%c0_52, %c0_53, %c0_54] : memref<1x1x256xf32, #tpu.memory_space<vmem>>, vector<1x1x256xf32>
    %137 = vector.shape_cast %136 : vector<1x1x256xf32> to vector<1x256xf32>
    %138 = vector.broadcast %137 : vector<1x256xf32> to vector<32x256xf32>
    %139 = arith.addf %135, %138 : vector<32x256xf32>
    %cst_55 = arith.constant 5.000000e-01 : f32
    %140 = vector.broadcast %cst_55 : f32 to vector<32x256xf32>
    %141 = arith.mulf %140, %139 : vector<32x256xf32>
    %cst_56 = arith.constant 4.471500e-02 : f32
    %142 = vector.broadcast %cst_56 : f32 to vector<32x256xf32>
    %143 = arith.mulf %142, %139 : vector<32x256xf32>
    %144 = arith.mulf %143, %139 : vector<32x256xf32>
    %145 = arith.mulf %144, %139 : vector<32x256xf32>
    %146 = arith.addf %139, %145 : vector<32x256xf32>
    %cst_57 = arith.constant 0.797884583 : f32
    %147 = vector.broadcast %cst_57 : f32 to vector<32x256xf32>
    %148 = arith.mulf %147, %146 : vector<32x256xf32>
    %149 = math.tanh %148 : vector<32x256xf32>
    %cst_58 = arith.constant 1.000000e+00 : f32
    %150 = vector.broadcast %cst_58 : f32 to vector<32x256xf32>
    %151 = arith.addf %150, %149 : vector<32x256xf32>
    %152 = arith.mulf %141, %151 : vector<32x256xf32>
    %153 = arith.truncf %152 : vector<32x256xf32> to vector<32x256xbf16>
    %c0_59 = arith.constant 0 : index
    %c0_60 = arith.constant 0 : index
    %c0_61 = arith.constant 0 : index
    %154 = vector.load %arg13[%c0_59, %c0_60, %c0_61] : memref<1x256x128xbf16, #tpu.memory_space<vmem>>, vector<1x256x128xbf16>
    %155 = vector.shape_cast %154 : vector<1x256x128xbf16> to vector<256x128xbf16>
    %cst_62 = arith.constant dense<0.000000e+00> : vector<32x128xf32>
    %156 = tpu.matmul %153, %155, %cst_62 {dimension_numbers = #tpu.dot_dimension_numbers<[1], [0], [0], [1], [0, 0, 1, 1], [], []>} : vector<32x256xbf16>, vector<256x128xbf16>, vector<32x128xf32> -> vector<32x128xf32>
    %c0_63 = arith.constant 0 : index
    %c0_64 = arith.constant 0 : index
    %c0_65 = arith.constant 0 : index
    %157 = vector.load %arg14[%c0_63, %c0_64, %c0_65] : memref<1x1x128xf32, #tpu.memory_space<vmem>>, vector<1x1x128xf32>
    %158 = vector.shape_cast %157 : vector<1x1x128xf32> to vector<1x128xf32>
    %159 = vector.broadcast %158 : vector<1x128xf32> to vector<32x128xf32>
    %160 = arith.addf %156, %159 : vector<32x128xf32>
    %161 = arith.addf %131, %160 : vector<32x128xf32>
    %c0_66 = arith.constant 0 : index
    %c0_67 = arith.constant 0 : index
    %c0_68 = arith.constant 0 : index
    %162 = vector.load %arg15[%c0_66, %c0_67, %c0_68] : memref<1x1x128xf32, #tpu.memory_space<vmem>>, vector<1x1x128xf32>
    %163 = vector.shape_cast %162 : vector<1x1x128xf32> to vector<1x128xf32>
    %c0_69 = arith.constant 0 : index
    %c0_70 = arith.constant 0 : index
    %c0_71 = arith.constant 0 : index
    %164 = vector.load %arg16[%c0_69, %c0_70, %c0_71] : memref<1x1x128xf32, #tpu.memory_space<vmem>>, vector<1x1x128xf32>
    %165 = vector.shape_cast %164 : vector<1x1x128xf32> to vector<1x128xf32>
    %cst_72 = arith.constant dense<0.000000e+00> : vector<32xf32>
    %166 = vector.multi_reduction <add>, %161, %cst_72 [1] : vector<32x128xf32> to vector<32xf32>
    %167 = vector.shape_cast %166 : vector<32xf32> to vector<32x1xf32>
    %cst_73 = arith.constant 1.280000e+02 : f32
    %168 = vector.broadcast %cst_73 : f32 to vector<32x1xf32>
    %169 = arith.divf %167, %168 : vector<32x1xf32>
    %170 = vector.broadcast %169 : vector<32x1xf32> to vector<32x128xf32>
    %171 = arith.subf %161, %170 : vector<32x128xf32>
    %172 = arith.mulf %171, %171 : vector<32x128xf32>
    %cst_74 = arith.constant dense<0.000000e+00> : vector<32xf32>
    %173 = vector.multi_reduction <add>, %172, %cst_74 [1] : vector<32x128xf32> to vector<32xf32>
    %174 = vector.shape_cast %173 : vector<32xf32> to vector<32x1xf32>
    %cst_75 = arith.constant 1.280000e+02 : f32
    %175 = vector.broadcast %cst_75 : f32 to vector<32x1xf32>
    %176 = arith.divf %174, %175 : vector<32x1xf32>
    %177 = vector.broadcast %169 : vector<32x1xf32> to vector<32x128xf32>
    %178 = arith.subf %161, %177 : vector<32x128xf32>
    %cst_76 = arith.constant 9.99999974E-6 : f32
    %179 = vector.broadcast %cst_76 : f32 to vector<32x1xf32>
    %180 = arith.addf %176, %179 : vector<32x1xf32>
    %181 = math.rsqrt %180 : vector<32x1xf32>
    %182 = vector.broadcast %181 : vector<32x1xf32> to vector<32x128xf32>
    %183 = arith.mulf %178, %182 : vector<32x128xf32>
    %184 = vector.broadcast %163 : vector<1x128xf32> to vector<32x128xf32>
    %185 = arith.mulf %183, %184 : vector<32x128xf32>
    %186 = vector.broadcast %165 : vector<1x128xf32> to vector<32x128xf32>
    %187 = arith.addf %185, %186 : vector<32x128xf32>
    %c0_77 = arith.constant 0 : index
    %c0_78 = arith.constant 0 : index
    %188 = vector.load %arg22[%c0_77, %c0_78] : memref<32x128xf32, #tpu.memory_space<vmem>>, vector<32x128xf32>
    tpu.vector_store %arg22[%c0_77, %c0_78], %187 {strides = array<i32>} : memref<32x128xf32, #tpu.memory_space<vmem>>, vector<32x128xf32>,
    %c1_i32 = arith.constant 1 : i32
    %189 = arith.cmpi eq, %arg0, %c1_i32 : i32
    %190 = arith.extui %189 : i1 to i32
    %c0_i32_79 = arith.constant 0 : i32
    %191 = arith.cmpi ne, %190, %c0_i32_79 : i32
    scf.if %191 {
      %192 = vector.extract_strided_slice %187 {offsets = [0, 0], sizes = [1, 128], strides = [1, 1]} : vector<32x128xf32> to vector<1x128xf32>
      %193 = vector.extract_strided_slice %187 {offsets = [16, 0], sizes = [1, 128], strides = [1, 1]} : vector<32x128xf32> to vector<1x128xf32>
      %194 = tpu.concatenate %192, %193 in 0 : vector<1x128xf32>, vector<1x128xf32> -> vector<2x128xf32>
      %195 = arith.truncf %194 : vector<2x128xf32> to vector<2x128xbf16>
      %c0_80 = arith.constant 0 : index
      %c0_81 = arith.constant 0 : index
      %196 = vector.load %arg17[%c0_80, %c0_81] : memref<128x128xbf16, #tpu.memory_space<vmem>>, vector<128x128xbf16>
      %cst_82 = arith.constant dense<0.000000e+00> : vector<2x128xf32>
      %197 = tpu.matmul %195, %196, %cst_82 {dimension_numbers = #tpu.dot_dimension_numbers<[1], [0], [0], [1], [0, 0, 1, 1], [], []>} : vector<2x128xbf16>, vector<128x128xbf16>, vector<2x128xf32> -> vector<2x128xf32>
      %c0_83 = arith.constant 0 : index
      %c0_84 = arith.constant 0 : index
      %198 = vector.load %arg18[%c0_83, %c0_84] : memref<1x128xf32, #tpu.memory_space<vmem>>, vector<1x128xf32>
      %199 = vector.broadcast %198 : vector<1x128xf32> to vector<2x128xf32>
      %200 = arith.addf %197, %199 : vector<2x128xf32>
      %201 = math.tanh %200 : vector<2x128xf32>
      %202 = arith.truncf %201 : vector<2x128xf32> to vector<2x128xbf16>
      %c0_85 = arith.constant 0 : index
      %c0_86 = arith.constant 0 : index
      %203 = vector.load %arg19[%c0_85, %c0_86] : memref<128x128xbf16, #tpu.memory_space<vmem>>, vector<128x128xbf16>
      %cst_87 = arith.constant dense<0.000000e+00> : vector<2x128xf32>
      %204 = tpu.matmul %202, %203, %cst_87 {dimension_numbers = #tpu.dot_dimension_numbers<[1], [0], [0], [1], [0, 0, 1, 1], [], []>} : vector<2x128xbf16>, vector<128x128xbf16>, vector<2x128xf32> -> vector<2x128xf32>
      %c0_88 = arith.constant 0 : index
      %c0_89 = arith.constant 0 : index
      %205 = vector.load %arg20[%c0_88, %c0_89] : memref<1x128xf32, #tpu.memory_space<vmem>>, vector<1x128xf32>
      %206 = vector.broadcast %205 : vector<1x128xf32> to vector<2x128xf32>
      %207 = arith.addf %204, %206 : vector<2x128xf32>
      %c0_90 = arith.constant 0 : index
      %c0_91 = arith.constant 0 : index
      %208 = vector.load %arg21[%c0_90, %c0_91] : memref<2x128xf32, #tpu.memory_space<vmem>>, vector<2x128xf32>
      tpu.vector_store %arg21[%c0_90, %c0_91], %207 {strides = array<i32>} : memref<2x128xf32, #tpu.memory_space<vmem>>, vector<2x128xf32>,
    } else {
    }
    return
  }
  func.func @transform_0(%arg0: i32) -> (i32, i32) {
    %c0_i32 = arith.constant 0 : i32
    %c0_i32_0 = arith.constant 0 : i32
    %c0_i32_1 = arith.constant 0 : i32
    return %c0_i32, %c0_i32_0 : i32, i32
  }
  func.func @transform_1(%arg0: i32) -> (i32, i32) {
    %c0_i32 = arith.constant 0 : i32
    %c0_i32_0 = arith.constant 0 : i32
    %c0_i32_1 = arith.constant 0 : i32
    return %c0_i32, %c0_i32_0 : i32, i32
  }
  func.func @transform_2(%arg0: i32) -> (i32, i32) {
    %c0_i32 = arith.constant 0 : i32
    %c0_i32_0 = arith.constant 0 : i32
    %c0_i32_1 = arith.constant 0 : i32
    return %c0_i32, %c0_i32_0 : i32, i32
  }
  func.func @transform_3(%arg0: i32) -> (i32, i32) {
    %c0_i32 = arith.constant 0 : i32
    %c0_i32_0 = arith.constant 0 : i32
    %c0_i32_1 = arith.constant 0 : i32
    return %c0_i32, %c0_i32_0 : i32, i32
  }
  func.func @transform_4(%arg0: i32) -> (i32, i32, i32) {
    %c0_i32 = arith.constant 0 : i32
    %c0_i32_0 = arith.constant 0 : i32
    %c0_i32_1 = arith.constant 0 : i32
    return %arg0, %c0_i32, %c0_i32_0 : i32, i32, i32
  }
  func.func @transform_5(%arg0: i32) -> (i32, i32, i32) {
    %c0_i32 = arith.constant 0 : i32
    %c0_i32_0 = arith.constant 0 : i32
    %c0_i32_1 = arith.constant 0 : i32
    return %arg0, %c0_i32, %c0_i32_0 : i32, i32, i32
  }
  func.func @transform_6(%arg0: i32) -> (i32, i32, i32) {
    %c0_i32 = arith.constant 0 : i32
    %c0_i32_0 = arith.constant 0 : i32
    %c0_i32_1 = arith.constant 0 : i32
    return %arg0, %c0_i32, %c0_i32_0 : i32, i32, i32
  }
  func.func @transform_7(%arg0: i32) -> (i32, i32, i32) {
    %c0_i32 = arith.constant 0 : i32
    %c0_i32_0 = arith.constant 0 : i32
    %c0_i32_1 = arith.constant 0 : i32
    return %arg0, %c0_i32, %c0_i32_0 : i32, i32, i32
  }
  func.func @transform_8(%arg0: i32) -> (i32, i32, i32) {
    %c0_i32 = arith.constant 0 : i32
    %c0_i32_0 = arith.constant 0 : i32
    %c0_i32_1 = arith.constant 0 : i32
    return %arg0, %c0_i32, %c0_i32_0 : i32, i32, i32
  }
  func.func @transform_9(%arg0: i32) -> (i32, i32, i32) {
    %c0_i32 = arith.constant 0 : i32
    %c0_i32_0 = arith.constant 0 : i32
    %c0_i32_1 = arith.constant 0 : i32
    return %arg0, %c0_i32, %c0_i32_0 : i32, i32, i32
  }
  func.func @transform_10(%arg0: i32) -> (i32, i32, i32) {
    %c0_i32 = arith.constant 0 : i32
    %c0_i32_0 = arith.constant 0 : i32
    %c0_i32_1 = arith.constant 0 : i32
    return %arg0, %c0_i32, %c0_i32_0 : i32, i32, i32
  }
  func.func @transform_11(%arg0: i32) -> (i32, i32, i32) {
    %c0_i32 = arith.constant 0 : i32
    %c0_i32_0 = arith.constant 0 : i32
    %c0_i32_1 = arith.constant 0 : i32
    return %arg0, %c0_i32, %c0_i32_0 : i32, i32, i32
  }
  func.func @transform_12(%arg0: i32) -> (i32, i32, i32) {
    %c0_i32 = arith.constant 0 : i32
    %c0_i32_0 = arith.constant 0 : i32
    %c0_i32_1 = arith.constant 0 : i32
    return %arg0, %c0_i32, %c0_i32_0 : i32, i32, i32
  }
  func.func @transform_13(%arg0: i32) -> (i32, i32, i32) {
    %c0_i32 = arith.constant 0 : i32
    %c0_i32_0 = arith.constant 0 : i32
    %c0_i32_1 = arith.constant 0 : i32
    return %arg0, %c0_i32, %c0_i32_0 : i32, i32, i32
  }
  func.func @transform_14(%arg0: i32) -> (i32, i32, i32) {
    %c0_i32 = arith.constant 0 : i32
    %c0_i32_0 = arith.constant 0 : i32
    %c0_i32_1 = arith.constant 0 : i32
    return %arg0, %c0_i32, %c0_i32_0 : i32, i32, i32
  }
  func.func @transform_15(%arg0: i32) -> (i32, i32, i32) {
    %c0_i32 = arith.constant 0 : i32
    %c0_i32_0 = arith.constant 0 : i32
    %c0_i32_1 = arith.constant 0 : i32
    return %arg0, %c0_i32, %c0_i32_0 : i32, i32, i32
  }
  func.func @transform_16(%arg0: i32) -> (i32, i32) {
    %c0_i32 = arith.constant 0 : i32
    %c0_i32_0 = arith.constant 0 : i32
    %c0_i32_1 = arith.constant 0 : i32
    return %c0_i32, %c0_i32_0 : i32, i32
  }
  func.func @transform_17(%arg0: i32) -> (i32, i32) {
    %c0_i32 = arith.constant 0 : i32
    %c0_i32_0 = arith.constant 0 : i32
    %c0_i32_1 = arith.constant 0 : i32
    return %c0_i32, %c0_i32_0 : i32, i32
  }
  func.func @transform_18(%arg0: i32) -> (i32, i32) {
    %c0_i32 = arith.constant 0 : i32
    %c0_i32_0 = arith.constant 0 : i32
    %c0_i32_1 = arith.constant 0 : i32
    return %c0_i32, %c0_i32_0 : i32, i32
  }
  func.func @transform_19(%arg0: i32) -> (i32, i32) {
    %c0_i32 = arith.constant 0 : i32
    %c0_i32_0 = arith.constant 0 : i32
    %c0_i32_1 = arith.constant 0 : i32
    return %c0_i32, %c0_i32_0 : i32, i32
  }
  func.func @transform_20(%arg0: i32) -> (i32, i32) {
    %c0_i32 = arith.constant 0 : i32
    %c0_i32_0 = arith.constant 0 : i32
    %c0_i32_1 = arith.constant 0 : i32
    return %c0_i32, %c0_i32_0 : i32, i32
  }
}

</mosaic_0001>

<llo_original>
// kernel: tpu_custom_call.1
$region0: #{tpu_custom_call.1}
  #allocation0 [shape = 'u32[]', space=smem, size = 0x4, offset = 0x4, fixed_abs, tag = 'smem constant byte address 0x4 - core index']
  #allocation1 [shape = 'u32[144,128]{1,0:T(1,128)}', space=vmem, size = 0x12000, scoped, tag = 'internal scratch']
  #allocation2 [shape = 'f32[32,128]{1,0:T(8,128)}', space=vmem, size = 0x4000, scoped, tag = 'scratch operand']
  %s0 = inlined_call_operand.hbm [shape: f32[32,128], index: 0, kind: input, shape index: {}]
  %s1 = inlined_call_operand.hbm [shape: f32[32,32], index: 1, kind: input, shape index: {}]
  %s2 = inlined_call_operand.hbm [shape: f32[1,128], index: 2, kind: input, shape index: {}]
  %s3 = inlined_call_operand.hbm [shape: f32[1,128], index: 3, kind: input, shape index: {}]
  %s4 = inlined_call_operand.hbm [shape: bf16[2,128,384], index: 4, kind: input, shape index: {}]
  %s5 = inlined_call_operand.vmem [shape: f32[2,1,384], index: 5, kind: input, shape index: {}]
  %s6 = inlined_call_operand.hbm [shape: bf16[2,128,128], index: 6, kind: input, shape index: {}]
  %s7 = inlined_call_operand.vmem [shape: f32[2,1,128], index: 7, kind: input, shape index: {}]
  %s8 = inlined_call_operand.vmem [shape: f32[2,1,128], index: 8, kind: input, shape index: {}]
  %s9 = inlined_call_operand.vmem [shape: f32[2,1,128], index: 9, kind: input, shape index: {}]
  %s10 = inlined_call_operand.hbm [shape: bf16[2,128,256], index: 10, kind: input, shape index: {}]
  %s11 = inlined_call_operand.vmem [shape: f32[2,1,256], index: 11, kind: input, shape index: {}]
  %s12 = inlined_call_operand.hbm [shape: bf16[2,256,128], index: 12, kind: input, shape index: {}]
  %s13 = inlined_call_operand.vmem [shape: f32[2,1,128], index: 13, kind: input, shape index: {}]
  %s14 = inlined_call_operand.vmem [shape: f32[2,1,128], index: 14, kind: input, shape index: {}]
  %s15 = inlined_call_operand.vmem [shape: f32[2,1,128], index: 15, kind: input, shape index: {}]
  %s16 = inlined_call_operand.hbm [shape: bf16[128,128], index: 16, kind: input, shape index: {}]
  %s17 = inlined_call_operand.vmem [shape: f32[1,128], index: 17, kind: input, shape index: {}]
  %s18 = inlined_call_operand.hbm [shape: bf16[128,128], index: 18, kind: input, shape index: {}]
  %s19 = inlined_call_operand.vmem [shape: f32[1,128], index: 19, kind: input, shape index: {}]
  %s20 = inlined_call_operand.hbm [shape: f32[2,128], index: 20, kind: output, shape index: {}]
  %s21 = sld [smem:[#allocation0]]
  $region161: #{tpu_custom_call.1} parent=0
    _
  %s23 = ssub.s32 1, %s21
  %s24 = scalar_select 0, %s23, %s21
  $region1: #{tpu_custom_call.1} parent=0
    #allocation3 [shape = 'u8[16384]{0}', space=vmem, size = 0x4000, scoped, tag = 'input window, operand 0, single buffered']
    #allocation4 [shape = 's32[2]{0}', space=sflag, size = 0x8, scoped, tag = 'scoped memory for tpu_custom_call.1']
    #allocation5 [shape = 's32[2]{0}', space=sflag, size = 0x8, scoped, tag = 'scoped memory for tpu_custom_call.1']
    #allocation6 [shape = 'u8[16384]{0}', space=vmem, size = 0x4000, scoped, tag = 'input window, operand 1, single buffered']
    #allocation7 [shape = 's32[1]{0}', space=sflag, size = 0x4, scoped, tag = 'scoped memory for tpu_custom_call.1']
    #allocation8 [shape = 'u8[512]{0}', space=vmem, size = 0x400, scoped, tag = 'input window, operand 2, single buffered']
    #allocation9 [shape = 'u8[512]{0}', space=vmem, size = 0x400, scoped, tag = 'input window, operand 3, single buffered']
    #allocation10 [shape = 's32[1]{0}', space=sflag, size = 0x4, scoped, tag = 'scoped memory for tpu_custom_call.1']
    #allocation11 [shape = 'u8[196608]{0}', space=vmem, size = 0x30000, scoped, tag = 'input window, operand 4']
    #allocation12 [shape = 'u8[65536]{0}', space=vmem, size = 0x10000, scoped, tag = 'input window, operand 6']
    #allocation13 [shape = 'u8[131072]{0}', space=vmem, size = 0x20000, scoped, tag = 'input window, operand 10']
    #allocation14 [shape = 'u8[131072]{0}', space=vmem, size = 0x20000, scoped, tag = 'input window, operand 12']
    #allocation15 [shape = 'u8[32768]{0}', space=vmem, size = 0x8000, scoped, tag = 'input window, operand 16, single buffered']
    #allocation16 [shape = 'u8[32768]{0}', space=vmem, size = 0x8000, scoped, tag = 'input window, operand 18, single buffered']
    #allocation17 [shape = 'u8[1024]{0}', space=vmem, size = 0x400, scoped, tag = 'output window, operand 0, single buffered']
    %25 = vsyncpa [#allocation4], 0
    %26 = vsyncpa [#allocation7], 0
    %27 = vsyncpa [#allocation10], 0
    %28 = vsyncpa [#allocation5], 0
    loop: start=0, step=1, limit=4
    $region2: #{tpu_custom_call.1} parent=1 // loop_pre_header
      _
    $region3: #{tpu_custom_call.1} parent=1 // loop_header
      %s30 = sphi 0, %s34
      %p31 = scmp.ge.s32.totalorder %s30, 4
      %s38 = sphi 0, %s38
      %s40 = sphi 0, %s38
      %s41 = sphi 0, %s40
      %s55 = sphi 0, %s41
      %s59 = sphi 0, %s59
      %s61 = sphi 0, %s59
      %s62 = sphi 0, %s61
      %s76 = sphi 0, %s62
      %s80 = sphi 0, %s80
      %s82 = sphi 0, %s80
      %s83 = sphi 0, %s82
      %s97 = sphi 0, %s83
      %s101 = sphi 0, %s101
      %s103 = sphi 0, %s101
      %s104 = sphi 0, %s103
      %s118 = sphi 0, %s104
      %s124 = sphi 0, %s126
      %s127 = sphi 0, %s124
      %s128 = sphi 0, %s127
      %s144 = sphi 0, %s128
      %s150 = sphi 0, %s152
      %s153 = sphi 0, %s150
      %s154 = sphi 0, %s153
      %s170 = sphi 0, %s154
      %s176 = sphi 0, %s178
      %s179 = sphi 0, %s176
      %s180 = sphi 0, %s179
      %s196 = sphi 0, %s180
      %s202 = sphi 0, %s204
      %s205 = sphi 0, %s202
      %s206 = sphi 0, %s205
      %s222 = sphi 0, %s206
      %s228 = sphi 0, %s230
      %s231 = sphi 0, %s228
      %s232 = sphi 0, %s231
      %s248 = sphi 0, %s232
      %s254 = sphi 0, %s256
      %s257 = sphi 0, %s254
      %s258 = sphi 0, %s257
      %s274 = sphi 0, %s258
      %s280 = sphi 0, %s282
      %s283 = sphi 0, %s280
      %s284 = sphi 0, %s283
      %s300 = sphi 0, %s284
      %s306 = sphi 0, %s308
      %s309 = sphi 0, %s306
      %s310 = sphi 0, %s309
      %s326 = sphi 0, %s310
      %s332 = sphi 0, %s334
      %s335 = sphi 0, %s332
      %s336 = sphi 0, %s335
      %s352 = sphi 0, %s336
      %s358 = sphi 0, %s360
      %s361 = sphi 0, %s358
      %s362 = sphi 0, %s361
      %s378 = sphi 0, %s362
      %s384 = sphi 0, %s386
      %s387 = sphi 0, %s384
      %s388 = sphi 0, %s387
      %s404 = sphi 0, %s388
      %s410 = sphi 0, %s412
      %s413 = sphi 0, %s410
      %s414 = sphi 0, %s413
      %s430 = sphi 0, %s414
      %s434 = sphi 0, %s434
      %s436 = sphi 0, %s434
      %s437 = sphi 0, %s436
      %s451 = sphi 0, %s437
      %s455 = sphi 0, %s455
      %s457 = sphi 0, %s455
      %s458 = sphi 0, %s457
      %s472 = sphi 0, %s458
      %s476 = sphi 0, %s476
      %s478 = sphi 0, %s476
      %s479 = sphi 0, %s478
      %s493 = sphi 0, %s479
      %s497 = sphi 0, %s497
      %s499 = sphi 0, %s497
      %s500 = sphi 0, %s499
      %s514 = sphi 0, %s500
      %s518 = sphi 0, %s518
      %s520 = sphi 0, %s518
      %s521 = sphi 0, %s520
      %s535 = sphi 0, %s521
    $region4: #{tpu_custom_call.1} parent=1 // loop_header_branch
      %33 = sbr.rel (%p31) target = $region8
    $region5: #{tpu_custom_call.1} parent=1 // loop_body
      %s35 = ssub.s32 %s30, 1
      %s36 = ssub.s32 %s30, 2
      %s37 = sadd.s32 %s30, 1
      %s39 = sadd.s32 %s38, 1
      %p42 = scmp.eq.s32.totalorder %s30, 1
      %p43 = scmp.ne.s32.totalorder %s38, %s40
      %p44 = scmp.eq.s32.totalorder %s30, 0
      %p45 = por %p43, %p44
      %p46 = scmp.ne.s32.totalorder %s38, %s40
      %p47 = scmp.eq.s32.totalorder %s35, 1
      %p48 = por %p46, %p47
      %p49 = scmp.ne.s32.totalorder %s40, %s41
      %p50 = scmp.eq.s32.totalorder %s35, 0
      %p51 = por %p49, %p50
      %p52 = scmp.ne.s32.totalorder %s40, %s41
      %p53 = scmp.eq.s32.totalorder %s36, 1
      %p54 = por %p52, %p53
      %p56 = scmp.ne.s32.totalorder %s41, %s55
      %p57 = scmp.eq.s32.totalorder %s36, 0
      %p58 = por %p56, %p57
      %s60 = sadd.s32 %s59, 1
      %p63 = scmp.eq.s32.totalorder %s30, 1
      %p64 = scmp.ne.s32.totalorder %s59, %s61
      %p65 = scmp.eq.s32.totalorder %s30, 0
      %p66 = por %p64, %p65
      %p67 = scmp.ne.s32.totalorder %s59, %s61
      %p68 = scmp.eq.s32.totalorder %s35, 1
      %p69 = por %p67, %p68
      %p70 = scmp.ne.s32.totalorder %s61, %s62
      %p71 = scmp.eq.s32.totalorder %s35, 0
      %p72 = por %p70, %p71
      %p73 = scmp.ne.s32.totalorder %s61, %s62
      %p74 = scmp.eq.s32.totalorder %s36, 1
      %p75 = por %p73, %p74
      %p77 = scmp.ne.s32.totalorder %s62, %s76
      %p78 = scmp.eq.s32.totalorder %s36, 0
      %p79 = por %p77, %p78
      %s81 = sadd.s32 %s80, 1
      %p84 = scmp.eq.s32.totalorder %s30, 1
      %p85 = scmp.ne.s32.totalorder %s80, %s82
      %p86 = scmp.eq.s32.totalorder %s30, 0
      %p87 = por %p85, %p86
      %p88 = scmp.ne.s32.totalorder %s80, %s82
      %p89 = scmp.eq.s32.totalorder %s35, 1
      %p90 = por %p88, %p89
      %p91 = scmp.ne.s32.totalorder %s82, %s83
      %p92 = scmp.eq.s32.totalorder %s35, 0
      %p93 = por %p91, %p92
      %p94 = scmp.ne.s32.totalorder %s82, %s83
      %p95 = scmp.eq.s32.totalorder %s36, 1
      %p96 = por %p94, %p95
      %p98 = scmp.ne.s32.totalorder %s83, %s97
      %p99 = scmp.eq.s32.totalorder %s36, 0
      %p100 = por %p98, %p99
      %s102 = sadd.s32 %s101, 1
      %p105 = scmp.eq.s32.totalorder %s30, 1
      %p106 = scmp.ne.s32.totalorder %s101, %s103
      %p107 = scmp.eq.s32.totalorder %s30, 0
      %p108 = por %p106, %p107
      %p109 = scmp.ne.s32.totalorder %s101, %s103
      %p110 = scmp.eq.s32.totalorder %s35, 1
      %p111 = por %p109, %p110
      %p112 = scmp.ne.s32.totalorder %s103, %s104
      %p113 = scmp.eq.s32.totalorder %s35, 0
      %p114 = por %p112, %p113
      %p115 = scmp.ne.s32.totalorder %s103, %s104
      %p116 = scmp.eq.s32.totalorder %s36, 1
      %p117 = por %p115, %p116
      %p119 = scmp.ne.s32.totalorder %s104, %s118
      %p120 = scmp.eq.s32.totalorder %s36, 0
      %p121 = por %p119, %p120
      %s122 = ssub.s32 %s30, %s37
      %p123 = scmp.eq.s32.totalorder %s122, 0
      %s125 = sadd.s32 %s124, 1
      %s126 = scalar_select %p123, %s124, %s125
      %p129 = pneg %p123
      %p130 = scmp.eq.s32.totalorder %s30, 1
      %p131 = por %p129, %p130
      %p132 = scmp.ne.s32.totalorder %s124, %s127
      %p133 = scmp.eq.s32.totalorder %s30, 0
      %p134 = por %p132, %p133
      %p135 = scmp.ne.s32.totalorder %s124, %s127
      %p136 = scmp.eq.s32.totalorder %s35, 1
      %p137 = por %p135, %p136
      %p138 = scmp.ne.s32.totalorder %s127, %s128
      %p139 = scmp.eq.s32.totalorder %s35, 0
      %p140 = por %p138, %p139
      %p141 = scmp.ne.s32.totalorder %s127, %s128
      %p142 = scmp.eq.s32.totalorder %s36, 1
      %p143 = por %p141, %p142
      %p145 = scmp.ne.s32.totalorder %s128, %s144
      %p146 = scmp.eq.s32.totalorder %s36, 0
      %p147 = por %p145, %p146
      %s148 = ssub.s32 %s30, %s37
      %p149 = scmp.eq.s32.totalorder %s148, 0
      %s151 = sadd.s32 %s150, 1
      %s152 = scalar_select %p149, %s150, %s151
      %p155 = pneg %p149
      %p156 = scmp.eq.s32.totalorder %s30, 1
      %p157 = por %p155, %p156
      %p158 = scmp.ne.s32.totalorder %s150, %s153
      %p159 = scmp.eq.s32.totalorder %s30, 0
      %p160 = por %p158, %p159
      %p161 = scmp.ne.s32.totalorder %s150, %s153
      %p162 = scmp.eq.s32.totalorder %s35, 1
      %p163 = por %p161, %p162
      %p164 = scmp.ne.s32.totalorder %s153, %s154
      %p165 = scmp.eq.s32.totalorder %s35, 0
      %p166 = por %p164, %p165
      %p167 = scmp.ne.s32.totalorder %s153, %s154
      %p168 = scmp.eq.s32.totalorder %s36, 1
      %p169 = por %p167, %p168
      %p171 = scmp.ne.s32.totalorder %s154, %s170
      %p172 = scmp.eq.s32.totalorder %s36, 0
      %p173 = por %p171, %p172
      %s174 = ssub.s32 %s30, %s37
      %p175 = scmp.eq.s32.totalorder %s174, 0
      %s177 = sadd.s32 %s176, 1
      %s178 = scalar_select %p175, %s176, %s177
      %p181 = pneg %p175
      %p182 = scmp.eq.s32.totalorder %s30, 1
      %p183 = por %p181, %p182
      %p184 = scmp.ne.s32.totalorder %s176, %s179
      %p185 = scmp.eq.s32.totalorder %s30, 0
      %p186 = por %p184, %p185
      %p187 = scmp.ne.s32.totalorder %s176, %s179
      %p188 = scmp.eq.s32.totalorder %s35, 1
      %p189 = por %p187, %p188
      %p190 = scmp.ne.s32.totalorder %s179, %s180
      %p191 = scmp.eq.s32.totalorder %s35, 0
      %p192 = por %p190, %p191
      %p193 = scmp.ne.s32.totalorder %s179, %s180
      %p194 = scmp.eq.s32.totalorder %s36, 1
      %p195 = por %p193, %p194
      %p197 = scmp.ne.s32.totalorder %s180, %s196
      %p198 = scmp.eq.s32.totalorder %s36, 0
      %p199 = por %p197, %p198
      %s200 = ssub.s32 %s30, %s37
      %p201 = scmp.eq.s32.totalorder %s200, 0
      %s203 = sadd.s32 %s202, 1
      %s204 = scalar_select %p201, %s202, %s203
      %p207 = pneg %p201
      %p208 = scmp.eq.s32.totalorder %s30, 1
      %p209 = por %p207, %p208
      %p210 = scmp.ne.s32.totalorder %s202, %s205
      %p211 = scmp.eq.s32.totalorder %s30, 0
      %p212 = por %p210, %p211
      %p213 = scmp.ne.s32.totalorder %s202, %s205
      %p214 = scmp.eq.s32.totalorder %s35, 1
      %p215 = por %p213, %p214
      %p216 = scmp.ne.s32.totalorder %s205, %s206
      %p217 = scmp.eq.s32.totalorder %s35, 0
      %p218 = por %p216, %p217
      %p219 = scmp.ne.s32.totalorder %s205, %s206
      %p220 = scmp.eq.s32.totalorder %s36, 1
      %p221 = por %p219, %p220
      %p223 = scmp.ne.s32.totalorder %s206, %s222
      %p224 = scmp.eq.s32.totalorder %s36, 0
      %p225 = por %p223, %p224
      %s226 = ssub.s32 %s30, %s37
      %p227 = scmp.eq.s32.totalorder %s226, 0
      %s229 = sadd.s32 %s228, 1
      %s230 = scalar_select %p227, %s228, %s229
      %p233 = pneg %p227
      %p234 = scmp.eq.s32.totalorder %s30, 1
      %p235 = por %p233, %p234
      %p236 = scmp.ne.s32.totalorder %s228, %s231
      %p237 = scmp.eq.s32.totalorder %s30, 0
      %p238 = por %p236, %p237
      %p239 = scmp.ne.s32.totalorder %s228, %s231
      %p240 = scmp.eq.s32.totalorder %s35, 1
      %p241 = por %p239, %p240
      %p242 = scmp.ne.s32.totalorder %s231, %s232
      %p243 = scmp.eq.s32.totalorder %s35, 0
      %p244 = por %p242, %p243
      %p245 = scmp.ne.s32.totalorder %s231, %s232
      %p246 = scmp.eq.s32.totalorder %s36, 1
      %p247 = por %p245, %p246
      %p249 = scmp.ne.s32.totalorder %s232, %s248
      %p250 = scmp.eq.s32.totalorder %s36, 0
      %p251 = por %p249, %p250
      %s252 = ssub.s32 %s30, %s37
      %p253 = scmp.eq.s32.totalorder %s252, 0
      %s255 = sadd.s32 %s254, 1
      %s256 = scalar_select %p253, %s254, %s255
      %p259 = pneg %p253
      %p260 = scmp.eq.s32.totalorder %s30, 1
      %p261 = por %p259, %p260
      %p262 = scmp.ne.s32.totalorder %s254, %s257
      %p263 = scmp.eq.s32.totalorder %s30, 0
      %p264 = por %p262, %p263
      %p265 = scmp.ne.s32.totalorder %s254, %s257
      %p266 = scmp.eq.s32.totalorder %s35, 1
      %p267 = por %p265, %p266
      %p268 = scmp.ne.s32.totalorder %s257, %s258
      %p269 = scmp.eq.s32.totalorder %s35, 0
      %p270 = por %p268, %p269
      %p271 = scmp.ne.s32.totalorder %s257, %s258
      %p272 = scmp.eq.s32.totalorder %s36, 1
      %p273 = por %p271, %p272
      %p275 = scmp.ne.s32.totalorder %s258, %s274
      %p276 = scmp.eq.s32.totalorder %s36, 0
      %p277 = por %p275, %p276
      %s278 = ssub.s32 %s30, %s37
      %p279 = scmp.eq.s32.totalorder %s278, 0
      %s281 = sadd.s32 %s280, 1
      %s282 = scalar_select %p279, %s280, %s281
      %p285 = pneg %p279
      %p286 = scmp.eq.s32.totalorder %s30, 1
      %p287 = por %p285, %p286
      %p288 = scmp.ne.s32.totalorder %s280, %s283
      %p289 = scmp.eq.s32.totalorder %s30, 0
      %p290 = por %p288, %p289
      %p291 = scmp.ne.s32.totalorder %s280, %s283
      %p292 = scmp.eq.s32.totalorder %s35, 1
      %p293 = por %p291, %p292
      %p294 = scmp.ne.s32.totalorder %s283, %s284
      %p295 = scmp.eq.s32.totalorder %s35, 0
      %p296 = por %p294, %p295
      %p297 = scmp.ne.s32.totalorder %s283, %s284
      %p298 = scmp.eq.s32.totalorder %s36, 1
      %p299 = por %p297, %p298
      %p301 = scmp.ne.s32.totalorder %s284, %s300
      %p302 = scmp.eq.s32.totalorder %s36, 0
      %p303 = por %p301, %p302
      %s304 = ssub.s32 %s30, %s37
      %p305 = scmp.eq.s32.totalorder %s304, 0
      %s307 = sadd.s32 %s306, 1
      %s308 = scalar_select %p305, %s306, %s307
      %p311 = pneg %p305
      %p312 = scmp.eq.s32.totalorder %s30, 1
      %p313 = por %p311, %p312
      %p314 = scmp.ne.s32.totalorder %s306, %s309
      %p315 = scmp.eq.s32.totalorder %s30, 0
      %p316 = por %p314, %p315
      %p317 = scmp.ne.s32.totalorder %s306, %s309
      %p318 = scmp.eq.s32.totalorder %s35, 1
      %p319 = por %p317, %p318
      %p320 = scmp.ne.s32.totalorder %s309, %s310
      %p321 = scmp.eq.s32.totalorder %s35, 0
      %p322 = por %p320, %p321
      %p323 = scmp.ne.s32.totalorder %s309, %s310
      %p324 = scmp.eq.s32.totalorder %s36, 1
      %p325 = por %p323, %p324
      %p327 = scmp.ne.s32.totalorder %s310, %s326
      %p328 = scmp.eq.s32.totalorder %s36, 0
      %p329 = por %p327, %p328
      %s330 = ssub.s32 %s30, %s37
      %p331 = scmp.eq.s32.totalorder %s330, 0
      %s333 = sadd.s32 %s332, 1
      %s334 = scalar_select %p331, %s332, %s333
      %p337 = pneg %p331
      %p338 = scmp.eq.s32.totalorder %s30, 1
      %p339 = por %p337, %p338
      %p340 = scmp.ne.s32.totalorder %s332, %s335
      %p341 = scmp.eq.s32.totalorder %s30, 0
      %p342 = por %p340, %p341
      %p343 = scmp.ne.s32.totalorder %s332, %s335
      %p344 = scmp.eq.s32.totalorder %s35, 1
      %p345 = por %p343, %p344
      %p346 = scmp.ne.s32.totalorder %s335, %s336
      %p347 = scmp.eq.s32.totalorder %s35, 0
      %p348 = por %p346, %p347
      %p349 = scmp.ne.s32.totalorder %s335, %s336
      %p350 = scmp.eq.s32.totalorder %s36, 1
      %p351 = por %p349, %p350
      %p353 = scmp.ne.s32.totalorder %s336, %s352
      %p354 = scmp.eq.s32.totalorder %s36, 0
      %p355 = por %p353, %p354
      %s356 = ssub.s32 %s30, %s37
      %p357 = scmp.eq.s32.totalorder %s356, 0
      %s359 = sadd.s32 %s358, 1
      %s360 = scalar_select %p357, %s358, %s359
      %p363 = pneg %p357
      %p364 = scmp.eq.s32.totalorder %s30, 1
      %p365 = por %p363, %p364
      %p366 = scmp.ne.s32.totalorder %s358, %s361
      %p367 = scmp.eq.s32.totalorder %s30, 0
      %p368 = por %p366, %p367
      %p369 = scmp.ne.s32.totalorder %s358, %s361
      %p370 = scmp.eq.s32.totalorder %s35, 1
      %p371 = por %p369, %p370
      %p372 = scmp.ne.s32.totalorder %s361, %s362
      %p373 = scmp.eq.s32.totalorder %s35, 0
      %p374 = por %p372, %p373
      %p375 = scmp.ne.s32.totalorder %s361, %s362
      %p376 = scmp.eq.s32.totalorder %s36, 1
      %p377 = por %p375, %p376
      %p379 = scmp.ne.s32.totalorder %s362, %s378
      %p380 = scmp.eq.s32.totalorder %s36, 0
      %p381 = por %p379, %p380
      %s382 = ssub.s32 %s30, %s37
      %p383 = scmp.eq.s32.totalorder %s382, 0
      %s385 = sadd.s32 %s384, 1
      %s386 = scalar_select %p383, %s384, %s385
      %p389 = pneg %p383
      %p390 = scmp.eq.s32.totalorder %s30, 1
      %p391 = por %p389, %p390
      %p392 = scmp.ne.s32.totalorder %s384, %s387
      %p393 = scmp.eq.s32.totalorder %s30, 0
      %p394 = por %p392, %p393
      %p395 = scmp.ne.s32.totalorder %s384, %s387
      %p396 = scmp.eq.s32.totalorder %s35, 1
      %p397 = por %p395, %p396
      %p398 = scmp.ne.s32.totalorder %s387, %s388
      %p399 = scmp.eq.s32.totalorder %s35, 0
      %p400 = por %p398, %p399
      %p401 = scmp.ne.s32.totalorder %s387, %s388
      %p402 = scmp.eq.s32.totalorder %s36, 1
      %p403 = por %p401, %p402
      %p405 = scmp.ne.s32.totalorder %s388, %s404
      %p406 = scmp.eq.s32.totalorder %s36, 0
      %p407 = por %p405, %p406
      %s408 = ssub.s32 %s30, %s37
      %p409 = scmp.eq.s32.totalorder %s408, 0
      %s411 = sadd.s32 %s410, 1
      %s412 = scalar_select %p409, %s410, %s411
      %p415 = pneg %p409
      %p416 = scmp.eq.s32.totalorder %s30, 1
      %p417 = por %p415, %p416
      %p418 = scmp.ne.s32.totalorder %s410, %s413
      %p419 = scmp.eq.s32.totalorder %s30, 0
      %p420 = por %p418, %p419
      %p421 = scmp.ne.s32.totalorder %s410, %s413
      %p422 = scmp.eq.s32.totalorder %s35, 1
      %p423 = por %p421, %p422
      %p424 = scmp.ne.s32.totalorder %s413, %s414
      %p425 = scmp.eq.s32.totalorder %s35, 0
      %p426 = por %p424, %p425
      %p427 = scmp.ne.s32.totalorder %s413, %s414
      %p428 = scmp.eq.s32.totalorder %s36, 1
      %p429 = por %p427, %p428
      %p431 = scmp.ne.s32.totalorder %s414, %s430
      %p432 = scmp.eq.s32.totalorder %s36, 0
      %p433 = por %p431, %p432
      %s435 = sadd.s32 %s434, 1
      %p438 = scmp.eq.s32.totalorder %s30, 1
      %p439 = scmp.ne.s32.totalorder %s434, %s436
      %p440 = scmp.eq.s32.totalorder %s30, 0
      %p441 = por %p439, %p440
      %p442 = scmp.ne.s32.totalorder %s434, %s436
      %p443 = scmp.eq.s32.totalorder %s35, 1
      %p444 = por %p442, %p443
      %p445 = scmp.ne.s32.totalorder %s436, %s437
      %p446 = scmp.eq.s32.totalorder %s35, 0
      %p447 = por %p445, %p446
      %p448 = scmp.ne.s32.totalorder %s436, %s437
      %p449 = scmp.eq.s32.totalorder %s36, 1
      %p450 = por %p448, %p449
      %p452 = scmp.ne.s32.totalorder %s437, %s451
      %p453 = scmp.eq.s32.totalorder %s36, 0
      %p454 = por %p452, %p453
      %s456 = sadd.s32 %s455, 1
      %p459 = scmp.eq.s32.totalorder %s30, 1
      %p460 = scmp.ne.s32.totalorder %s455, %s457
      %p461 = scmp.eq.s32.totalorder %s30, 0
      %p462 = por %p460, %p461
      %p463 = scmp.ne.s32.totalorder %s455, %s457
      %p464 = scmp.eq.s32.totalorder %s35, 1
      %p465 = por %p463, %p464
      %p466 = scmp.ne.s32.totalorder %s457, %s458
      %p467 = scmp.eq.s32.totalorder %s35, 0
      %p468 = por %p466, %p467
      %p469 = scmp.ne.s32.totalorder %s457, %s458
      %p470 = scmp.eq.s32.totalorder %s36, 1
      %p471 = por %p469, %p470
      %p473 = scmp.ne.s32.totalorder %s458, %s472
      %p474 = scmp.eq.s32.totalorder %s36, 0
      %p475 = por %p473, %p474
      %s477 = sadd.s32 %s476, 1
      %p480 = scmp.eq.s32.totalorder %s30, 1
      %p481 = scmp.ne.s32.totalorder %s476, %s478
      %p482 = scmp.eq.s32.totalorder %s30, 0
      %p483 = por %p481, %p482
      %p484 = scmp.ne.s32.totalorder %s476, %s478
      %p485 = scmp.eq.s32.totalorder %s35, 1
      %p486 = por %p484, %p485
      %p487 = scmp.ne.s32.totalorder %s478, %s479
      %p488 = scmp.eq.s32.totalorder %s35, 0
      %p489 = por %p487, %p488
      %p490 = scmp.ne.s32.totalorder %s478, %s479
      %p491 = scmp.eq.s32.totalorder %s36, 1
      %p492 = por %p490, %p491
      %p494 = scmp.ne.s32.totalorder %s479, %s493
      %p495 = scmp.eq.s32.totalorder %s36, 0
      %p496 = por %p494, %p495
      %s498 = sadd.s32 %s497, 1
      %p501 = scmp.eq.s32.totalorder %s30, 1
      %p502 = scmp.ne.s32.totalorder %s497, %s499
      %p503 = scmp.eq.s32.totalorder %s30, 0
      %p504 = por %p502, %p503
      %p505 = scmp.ne.s32.totalorder %s497, %s499
      %p506 = scmp.eq.s32.totalorder %s35, 1
      %p507 = por %p505, %p506
      %p508 = scmp.ne.s32.totalorder %s499, %s500
      %p509 = scmp.eq.s32.totalorder %s35, 0
      %p510 = por %p508, %p509
      %p511 = scmp.ne.s32.totalorder %s499, %s500
      %p512 = scmp.eq.s32.totalorder %s36, 1
      %p513 = por %p511, %p512
      %p515 = scmp.ne.s32.totalorder %s500, %s514
      %p516 = scmp.eq.s32.totalorder %s36, 0
      %p517 = por %p515, %p516
      %s519 = sadd.s32 %s518, 1
      %p522 = scmp.eq.s32.totalorder %s30, 1
      %p523 = scmp.ne.s32.totalorder %s518, %s520
      %p524 = scmp.eq.s32.totalorder %s30, 0
      %p525 = por %p523, %p524
      %p526 = scmp.ne.s32.totalorder %s518, %s520
      %p527 = scmp.eq.s32.totalorder %s35, 1
      %p528 = por %p526, %p527
      %p529 = scmp.ne.s32.totalorder %s520, %s521
      %p530 = scmp.eq.s32.totalorder %s35, 0
      %p531 = por %p529, %p530
      %p532 = scmp.ne.s32.totalorder %s520, %s521
      %p533 = scmp.eq.s32.totalorder %s36, 1
      %p534 = por %p532, %p533
      %p536 = scmp.ne.s32.totalorder %s521, %s535
      %p537 = scmp.eq.s32.totalorder %s36, 0
      %p538 = por %p536, %p537
      %p539 = scmp.le.s32.totalorder 1, %s30
      %p540 = scmp.lt.s32.totalorder %s30, 3
      %p541 = pnand %p539, %p540
      %p542 = pneg %p541
      // Predicated region
      $region9: #{tpu_custom_call.1} parent=5 // pred_check
        _
      $region10: #{tpu_custom_call.1} parent=5 // pred_check_branch
        %544 = sbr.rel (%p541) target = $region12
      $region11: #{tpu_custom_call.1} parent=5 // pred_region
        %s545 = ssub.s32 %s30, 1
        // Predicated region
        $region13: #{tpu_custom_call.1} parent=11 // pred_check
          %p546 = pneg %p51
        $region14: #{tpu_custom_call.1} parent=11 // pred_check_branch
          %548 = sbr.rel (%p546) target = $region16
        $region15: #{tpu_custom_call.1} parent=11 // pred_region
          %s550 = ssub.s32 512, 512
          %551 = vsyncadd [#allocation4], %s550
          %s552 = sshll.u32 [#allocation3], 4
          %s553 = int_to_ptr.vmem [resolvable:$true] %s552
          %558 = dma.hbm_to_vmem [thread:$0]  %s0, 512, %s553, [#allocation4], 128, 128, 8
        $region16: #{tpu_custom_call.1} parent=11 // pred_fallthru
          _
        // Predicated region
        $region17: #{tpu_custom_call.1} parent=11 // pred_check
          %p559 = pneg %p72
        $region18: #{tpu_custom_call.1} parent=11 // pred_check_branch
          %561 = sbr.rel (%p559) target = $region20
        $region19: #{tpu_custom_call.1} parent=11 // pred_region
          %s563 = ssub.s32 512, 512
          %564 = vsyncadd [#allocation7], %s563
          %s565 = sshll.u32 [#allocation6], 4
          %s566 = int_to_ptr.vmem [resolvable:$true] %s565
          %571 = dma.hbm_to_vmem [thread:$0]  %s1, 512, %s566, [#allocation7], 128, 128, 8
        $region20: #{tpu_custom_call.1} parent=11 // pred_fallthru
          _
        // Predicated region
        $region21: #{tpu_custom_call.1} parent=11 // pred_check
          %p572 = pneg %p93
        $region22: #{tpu_custom_call.1} parent=11 // pred_check_branch
          %574 = sbr.rel (%p572) target = $region24
        $region23: #{tpu_custom_call.1} parent=11 // pred_region
          %s576 = ssub.s32 16, 16
          %577 = vsyncadd [#allocation7], %s576
          %s579 = sshll.u32 [#allocation8], 4
          %s580 = int_to_ptr.vmem [resolvable:$true] %s579
          %582 = dma.hbm_to_vmem [thread:$0]  %s2, 16, %s580, [#allocation7]
        $region24: #{tpu_custom_call.1} parent=11 // pred_fallthru
          _
        // Predicated region
        $region25: #{tpu_custom_call.1} parent=11 // pred_check
          %p583 = pneg %p114
        $region26: #{tpu_custom_call.1} parent=11 // pred_check_branch
          %585 = sbr.rel (%p583) target = $region28
        $region27: #{tpu_custom_call.1} parent=11 // pred_region
          %s587 = ssub.s32 16, 16
          %588 = vsyncadd [#allocation10], %s587
          %s590 = sshll.u32 [#allocation9], 4
          %s591 = int_to_ptr.vmem [resolvable:$true] %s590
          %593 = dma.hbm_to_vmem [thread:$0]  %s3, 16, %s591, [#allocation10]
        $region28: #{tpu_custom_call.1} parent=11 // pred_fallthru
          _
        // Predicated region
        $region29: #{tpu_custom_call.1} parent=11 // pred_check
          %p594 = pneg %p447
        $region30: #{tpu_custom_call.1} parent=11 // pred_check_branch
          %596 = sbr.rel (%p594) target = $region32
        $region31: #{tpu_custom_call.1} parent=11 // pred_region
          %s598 = ssub.s32 1024, 1024
          %599 = vsyncadd [#allocation7], %s598
          %s600 = sshll.u32 [#allocation15], 4
          %s601 = int_to_ptr.vmem [resolvable:$true] %s600
          %606 = dma.hbm_to_vmem [thread:$0]  %s16, 1024, %s601, [#allocation7], 64, 64, 4
        $region32: #{tpu_custom_call.1} parent=11 // pred_fallthru
          _
        // Predicated region
        $region33: #{tpu_custom_call.1} parent=11 // pred_check
          %p607 = pneg %p468
        $region34: #{tpu_custom_call.1} parent=11 // pred_check_branch
          %609 = sbr.rel (%p607) target = $region36
        $region35: #{tpu_custom_call.1} parent=11 // pred_region
          _
        $region36: #{tpu_custom_call.1} parent=11 // pred_fallthru
          _
        // Predicated region
        $region37: #{tpu_custom_call.1} parent=11 // pred_check
          %p610 = pneg %p489
        $region38: #{tpu_custom_call.1} parent=11 // pred_check_branch
          %612 = sbr.rel (%p610) target = $region40
        $region39: #{tpu_custom_call.1} parent=11 // pred_region
          %s614 = ssub.s32 1024, 1024
          %615 = vsyncadd [#allocation10], %s614
          %s616 = sshll.u32 [#allocation16], 4
          %s617 = int_to_ptr.vmem [resolvable:$true] %s616
          %622 = dma.hbm_to_vmem [thread:$0]  %s18, 1024, %s617, [#allocation10], 64, 64, 4
        $region40: #{tpu_custom_call.1} parent=11 // pred_fallthru
          _
        // Predicated region
        $region41: #{tpu_custom_call.1} parent=11 // pred_check
          %p623 = pneg %p510
        $region42: #{tpu_custom_call.1} parent=11 // pred_check_branch
          %625 = sbr.rel (%p623) target = $region44
        $region43: #{tpu_custom_call.1} parent=11 // pred_region
          _
        $region44: #{tpu_custom_call.1} parent=11 // pred_fallthru
          _
      $region12: #{tpu_custom_call.1} parent=5 // pred_fallthru
        _
      %p626 = scmp.lt.s32.totalorder %s30, 2
      // Predicated region
      $region45: #{tpu_custom_call.1} parent=5 // pred_check
        %p627 = pneg %p626
      $region46: #{tpu_custom_call.1} parent=5 // pred_check_branch
        %629 = sbr.rel (%p627) target = $region48
      $region47: #{tpu_custom_call.1} parent=5 // pred_region
        // Predicated region
        $region49: #{tpu_custom_call.1} parent=47 // pred_check
          %p630 = pneg %p134
        $region50: #{tpu_custom_call.1} parent=47 // pred_check_branch
          %632 = sbr.rel (%p630) target = $region52
        $region51: #{tpu_custom_call.1} parent=47 // pred_region
          %s633 = sand.u32 %s30, 1
          %s634 = scalar_lea.sflag [#allocation4], %s633
          %s635 = sand.u32 %s124, 1
          %s636 = smul.addr %s635, 192
          %s637 = scalar_lea.vmem [#allocation11], %s636
          %s639 = ssub.s32 3072, 3072
          %640 = vsyncadd %s634, %s639
          %s641 = smul.addr %s30, 48
          %s642 = smul.addr %s641, 64
          %s643 = scalar_lea.hbm %s4, %s642
          %s644 = sshll.u32 %s637, 4
          %s645 = int_to_ptr.vmem [resolvable:$true] %s644
          %650 = dma.hbm_to_vmem [thread:$0]  %s643, 3072, %s645, %s634, 192, 192, 12
        $region52: #{tpu_custom_call.1} parent=47 // pred_fallthru
          _
        // Predicated region
        $region53: #{tpu_custom_call.1} parent=47 // pred_check
          %p651 = pneg %p160
        $region54: #{tpu_custom_call.1} parent=47 // pred_check_branch
          %653 = sbr.rel (%p651) target = $region56
        $region55: #{tpu_custom_call.1} parent=47 // pred_region
          %p654 = scmp.lt.s32.totalorder %s30, 1
          %s655 = scalar_select %p654, %s30, 1
          %s656 = smul.addr %s655, 3
          %s657 = scalar_lea.vmem %s5, %s656
        $region56: #{tpu_custom_call.1} parent=47 // pred_fallthru
          _
        // Predicated region
        $region57: #{tpu_custom_call.1} parent=47 // pred_check
          %p658 = pneg %p186
        $region58: #{tpu_custom_call.1} parent=47 // pred_check_branch
          %660 = sbr.rel (%p658) target = $region60
        $region59: #{tpu_custom_call.1} parent=47 // pred_region
          %s661 = sand.u32 %s30, 1
          %s662 = scalar_lea.sflag [#allocation4], %s661
          %s663 = sand.u32 %s176, 1
          %s664 = smul.addr %s663, 64
          %s665 = scalar_lea.vmem [#allocation12], %s664
          %s667 = ssub.s32 1024, 1024
          %668 = vsyncadd %s662, %s667
          %s669 = smul.addr %s30, 16
          %s670 = smul.addr %s669, 64
          %s671 = scalar_lea.hbm %s6, %s670
          %s672 = sshll.u32 %s665, 4
          %s673 = int_to_ptr.vmem [resolvable:$true] %s672
          %678 = dma.hbm_to_vmem [thread:$0]  %s671, 1024, %s673, %s662, 64, 64, 4
        $region60: #{tpu_custom_call.1} parent=47 // pred_fallthru
          _
        // Predicated region
        $region61: #{tpu_custom_call.1} parent=47 // pred_check
          %p679 = pneg %p212
        $region62: #{tpu_custom_call.1} parent=47 // pred_check_branch
          %681 = sbr.rel (%p679) target = $region64
        $region63: #{tpu_custom_call.1} parent=47 // pred_region
          %p682 = scmp.lt.s32.totalorder %s30, 1
          %s683 = scalar_select %p682, %s30, 1
          %s684 = scalar_lea.vmem %s7, %s683
        $region64: #{tpu_custom_call.1} parent=47 // pred_fallthru
          _
        // Predicated region
        $region65: #{tpu_custom_call.1} parent=47 // pred_check
          %p685 = pneg %p238
        $region66: #{tpu_custom_call.1} parent=47 // pred_check_branch
          %687 = sbr.rel (%p685) target = $region68
        $region67: #{tpu_custom_call.1} parent=47 // pred_region
          %p688 = scmp.lt.s32.totalorder %s30, 1
          %s689 = scalar_select %p688, %s30, 1
          %s690 = scalar_lea.vmem %s8, %s689
        $region68: #{tpu_custom_call.1} parent=47 // pred_fallthru
          _
        // Predicated region
        $region69: #{tpu_custom_call.1} parent=47 // pred_check
          %p691 = pneg %p264
        $region70: #{tpu_custom_call.1} parent=47 // pred_check_branch
          %693 = sbr.rel (%p691) target = $region72
        $region71: #{tpu_custom_call.1} parent=47 // pred_region
          %p694 = scmp.lt.s32.totalorder %s30, 1
          %s695 = scalar_select %p694, %s30, 1
          %s696 = scalar_lea.vmem %s9, %s695
        $region72: #{tpu_custom_call.1} parent=47 // pred_fallthru
          _
        // Predicated region
        $region73: #{tpu_custom_call.1} parent=47 // pred_check
          %p697 = pneg %p290
        $region74: #{tpu_custom_call.1} parent=47 // pred_check_branch
          %699 = sbr.rel (%p697) target = $region76
        $region75: #{tpu_custom_call.1} parent=47 // pred_region
          %s700 = sand.u32 %s30, 1
          %s701 = scalar_lea.sflag [#allocation4], %s700
          %s702 = sand.u32 %s280, 1
          %s703 = smul.addr %s702, 128
          %s704 = scalar_lea.vmem [#allocation13], %s703
          %s706 = ssub.s32 2048, 2048
          %707 = vsyncadd %s701, %s706
          %s708 = smul.addr %s30, 32
          %s709 = smul.addr %s708, 64
          %s710 = scalar_lea.hbm %s10, %s709
          %s711 = sshll.u32 %s704, 4
          %s712 = int_to_ptr.vmem [resolvable:$true] %s711
          %717 = dma.hbm_to_vmem [thread:$0]  %s710, 2048, %s712, %s701, 128, 128, 8
        $region76: #{tpu_custom_call.1} parent=47 // pred_fallthru
          _
        // Predicated region
        $region77: #{tpu_custom_call.1} parent=47 // pred_check
          %p718 = pneg %p316
        $region78: #{tpu_custom_call.1} parent=47 // pred_check_branch
          %720 = sbr.rel (%p718) target = $region80
        $region79: #{tpu_custom_call.1} parent=47 // pred_region
          %p721 = scmp.lt.s32.totalorder %s30, 1
          %s722 = scalar_select %p721, %s30, 1
          %s723 = smul.addr %s722, 2
          %s724 = scalar_lea.vmem %s11, %s723
        $region80: #{tpu_custom_call.1} parent=47 // pred_fallthru
          _
        // Predicated region
        $region81: #{tpu_custom_call.1} parent=47 // pred_check
          %p725 = pneg %p342
        $region82: #{tpu_custom_call.1} parent=47 // pred_check_branch
          %727 = sbr.rel (%p725) target = $region84
        $region83: #{tpu_custom_call.1} parent=47 // pred_region
          %s728 = sand.u32 %s30, 1
          %s729 = scalar_lea.sflag [#allocation4], %s728
          %s730 = sand.u32 %s332, 1
          %s731 = smul.addr %s730, 128
          %s732 = scalar_lea.vmem [#allocation14], %s731
          %s734 = ssub.s32 2048, 2048
          %735 = vsyncadd %s729, %s734
          %s736 = smul.addr %s30, 32
          %s737 = smul.addr %s736, 64
          %s738 = scalar_lea.hbm %s12, %s737
          %s739 = sshll.u32 %s732, 4
          %s740 = int_to_ptr.vmem [resolvable:$true] %s739
          %745 = dma.hbm_to_vmem [thread:$0]  %s738, 2048, %s740, %s729, 64, 64, 4
        $region84: #{tpu_custom_call.1} parent=47 // pred_fallthru
          _
        // Predicated region
        $region85: #{tpu_custom_call.1} parent=47 // pred_check
          %p746 = pneg %p368
        $region86: #{tpu_custom_call.1} parent=47 // pred_check_branch
          %748 = sbr.rel (%p746) target = $region88
        $region87: #{tpu_custom_call.1} parent=47 // pred_region
          %p749 = scmp.lt.s32.totalorder %s30, 1
          %s750 = scalar_select %p749, %s30, 1
          %s751 = scalar_lea.vmem %s13, %s750
        $region88: #{tpu_custom_call.1} parent=47 // pred_fallthru
          _
        // Predicated region
        $region89: #{tpu_custom_call.1} parent=47 // pred_check
          %p752 = pneg %p394
        $region90: #{tpu_custom_call.1} parent=47 // pred_check_branch
          %754 = sbr.rel (%p752) target = $region92
        $region91: #{tpu_custom_call.1} parent=47 // pred_region
          %p755 = scmp.lt.s32.totalorder %s30, 1
          %s756 = scalar_select %p755, %s30, 1
          %s757 = scalar_lea.vmem %s14, %s756
        $region92: #{tpu_custom_call.1} parent=47 // pred_fallthru
          _
        // Predicated region
        $region93: #{tpu_custom_call.1} parent=47 // pred_check
          %p758 = pneg %p420
        $region94: #{tpu_custom_call.1} parent=47 // pred_check_branch
          %760 = sbr.rel (%p758) target = $region96
        $region95: #{tpu_custom_call.1} parent=47 // pred_region
          %p761 = scmp.lt.s32.totalorder %s30, 1
          %s762 = scalar_select %p761, %s30, 1
          %s763 = scalar_lea.vmem %s15, %s762
        $region96: #{tpu_custom_call.1} parent=47 // pred_fallthru
          _
      $region48: #{tpu_custom_call.1} parent=5 // pred_fallthru
        _
      %p764 = scmp.le.s32.totalorder 1, %s30
      %p765 = scmp.lt.s32.totalorder %s30, 3
      %p766 = pnand %p764, %p765
      %p767 = pneg %p766
      // Predicated region
      $region97: #{tpu_custom_call.1} parent=5 // pred_check
        _
      $region98: #{tpu_custom_call.1} parent=5 // pred_check_branch
        %769 = sbr.rel (%p766) target = $region100
      $region99: #{tpu_custom_call.1} parent=5 // pred_region
        %s770 = ssub.s32 %s30, 1
        // Predicated region
        $region101: #{tpu_custom_call.1} parent=99 // pred_check
          %p771 = pneg %p51
        $region102: #{tpu_custom_call.1} parent=99 // pred_check_branch
          %773 = sbr.rel (%p771) target = $region104
        $region103: #{tpu_custom_call.1} parent=99 // pred_region
          %774 = dma.done [#allocation4], 512
        $region104: #{tpu_custom_call.1} parent=99 // pred_fallthru
          _
        // Predicated region
        $region105: #{tpu_custom_call.1} parent=99 // pred_check
          %p775 = pneg %p72
        $region106: #{tpu_custom_call.1} parent=99 // pred_check_branch
          %777 = sbr.rel (%p775) target = $region108
        $region107: #{tpu_custom_call.1} parent=99 // pred_region
          %778 = dma.done [#allocation7], 512
        $region108: #{tpu_custom_call.1} parent=99 // pred_fallthru
          _
        // Predicated region
        $region109: #{tpu_custom_call.1} parent=99 // pred_check
          %p779 = pneg %p93
        $region110: #{tpu_custom_call.1} parent=99 // pred_check_branch
          %781 = sbr.rel (%p779) target = $region112
        $region111: #{tpu_custom_call.1} parent=99 // pred_region
          %782 = dma.done [#allocation7], 16
        $region112: #{tpu_custom_call.1} parent=99 // pred_fallthru
          _
        // Predicated region
        $region113: #{tpu_custom_call.1} parent=99 // pred_check
          %p783 = pneg %p114
        $region114: #{tpu_custom_call.1} parent=99 // pred_check_branch
          %785 = sbr.rel (%p783) target = $region116
        $region115: #{tpu_custom_call.1} parent=99 // pred_region
          %786 = dma.done [#allocation10], 16
        $region116: #{tpu_custom_call.1} parent=99 // pred_fallthru
          _
        %s787 = sand.u32 %s35, 1
        %s788 = scalar_lea.sflag [#allocation4], %s787
        %s789 = sand.u32 %s127, 1
        %s790 = smul.addr %s789, 192
        %s791 = scalar_lea.vmem [#allocation11], %s790
        // Predicated region
        $region117: #{tpu_custom_call.1} parent=99 // pred_check
          %p792 = pneg %p140
        $region118: #{tpu_custom_call.1} parent=99 // pred_check_branch
          %794 = sbr.rel (%p792) target = $region120
        $region119: #{tpu_custom_call.1} parent=99 // pred_region
          %795 = dma.done %s788, 3072
        $region120: #{tpu_custom_call.1} parent=99 // pred_fallthru
          _
        %s796 = sand.u32 %s35, 1
        %s797 = scalar_lea.sflag [#allocation4], %s796
        %s798 = sand.u32 %s179, 1
        %s799 = smul.addr %s798, 64
        %s800 = scalar_lea.vmem [#allocation12], %s799
        // Predicated region
        $region121: #{tpu_custom_call.1} parent=99 // pred_check
          %p801 = pneg %p192
        $region122: #{tpu_custom_call.1} parent=99 // pred_check_branch
          %803 = sbr.rel (%p801) target = $region124
        $region123: #{tpu_custom_call.1} parent=99 // pred_region
          %804 = dma.done %s797, 1024
        $region124: #{tpu_custom_call.1} parent=99 // pred_fallthru
          _
        %s805 = sand.u32 %s35, 1
        %s806 = scalar_lea.sflag [#allocation4], %s805
        %s807 = sand.u32 %s283, 1
        %s808 = smul.addr %s807, 128
        %s809 = scalar_lea.vmem [#allocation13], %s808
        // Predicated region
        $region125: #{tpu_custom_call.1} parent=99 // pred_check
          %p810 = pneg %p296
        $region126: #{tpu_custom_call.1} parent=99 // pred_check_branch
          %812 = sbr.rel (%p810) target = $region128
        $region127: #{tpu_custom_call.1} parent=99 // pred_region
          %813 = dma.done %s806, 2048
        $region128: #{tpu_custom_call.1} parent=99 // pred_fallthru
          _
        %s814 = sand.u32 %s35, 1
        %s815 = scalar_lea.sflag [#allocation4], %s814
        %s816 = sand.u32 %s335, 1
        %s817 = smul.addr %s816, 128
        %s818 = scalar_lea.vmem [#allocation14], %s817
        // Predicated region
        $region129: #{tpu_custom_call.1} parent=99 // pred_check
          %p819 = pneg %p348
        $region130: #{tpu_custom_call.1} parent=99 // pred_check_branch
          %821 = sbr.rel (%p819) target = $region132
        $region131: #{tpu_custom_call.1} parent=99 // pred_region
          %822 = dma.done %s815, 2048
        $region132: #{tpu_custom_call.1} parent=99 // pred_fallthru
          _
        // Predicated region
        $region133: #{tpu_custom_call.1} parent=99 // pred_check
          %p823 = pneg %p447
        $region134: #{tpu_custom_call.1} parent=99 // pred_check_branch
          %825 = sbr.rel (%p823) target = $region136
        $region135: #{tpu_custom_call.1} parent=99 // pred_region
          %826 = dma.done [#allocation7], 1024
        $region136: #{tpu_custom_call.1} parent=99 // pred_fallthru
          _
        // Predicated region
        $region137: #{tpu_custom_call.1} parent=99 // pred_check
          %p827 = pneg %p489
        $region138: #{tpu_custom_call.1} parent=99 // pred_check_branch
          %829 = sbr.rel (%p827) target = $region140
        $region139: #{tpu_custom_call.1} parent=99 // pred_region
          %830 = dma.done [#allocation10], 1024
        $region140: #{tpu_custom_call.1} parent=99 // pred_fallthru
          _
        %p831 = pneg %p51
        %p832 = pneg %p48
        %p833 = pneg %p72
        %p834 = pneg %p69
        %p835 = pneg %p93
        %p836 = pneg %p90
        %p837 = pneg %p114
        %p838 = pneg %p111
        %s839 = sand.u32 %s35, 1
        %s840 = scalar_lea.sflag [#allocation4], %s839
        %s841 = sand.u32 %s127, 1
        %s842 = smul.addr %s841, 192
        %s843 = scalar_lea.vmem [#allocation11], %s842
        %p844 = pneg %p140
        %p845 = pneg %p137
        %p846 = scmp.lt.s32.totalorder %s35, 1
        %s847 = scalar_select %p846, %s35, 1
        %s848 = smul.addr %s847, 3
        %s849 = scalar_lea.vmem %s5, %s848
        %p850 = pneg %p166
        %p851 = pneg %p163
        %s852 = sand.u32 %s35, 1
        %s853 = scalar_lea.sflag [#allocation4], %s852
        %s854 = sand.u32 %s179, 1
        %s855 = smul.addr %s854, 64
        %s856 = scalar_lea.vmem [#allocation12], %s855
        %p857 = pneg %p192
        %p858 = pneg %p189
        %p859 = scmp.lt.s32.totalorder %s35, 1
        %s860 = scalar_select %p859, %s35, 1
        %s861 = scalar_lea.vmem %s7, %s860
        %p862 = pneg %p218
        %p863 = pneg %p215
        %p864 = scmp.lt.s32.totalorder %s35, 1
        %s865 = scalar_select %p864, %s35, 1
        %s866 = scalar_lea.vmem %s8, %s865
        %p867 = pneg %p244
        %p868 = pneg %p241
        %p869 = scmp.lt.s32.totalorder %s35, 1
        %s870 = scalar_select %p869, %s35, 1
        %s871 = scalar_lea.vmem %s9, %s870
        %p872 = pneg %p270
        %p873 = pneg %p267
        %s874 = sand.u32 %s35, 1
        %s875 = scalar_lea.sflag [#allocation4], %s874
        %s876 = sand.u32 %s283, 1
        %s877 = smul.addr %s876, 128
        %s878 = scalar_lea.vmem [#allocation13], %s877
        %p879 = pneg %p296
        %p880 = pneg %p293
        %p881 = scmp.lt.s32.totalorder %s35, 1
        %s882 = scalar_select %p881, %s35, 1
        %s883 = smul.addr %s882, 2
        %s884 = scalar_lea.vmem %s11, %s883
        %p885 = pneg %p322
        %p886 = pneg %p319
        %s887 = sand.u32 %s35, 1
        %s888 = scalar_lea.sflag [#allocation4], %s887
        %s889 = sand.u32 %s335, 1
        %s890 = smul.addr %s889, 128
        %s891 = scalar_lea.vmem [#allocation14], %s890
        %p892 = pneg %p348
        %p893 = pneg %p345
        %p894 = scmp.lt.s32.totalorder %s35, 1
        %s895 = scalar_select %p894, %s35, 1
        %s896 = scalar_lea.vmem %s13, %s895
        %p897 = pneg %p374
        %p898 = pneg %p371
        %p899 = scmp.lt.s32.totalorder %s35, 1
        %s900 = scalar_select %p899, %s35, 1
        %s901 = scalar_lea.vmem %s14, %s900
        %p902 = pneg %p400
        %p903 = pneg %p397
        %p904 = scmp.lt.s32.totalorder %s35, 1
        %s905 = scalar_select %p904, %s35, 1
        %s906 = scalar_lea.vmem %s15, %s905
        %p907 = pneg %p426
        %p908 = pneg %p423
        %p909 = pneg %p447
        %p910 = pneg %p444
        %p911 = pneg %p468
        %p912 = pneg %p465
        %p913 = pneg %p489
        %p914 = pneg %p486
        %p915 = pneg %p510
        %p916 = pneg %p507
        %p917 = pneg %p531
        %p918 = pneg %p528
        %p919 = scmp.lt.s32.totalorder %s35, 1
        %s920 = scalar_select %p919, %s35, 1
        %s921 = smul.addr %s920, 3
        %s922 = scalar_lea.vmem %s5, %s921
        %p923 = scmp.lt.s32.totalorder %s35, 1
        %s924 = scalar_select %p923, %s35, 1
        %s925 = scalar_lea.vmem %s7, %s924
        %p926 = scmp.lt.s32.totalorder %s35, 1
        %s927 = scalar_select %p926, %s35, 1
        %s928 = scalar_lea.vmem %s8, %s927
        %p929 = scmp.lt.s32.totalorder %s35, 1
        %s930 = scalar_select %p929, %s35, 1
        %s931 = scalar_lea.vmem %s9, %s930
        %p932 = scmp.lt.s32.totalorder %s35, 1
        %s933 = scalar_select %p932, %s35, 1
        %s934 = smul.addr %s933, 2
        %s935 = scalar_lea.vmem %s11, %s934
        %p936 = scmp.lt.s32.totalorder %s35, 1
        %s937 = scalar_select %p936, %s35, 1
        %s938 = scalar_lea.vmem %s13, %s937
        %p939 = scmp.lt.s32.totalorder %s35, 1
        %s940 = scalar_select %p939, %s35, 1
        %s941 = scalar_lea.vmem %s14, %s940
        %p942 = scmp.lt.s32.totalorder %s35, 1
        %s943 = scalar_select %p942, %s35, 1
        %s944 = scalar_lea.vmem %s15, %s943
        %p946 = scmp.eq.s32.totalorder %s35, 0
        // Predicated region
        $region141: #{tpu_custom_call.1} parent=99 // pred_check
          %p947 = pneg %p946
        $region142: #{tpu_custom_call.1} parent=99 // pred_check_branch
          %949 = sbr.rel (%p947) target = $region144
        $region143: #{tpu_custom_call.1} parent=99 // pred_region
          %v950 = vld [vmem:[#allocation3] sm:$0xff]
          %v951 = vld [vmem:[#allocation3 + $0x8] sm:$0xff]
          %v952 = vld [vmem:[#allocation3 + $0x10] sm:$0xff]
          %v953 = vld [vmem:[#allocation3 + $0x18] sm:$0xff]
          %v954 = vld [vmem:[#allocation8] sm:$0x1]
          %v955 = vld [vmem:[#allocation9] sm:$0x1]
          %956 = vadd.xlane.f32.xlu0 %v950
          %v957 = vpop.xlane.xlu0 %956
          %958 = vadd.xlane.f32.xlu0 %v951
          %v959 = vpop.xlane.xlu0 %958
          %960 = vadd.xlane.f32.xlu0 %v952
          %v961 = vpop.xlane.xlu0 %960
          %962 = vadd.xlane.f32.xlu0 %v953
          %v963 = vpop.xlane.xlu0 %962
          %v964 = vrcp.pop 128.0
          %v965 = vmul.f32 %v957, %v964
          %v966 = vmul.f32 %v959, %v964
          %v967 = vmul.f32 %v961, %v964
          %v968 = vmul.f32 %v963, %v964
          %v969 = vsub.f32 %v950, %v965
          %v970 = vsub.f32 %v951, %v966
          %v971 = vsub.f32 %v952, %v967
          %v972 = vsub.f32 %v953, %v968
          %v973 = vmul.f32 %v969, %v969
          %v974 = vmul.f32 %v970, %v970
          %v975 = vmul.f32 %v971, %v971
          %v976 = vmul.f32 %v972, %v972
          %977 = vadd.xlane.f32.xlu0 %v973
          %v978 = vpop.xlane.xlu0 %977
          %979 = vadd.xlane.f32.xlu0 %v974
          %v980 = vpop.xlane.xlu0 %979
          %981 = vadd.xlane.f32.xlu0 %v975
          %v982 = vpop.xlane.xlu0 %981
          %983 = vadd.xlane.f32.xlu0 %v976
          %v984 = vpop.xlane.xlu0 %983
          %v985 = vmul.f32 %v978, %v964
          %v986 = vmul.f32 %v980, %v964
          %v987 = vmul.f32 %v982, %v964
          %v988 = vmul.f32 %v984, %v964
          %v989 = vadd.f32 %v985, 1e-05
          %v990 = vadd.f32 %v986, 1e-05
          %v991 = vadd.f32 %v987, 1e-05
          %v992 = vadd.f32 %v988, 1e-05
          %v993 = vrsqrt.pop %v989
          %v994 = vrsqrt.pop %v990
          %v995 = vrsqrt.pop %v991
          %v996 = vrsqrt.pop %v992
          %v997 = vmul.f32 %v969, %v993
          %v998 = vmul.f32 %v970, %v994
          %v999 = vmul.f32 %v971, %v995
          %v1000 = vmul.f32 %v972, %v996
          %v1002 = vlaneseq
          %v1003 = vshrl.u32 %v1002, 7
          %v1004 = vsub.s32 0, %v1003
          %v1005 = vrot.slane %v954, %v1004
          %v1007 = vmul.f32 %v997, %v1005
          %v1008 = vmul.f32 %v998, %v1005
          %v1009 = vmul.f32 %v999, %v1005
          %v1010 = vmul.f32 %v1000, %v1005
          %v1012 = vlaneseq
          %v1013 = vshrl.u32 %v1012, 7
          %v1014 = vsub.s32 0, %v1013
          %v1015 = vrot.slane %v955, %v1014
          %v1017 = vadd.f32 %v1007, %v1015
          %v1018 = vadd.f32 %v1008, %v1015
          %v1019 = vadd.f32 %v1009, %v1015
          %v1020 = vadd.f32 %v1010, %v1015
          %1021 = vst [vmem:[#allocation2] sm:$0xff] %v1017
          %1022 = vst [vmem:[#allocation2 + $0x8] sm:$0xff] %v1018
          %1023 = vst [vmem:[#allocation2 + $0x10] sm:$0xff] %v1019
          %1024 = vst [vmem:[#allocation2 + $0x18] sm:$0xff] %v1020
        $region144: #{tpu_custom_call.1} parent=99 // pred_fallthru
          _
        %v1025 = vld [vmem:[#allocation2] sm:$0xff]
        %v1026 = vld [vmem:[#allocation2 + $0x8] sm:$0xff]
        %v1027 = vld [vmem:[#allocation2 + $0x10] sm:$0xff]
        %v1028 = vld [vmem:[#allocation2 + $0x18] sm:$0xff]
        %v1029 = vld [vmem:[#allocation6] sm:$0xff]
        %v1030 = vld [vmem:[#allocation6 + $0x8] sm:$0xff]
        %v1031 = vld [vmem:[#allocation6 + $0x10] sm:$0xff]
        %v1032 = vld [vmem:[#allocation6 + $0x18] sm:$0xff]
        %v1033 = vpack.c.bf16 %v1026, %v1025
        %v1034 = vpack.c.bf16 %v1028, %v1027
        %v1035 = vld [vmem:[%s791] sm:$0xff]
        %v1036 = vld [vmem:[%s791 + $0x8] sm:$0xf]
        %v1037 = vld [vmem:[%s791 + $0xc] sm:$0xff]
        %v1038 = vld [vmem:[%s791 + $0x14] sm:$0xf]
        %v1039 = vld [vmem:[%s791 + $0x18] sm:$0xff]
        %v1040 = vld [vmem:[%s791 + $0x20] sm:$0xf]
        %v1041 = vld [vmem:[%s791 + $0x24] sm:$0xff]
        %v1042 = vld [vmem:[%s791 + $0x2c] sm:$0xf]
        %v1043 = vld [vmem:[%s791 + $0x30] sm:$0xff]
        %v1044 = vld [vmem:[%s791 + $0x38] sm:$0xf]
        %v1045 = vld [vmem:[%s791 + $0x3c] sm:$0xff]
        %v1046 = vld [vmem:[%s791 + $0x44] sm:$0xf]
        %v1047 = vld [vmem:[%s791 + $0x48] sm:$0xff]
        %v1048 = vld [vmem:[%s791 + $0x50] sm:$0xf]
        %v1049 = vld [vmem:[%s791 + $0x54] sm:$0xff]
        %v1050 = vld [vmem:[%s791 + $0x5c] sm:$0xf]
        %v1051 = vld [vmem:[%s791 + $0x60] sm:$0xff]
        %v1052 = vld [vmem:[%s791 + $0x68] sm:$0xf]
        %v1053 = vld [vmem:[%s791 + $0x6c] sm:$0xff]
        %v1054 = vld [vmem:[%s791 + $0x74] sm:$0xf]
        %v1055 = vld [vmem:[%s791 + $0x78] sm:$0xff]
        %v1056 = vld [vmem:[%s791 + $0x80] sm:$0xf]
        %v1057 = vld [vmem:[%s791 + $0x84] sm:$0xff]
        %v1058 = vld [vmem:[%s791 + $0x8c] sm:$0xf]
        %v1059 = vld [vmem:[%s791 + $0x90] sm:$0xff]
        %v1060 = vld [vmem:[%s791 + $0x98] sm:$0xf]
        %v1061 = vld [vmem:[%s791 + $0x9c] sm:$0xff]
        %v1062 = vld [vmem:[%s791 + $0xa4] sm:$0xf]
        %v1063 = vld [vmem:[%s791 + $0xa8] sm:$0xff]
        %v1064 = vld [vmem:[%s791 + $0xb0] sm:$0xf]
        %v1065 = vld [vmem:[%s791 + $0xb4] sm:$0xff]
        %v1066 = vld [vmem:[%s791 + $0xbc] sm:$0xf]
        %v1067 = vld [vmem:[%s922] sm:$0x7]
        %v1069 = vlaneseq
        %v1070 = vshrl.u32 %v1069, 7
        %v1071 = vsub.s32 0, %v1070
        %v1072 = vrot.slane %v1067, %v1071
        %v1073 = vlaneseq
        %v1074 = vshrl.u32 %v1073, 7
        %v1075 = vsub.s32 1, %v1074
        %v1076 = vrot.slane %v1067, %v1075
        %v1077 = vlaneseq
        %v1078 = vshrl.u32 %v1077, 7
        %v1079 = vsub.s32 2, %v1078
        %v1080 = vrot.slane %v1067, %v1079
        %v1116 = vunpack.c.l.b16 %v1035
        %v1117 = vunpack.c.h.b16 %v1035
        %v1118 = vunpack.c.l.b16 %v1036
        %v1119 = vunpack.c.l.b16 %v1037
        %v1120 = vunpack.c.h.b16 %v1037
        %v1121 = vunpack.c.l.b16 %v1038
        %v1122 = vunpack.c.l.b16 %v1039
        %v1123 = vunpack.c.h.b16 %v1039
        %v1124 = vunpack.c.l.b16 %v1040
        %v1125 = vunpack.c.l.b16 %v1041
        %v1126 = vunpack.c.h.b16 %v1041
        %v1127 = vunpack.c.l.b16 %v1042
        %v1128 = vunpack.c.l.b16 %v1043
        %v1129 = vunpack.c.h.b16 %v1043
        %v1130 = vunpack.c.l.b16 %v1044
        %v1131 = vunpack.c.l.b16 %v1045
        %v1132 = vunpack.c.h.b16 %v1045
        %v1133 = vunpack.c.l.b16 %v1046
        %v1134 = vunpack.c.l.b16 %v1047
        %v1135 = vunpack.c.h.b16 %v1047
        %v1136 = vunpack.c.l.b16 %v1048
        %v1137 = vunpack.c.l.b16 %v1049
        %v1138 = vunpack.c.h.b16 %v1049
        %v1139 = vunpack.c.l.b16 %v1050
        %v1140 = vunpack.c.l.b16 %v1051
        %v1141 = vunpack.c.h.b16 %v1051
        %v1142 = vunpack.c.l.b16 %v1052
        %v1143 = vunpack.c.l.b16 %v1053
        %v1144 = vunpack.c.h.b16 %v1053
        %v1145 = vunpack.c.l.b16 %v1054
        %v1146 = vunpack.c.l.b16 %v1055
        %v1147 = vunpack.c.h.b16 %v1055
        %v1148 = vunpack.c.l.b16 %v1056
        %v1149 = vunpack.c.l.b16 %v1057
        %v1150 = vunpack.c.h.b16 %v1057
        %v1151 = vunpack.c.l.b16 %v1058
        %v1152 = vunpack.c.l.b16 %v1059
        %v1153 = vunpack.c.h.b16 %v1059
        %v1154 = vunpack.c.l.b16 %v1060
        %v1155 = vunpack.c.l.b16 %v1061
        %v1156 = vunpack.c.h.b16 %v1061
        %v1157 = vunpack.c.l.b16 %v1062
        %v1158 = vunpack.c.l.b16 %v1063
        %v1159 = vunpack.c.h.b16 %v1063
        %v1160 = vunpack.c.l.b16 %v1064
        %v1161 = vunpack.c.l.b16 %v1065
        %v1162 = vunpack.c.h.b16 %v1065
        %v1163 = vunpack.c.l.b16 %v1066
        %v1164 = vpack.c.b16 %v1119, %v1116
        %v1165 = vpack.c.b16 %v1120, %v1117
        %v1166 = vpack.c.b16 %v1121, %v1118
        %v1167 = vpack.c.b16 %v1125, %v1122
        %v1168 = vpack.c.b16 %v1126, %v1123
        %v1169 = vpack.c.b16 %v1127, %v1124
        %v1170 = vpack.c.b16 %v1131, %v1128
        %v1171 = vpack.c.b16 %v1132, %v1129
        %v1172 = vpack.c.b16 %v1133, %v1130
        %v1173 = vpack.c.b16 %v1137, %v1134
        %v1174 = vpack.c.b16 %v1138, %v1135
        %v1175 = vpack.c.b16 %v1139, %v1136
        %v1176 = vpack.c.b16 %v1143, %v1140
        %v1177 = vpack.c.b16 %v1144, %v1141
        %v1178 = vpack.c.b16 %v1145, %v1142
        %v1179 = vpack.c.b16 %v1149, %v1146
        %v1180 = vpack.c.b16 %v1150, %v1147
        %v1181 = vpack.c.b16 %v1151, %v1148
        %v1182 = vpack.c.b16 %v1155, %v1152
        %v1183 = vpack.c.b16 %v1156, %v1153
        %v1184 = vpack.c.b16 %v1157, %v1154
        %v1185 = vpack.c.b16 %v1161, %v1158
        %v1186 = vpack.c.b16 %v1162, %v1159
        %v1187 = vpack.c.b16 %v1163, %v1160
        %1212 = vmatprep.subr.bf16.mxu0 %v1186
        %1213 = vmatpush1.bf16.msra.mxu0 %v1185
        %1214 = vmatprep.subr.bf16.mxu0 %v1183
        %1215 = vmatpush1.bf16.msra.mxu0 %v1182
        %1216 = vmatprep.subr.bf16.mxu0 %v1180
        %1217 = vmatpush1.bf16.msra.mxu0 %v1179
        %1218 = vmatprep.subr.bf16.mxu0 %v1177
        %1219 = vmatpush1.bf16.msra.mxu0 %v1176
        %1220 = vmatprep.subr.bf16.mxu0 %v1174
        %1221 = vmatpush1.bf16.msra.mxu0 %v1173
        %1222 = vmatprep.subr.bf16.mxu0 %v1171
        %1223 = vmatpush1.bf16.msra.mxu0 %v1170
        %1224 = vmatprep.subr.bf16.mxu0 %v1168
        %1225 = vmatpush1.bf16.msra.mxu0 %v1167
        %1226 = vmatprep.subr.bf16.mxu0 %v1165
        %1227 = vmatpush1.bf16.msra.mxu0 %v1164
        %1228 = vmatprep.subr.bf16.mxu0 0
        %1229 = vmatpush2.bf16.msra.mxu0 0
        %1230 = vmatprep.subr.bf16.mxu0 0
        %1231 = vmatpush2.bf16.msra.mxu0 0
        %1232 = vmatprep.subr.bf16.mxu0 0
        %1233 = vmatpush2.bf16.msra.mxu0 0
        %1234 = vmatprep.subr.bf16.mxu0 0
        %1235 = vmatpush2.bf16.msra.mxu0 0
        %1236 = vmatprep.subr.bf16.mxu0 0
        %1237 = vmatpush2.bf16.msra.mxu0 0
        %1238 = vmatprep.subr.bf16.mxu0 0
        %1239 = vmatpush2.bf16.msra.mxu0 0
        %1240 = vmatprep.subr.bf16.mxu0 0
        %1241 = vmatpush2.bf16.msra.mxu0 0
        %1242 = vmatprep.subr.bf16.mxu0 0
        %1243 = vmatpush2.bf16.msra.mxu0 0
        %1244 = vmatprep.mubr.bf16.mxu0 0
        %1245 = vmatmul.mubr.bf16.gmra.mxu0 %v1033
        %v1246 = vpop.f32.mrf.mxu0
        %v1247 = vadd.f32 %v1072, %v1246
        %v1248 = vpop.f32.mrf.mxu0
        %v1249 = vadd.f32 %v1076, %v1248
        %v1250 = vpop.f32.mrf.mxu0
        %v1251 = vadd.f32 %v1072, %v1250
        %v1252 = vpop.f32.mrf.mxu0
        %v1253 = vadd.f32 %v1076, %v1252
        %1254 = vmatprep.mubr.bf16.mxu0 0
        %1255 = vmatmul.mubr.bf16.gmra.mxu0 %v1034
        %v1256 = vpop.f32.mrf.mxu0
        %v1257 = vadd.f32 %v1072, %v1256
        %v1258 = vpop.f32.mrf.mxu0
        %v1259 = vadd.f32 %v1076, %v1258
        %v1260 = vpop.f32.mrf.mxu0
        %v1261 = vadd.f32 %v1072, %v1260
        %v1262 = vpop.f32.mrf.mxu0
        %v1263 = vadd.f32 %v1076, %v1262
        %1264 = vdwg.mxu0
        %1265 = vmatprep.subr.bf16.mxu0 0
        %1266 = vmatpush1.bf16.msra.mxu0 %v1187
        %1267 = vmatprep.subr.bf16.mxu0 0
        %1268 = vmatpush1.bf16.msra.mxu0 %v1184
        %1269 = vmatprep.subr.bf16.mxu0 0
        %1270 = vmatpush1.bf16.msra.mxu0 %v1181
        %1271 = vmatprep.subr.bf16.mxu0 0
        %1272 = vmatpush1.bf16.msra.mxu0 %v1178
        %1273 = vmatprep.subr.bf16.mxu0 0
        %1274 = vmatpush1.bf16.msra.mxu0 %v1175
        %1275 = vmatprep.subr.bf16.mxu0 0
        %1276 = vmatpush1.bf16.msra.mxu0 %v1172
        %1277 = vmatprep.subr.bf16.mxu0 0
        %1278 = vmatpush1.bf16.msra.mxu0 %v1169
        %1279 = vmatprep.subr.bf16.mxu0 0
        %1280 = vmatpush1.bf16.msra.mxu0 %v1166
        %1281 = vmatprep.subr.bf16.mxu0 0
        %1282 = vmatpush2.bf16.msra.mxu0 0
        %1283 = vmatprep.subr.bf16.mxu0 0
        %1284 = vmatpush2.bf16.msra.mxu0 0
        %1285 = vmatprep.subr.bf16.mxu0 0
        %1286 = vmatpush2.bf16.msra.mxu0 0
        %1287 = vmatprep.subr.bf16.mxu0 0
        %1288 = vmatpush2.bf16.msra.mxu0 0
        %1289 = vmatprep.subr.bf16.mxu0 0
        %1290 = vmatpush2.bf16.msra.mxu0 0
        %1291 = vmatprep.subr.bf16.mxu0 0
        %1292 = vmatpush2.bf16.msra.mxu0 0
        %1293 = vmatprep.subr.bf16.mxu0 0
        %1294 = vmatpush2.bf16.msra.mxu0 0
        %1295 = vmatprep.subr.bf16.mxu0 0
        %1296 = vmatpush2.bf16.msra.mxu0 0
        %1297 = vmatprep.mubr.bf16.mxu0 0
        %1298 = vmatmul.mubr.bf16.gmra.mxu0 %v1033
        %v1299 = vpop.f32.mrf.mxu0
        %v1300 = vadd.f32 %v1080, %v1299
        %v1301 = vpop.f32.mrf.mxu0
        %v1302 = vpop.f32.mrf.mxu0
        %v1303 = vadd.f32 %v1080, %v1302
        %v1304 = vpop.f32.mrf.mxu0
        %1305 = vmatprep.mubr.bf16.mxu0 0
        %1306 = vmatmul.mubr.bf16.gmra.mxu0 %v1034
        %v1307 = vpop.f32.mrf.mxu0
        %v1308 = vadd.f32 %v1080, %v1307
        %v1309 = vpop.f32.mrf.mxu0
        %v1310 = vpop.f32.mrf.mxu0
        %v1311 = vadd.f32 %v1080, %v1310
        %v1312 = vpop.f32.mrf.mxu0
        %1313 = vdwg.mxu0
        %v1314 = vpack.c.bf16 %v1251, %v1247
        %v1315 = vpack.c.bf16 %v1253, %v1249
        %v1316 = vpack.c.bf16 %v1303, %v1300
        %v1317 = vpack.c.bf16 %v1261, %v1257
        %v1318 = vpack.c.bf16 %v1263, %v1259
        %v1319 = vpack.c.bf16 %v1311, %v1308
        %v1320 = vld [vmem:[%s800] sm:$0xf]
        %v1321 = vld [vmem:[%s800 + $0x4] sm:$0xf]
        %v1322 = vld [vmem:[%s800 + $0x8] sm:$0xf]
        %v1323 = vld [vmem:[%s800 + $0xc] sm:$0xf]
        %v1324 = vld [vmem:[%s800 + $0x10] sm:$0xf]
        %v1325 = vld [vmem:[%s800 + $0x14] sm:$0xf]
        %v1326 = vld [vmem:[%s800 + $0x18] sm:$0xf]
        %v1327 = vld [vmem:[%s800 + $0x1c] sm:$0xf]
        %v1328 = vld [vmem:[%s800 + $0x20] sm:$0xf]
        %v1329 = vld [vmem:[%s800 + $0x24] sm:$0xf]
        %v1330 = vld [vmem:[%s800 + $0x28] sm:$0xf]
        %v1331 = vld [vmem:[%s800 + $0x2c] sm:$0xf]
        %v1332 = vld [vmem:[%s800 + $0x30] sm:$0xf]
        %v1333 = vld [vmem:[%s800 + $0x34] sm:$0xf]
        %v1334 = vld [vmem:[%s800 + $0x38] sm:$0xf]
        %v1335 = vld [vmem:[%s800 + $0x3c] sm:$0xf]
        %vm1336 = vcmask 261120
        %v1338 = vsel %vm1336, %v1314, 0
        %v1341 = vsel %vm1336, %v1317, 0
        %v1344 = vsel %vm1336, %v1315, 0
        %v1347 = vsel %vm1336, %v1318, 0
        %1349 = vmatprep.subr.bf16.mxu0 0
        %1350 = vmatpush1.bf16.xpose.msra.mxu0 0
        %1351 = vmatprep.subr.bf16.mxu0 0
        %1352 = vmatpush1.bf16.xpose.msra.mxu0 0
        %1353 = vmatprep.subr.bf16.mxu0 0
        %1354 = vmatpush1.bf16.xpose.msra.mxu0 0
        %1355 = vmatprep.subr.bf16.mxu0 0
        %1356 = vmatpush1.bf16.xpose.msra.mxu0 0
        %1357 = vmatprep.subr.bf16.mxu0 0
        %1358 = vmatpush1.bf16.xpose.msra.mxu0 0
        %1359 = vmatprep.subr.bf16.mxu0 0
        %1360 = vmatpush1.bf16.xpose.msra.mxu0 0
        %1361 = vmatprep.subr.bf16.mxu0 0
        %1362 = vmatpush1.bf16.xpose.msra.mxu0 %v1347
        %1363 = vmatprep.subr.bf16.mxu0 0
        %1364 = vmatpush1.bf16.xpose.msra.mxu0 %v1344
        %1365 = vmatprep.subr.bf16.mxu0 0
        %1366 = vmatpush2.bf16.xpose.msra.mxu0 0
        %1367 = vmatprep.subr.bf16.mxu0 0
        %1368 = vmatpush2.bf16.xpose.msra.mxu0 0
        %1369 = vmatprep.subr.bf16.mxu0 0
        %1370 = vmatpush2.bf16.xpose.msra.mxu0 0
        %1371 = vmatprep.subr.bf16.mxu0 0
        %1372 = vmatpush2.bf16.xpose.msra.mxu0 0
        %1373 = vmatprep.subr.bf16.mxu0 0
        %1374 = vmatpush2.bf16.xpose.msra.mxu0 0
        %1375 = vmatprep.subr.bf16.mxu0 0
        %1376 = vmatpush2.bf16.xpose.msra.mxu0 0
        %1377 = vmatprep.subr.bf16.mxu0 0
        %1378 = vmatpush2.bf16.xpose.msra.mxu0 0
        %1379 = vmatprep.subr.bf16.mxu0 0
        %1380 = vmatpush2.bf16.xpose.msra.mxu0 0
        %1381 = vmatprep.mubr.bf16.mxu0 0
        %1382 = vmatmul.mubr.bf16.gmra.mxu0 %v1338
        %v1383 = vpop.f32.mrf.mxu0
        %v1384 = vadd.f32 %v1029, %v1383
        %v1385 = vpop.f32.mrf.mxu0
        %v1386 = vpop.f32.mrf.mxu0
        %v1387 = vadd.f32 %v1030, %v1386
        %v1388 = vpop.f32.mrf.mxu0
        %1389 = vmatprep.mubr.bf16.mxu0 0
        %1390 = vmatmul.mubr.bf16.gmra.mxu0 %v1341
        %v1391 = vpop.f32.mrf.mxu0
        %v1392 = vadd.f32 %v1031, %v1391
        %v1393 = vpop.f32.mrf.mxu0
        %v1394 = vpop.f32.mrf.mxu0
        %v1395 = vadd.f32 %v1032, %v1394
        %v1396 = vpop.f32.mrf.mxu0
        %1397 = vdwg.mxu0
        %v1398 = vsel %vm1336, %v1384, -inf
        %1399 = vmax.xlane.f32.xlu0 %v1398
        %v1400 = vpop.xlane.xlu0 %1399
        %v1401 = vsel %vm1336, %v1387, -inf
        %1402 = vmax.xlane.f32.xlu0 %v1401
        %v1403 = vpop.xlane.xlu0 %1402
        %v1404 = vsel %vm1336, %v1392, -inf
        %1405 = vmax.xlane.f32.xlu0 %v1404
        %v1406 = vpop.xlane.xlu0 %1405
        %v1407 = vsel %vm1336, %v1395, -inf
        %1408 = vmax.xlane.f32.xlu0 %v1407
        %v1409 = vpop.xlane.xlu0 %1408
        %v1410 = vsub.f32 %v1384, %v1400
        %v1411 = vsub.f32 %v1387, %v1403
        %v1412 = vsub.f32 %v1392, %v1406
        %v1413 = vsub.f32 %v1395, %v1409
        %v1414 = vmul.f32 %v1410, 1.442695
        %v1415 = vpow.pop %v1414
        %v1416 = vmul.f32 %v1411, 1.442695
        %v1417 = vpow.pop %v1416
        %v1418 = vmul.f32 %v1412, 1.442695
        %v1419 = vpow.pop %v1418
        %v1420 = vmul.f32 %v1413, 1.442695
        %v1421 = vpow.pop %v1420
        %v1422 = vsel %vm1336, %v1415, 0.0
        %1423 = vadd.xlane.f32.xlu0 %v1422
        %v1424 = vpop.xlane.xlu0 %1423
        %v1425 = vsel %vm1336, %v1417, 0.0
        %1426 = vadd.xlane.f32.xlu0 %v1425
        %v1427 = vpop.xlane.xlu0 %1426
        %v1428 = vsel %vm1336, %v1419, 0.0
        %1429 = vadd.xlane.f32.xlu0 %v1428
        %v1430 = vpop.xlane.xlu0 %1429
        %v1431 = vsel %vm1336, %v1421, 0.0
        %1432 = vadd.xlane.f32.xlu0 %v1431
        %v1433 = vpop.xlane.xlu0 %1432
        %v1434 = vrcp.pop %v1424
        %v1435 = vrcp.pop %v1427
        %v1436 = vrcp.pop %v1430
        %v1437 = vrcp.pop %v1433
        %v1438 = vmul.f32 %v1415, %v1434
        %v1439 = vmul.f32 %v1417, %v1435
        %v1440 = vmul.f32 %v1419, %v1436
        %v1441 = vmul.f32 %v1421, %v1437
        %v1442 = vpack.c.bf16 %v1439, %v1438
        %v1443 = vpack.c.bf16 %v1441, %v1440
        %v1445 = vsel %vm1336, %v1442, 0
        %v1448 = vsel %vm1336, %v1443, 0
        %1450 = vmatprep.subr.bf16.mxu0 0
        %1451 = vmatpush1.bf16.msra.mxu0 0
        %1452 = vmatprep.subr.bf16.mxu0 0
        %1453 = vmatpush1.bf16.msra.mxu0 0
        %1454 = vmatprep.subr.bf16.mxu0 0
        %1455 = vmatpush1.bf16.msra.mxu0 0
        %1456 = vmatprep.subr.bf16.mxu0 0
        %1457 = vmatpush1.bf16.msra.mxu0 0
        %1458 = vmatprep.subr.bf16.mxu0 0
        %1459 = vmatpush1.bf16.msra.mxu0 0
        %1460 = vmatprep.subr.bf16.mxu0 0
        %1461 = vmatpush1.bf16.msra.mxu0 0
        %1462 = vmatprep.subr.bf16.mxu0 0
        %1463 = vmatpush1.bf16.msra.mxu0 %v1319
        %1464 = vmatprep.subr.bf16.mxu0 0
        %1465 = vmatpush1.bf16.msra.mxu0 %v1316
        %1466 = vmatprep.subr.bf16.mxu0 0
        %1467 = vmatpush2.bf16.msra.mxu0 0
        %1468 = vmatprep.subr.bf16.mxu0 0
        %1469 = vmatpush2.bf16.msra.mxu0 0
        %1470 = vmatprep.subr.bf16.mxu0 0
        %1471 = vmatpush2.bf16.msra.mxu0 0
        %1472 = vmatprep.subr.bf16.mxu0 0
        %1473 = vmatpush2.bf16.msra.mxu0 0
        %1474 = vmatprep.subr.bf16.mxu0 0
        %1475 = vmatpush2.bf16.msra.mxu0 0
        %1476 = vmatprep.subr.bf16.mxu0 0
        %1477 = vmatpush2.bf16.msra.mxu0 0
        %1478 = vmatprep.subr.bf16.mxu0 0
        %1479 = vmatpush2.bf16.msra.mxu0 0
        %1480 = vmatprep.subr.bf16.mxu0 0
        %1481 = vmatpush2.bf16.msra.mxu0 0
        %1482 = vmatprep.mubr.bf16.mxu0 0
        %1483 = vmatmul.mubr.bf16.gmra.mxu0 %v1445
        %v1484 = vpop.f32.mrf.mxu0
        %v1485 = vadd.f32 0.0, %v1484
        %v1486 = vpop.f32.mrf.mxu0
        %v1487 = vpop.f32.mrf.mxu0
        %v1488 = vadd.f32 0.0, %v1487
        %v1489 = vpop.f32.mrf.mxu0
        %1490 = vmatprep.mubr.bf16.mxu0 0
        %1491 = vmatmul.mubr.bf16.gmra.mxu0 %v1448
        %v1492 = vpop.f32.mrf.mxu0
        %v1493 = vadd.f32 0.0, %v1492
        %v1494 = vpop.f32.mrf.mxu0
        %v1495 = vpop.f32.mrf.mxu0
        %v1496 = vadd.f32 0.0, %v1495
        %v1497 = vpop.f32.mrf.mxu0
        %1498 = vdwg.mxu0
        %v1499 = vpack.c.bf16 %v1488, %v1485
        %v1500 = vpack.c.bf16 %v1496, %v1493
        %1503 = vrot.lane.b32.xlu0 %v1314, 96
        %v1504 = vpop.permute.xlu0 %1503
        %1505 = vrot.lane.b32.xlu0 %v1317, 96
        %v1506 = vpop.permute.xlu0 %1505
        %1509 = vrot.lane.b32.xlu0 %v1315, 96
        %v1510 = vpop.permute.xlu0 %1509
        %1511 = vrot.lane.b32.xlu0 %v1318, 96
        %v1512 = vpop.permute.xlu0 %1511
        %v1514 = vsel %vm1336, %v1504, 0
        %v1517 = vsel %vm1336, %v1506, 0
        %v1520 = vsel %vm1336, %v1510, 0
        %v1523 = vsel %vm1336, %v1512, 0
        %1525 = vmatprep.subr.bf16.mxu0 0
        %1526 = vmatpush1.bf16.xpose.msra.mxu0 0
        %1527 = vmatprep.subr.bf16.mxu0 0
        %1528 = vmatpush1.bf16.xpose.msra.mxu0 0
        %1529 = vmatprep.subr.bf16.mxu0 0
        %1530 = vmatpush1.bf16.xpose.msra.mxu0 0
        %1531 = vmatprep.subr.bf16.mxu0 0
        %1532 = vmatpush1.bf16.xpose.msra.mxu0 0
        %1533 = vmatprep.subr.bf16.mxu0 0
        %1534 = vmatpush1.bf16.xpose.msra.mxu0 0
        %1535 = vmatprep.subr.bf16.mxu0 0
        %1536 = vmatpush1.bf16.xpose.msra.mxu0 0
        %1537 = vmatprep.subr.bf16.mxu0 0
        %1538 = vmatpush1.bf16.xpose.msra.mxu0 %v1523
        %1539 = vmatprep.subr.bf16.mxu0 0
        %1540 = vmatpush1.bf16.xpose.msra.mxu0 %v1520
        %1541 = vmatprep.subr.bf16.mxu0 0
        %1542 = vmatpush2.bf16.xpose.msra.mxu0 0
        %1543 = vmatprep.subr.bf16.mxu0 0
        %1544 = vmatpush2.bf16.xpose.msra.mxu0 0
        %1545 = vmatprep.subr.bf16.mxu0 0
        %1546 = vmatpush2.bf16.xpose.msra.mxu0 0
        %1547 = vmatprep.subr.bf16.mxu0 0
        %1548 = vmatpush2.bf16.xpose.msra.mxu0 0
        %1549 = vmatprep.subr.bf16.mxu0 0
        %1550 = vmatpush2.bf16.xpose.msra.mxu0 0
        %1551 = vmatprep.subr.bf16.mxu0 0
        %1552 = vmatpush2.bf16.xpose.msra.mxu0 0
        %1553 = vmatprep.subr.bf16.mxu0 0
        %1554 = vmatpush2.bf16.xpose.msra.mxu0 0
        %1555 = vmatprep.subr.bf16.mxu0 0
        %1556 = vmatpush2.bf16.xpose.msra.mxu0 0
        %1557 = vmatprep.mubr.bf16.mxu0 0
        %1558 = vmatmul.mubr.bf16.gmra.mxu0 %v1514
        %v1559 = vpop.f32.mrf.mxu0
        %v1560 = vadd.f32 %v1029, %v1559
        %v1561 = vpop.f32.mrf.mxu0
        %v1562 = vpop.f32.mrf.mxu0
        %v1563 = vadd.f32 %v1030, %v1562
        %v1564 = vpop.f32.mrf.mxu0
        %1565 = vmatprep.mubr.bf16.mxu0 0
        %1566 = vmatmul.mubr.bf16.gmra.mxu0 %v1517
        %v1567 = vpop.f32.mrf.mxu0
        %v1568 = vadd.f32 %v1031, %v1567
        %v1569 = vpop.f32.mrf.mxu0
        %v1570 = vpop.f32.mrf.mxu0
        %v1571 = vadd.f32 %v1032, %v1570
        %v1572 = vpop.f32.mrf.mxu0
        %1573 = vdwg.mxu0
        %v1574 = vsel %vm1336, %v1560, -inf
        %1575 = vmax.xlane.f32.xlu0 %v1574
        %v1576 = vpop.xlane.xlu0 %1575
        %v1577 = vsel %vm1336, %v1563, -inf
        %1578 = vmax.xlane.f32.xlu0 %v1577
        %v1579 = vpop.xlane.xlu0 %1578
        %v1580 = vsel %vm1336, %v1568, -inf
        %1581 = vmax.xlane.f32.xlu0 %v1580
        %v1582 = vpop.xlane.xlu0 %1581
        %v1583 = vsel %vm1336, %v1571, -inf
        %1584 = vmax.xlane.f32.xlu0 %v1583
        %v1585 = vpop.xlane.xlu0 %1584
        %v1586 = vsub.f32 %v1560, %v1576
        %v1587 = vsub.f32 %v1563, %v1579
        %v1588 = vsub.f32 %v1568, %v1582
        %v1589 = vsub.f32 %v1571, %v1585
        %v1590 = vmul.f32 %v1586, 1.442695
        %v1591 = vpow.pop %v1590
        %v1592 = vmul.f32 %v1587, 1.442695
        %v1593 = vpow.pop %v1592
        %v1594 = vmul.f32 %v1588, 1.442695
        %v1595 = vpow.pop %v1594
        %v1596 = vmul.f32 %v1589, 1.442695
        %v1597 = vpow.pop %v1596
        %v1598 = vsel %vm1336, %v1591, 0.0
        %1599 = vadd.xlane.f32.xlu0 %v1598
        %v1600 = vpop.xlane.xlu0 %1599
        %v1601 = vsel %vm1336, %v1593, 0.0
        %1602 = vadd.xlane.f32.xlu0 %v1601
        %v1603 = vpop.xlane.xlu0 %1602
        %v1604 = vsel %vm1336, %v1595, 0.0
        %1605 = vadd.xlane.f32.xlu0 %v1604
        %v1606 = vpop.xlane.xlu0 %1605
        %v1607 = vsel %vm1336, %v1597, 0.0
        %1608 = vadd.xlane.f32.xlu0 %v1607
        %v1609 = vpop.xlane.xlu0 %1608
        %v1610 = vrcp.pop %v1600
        %v1611 = vrcp.pop %v1603
        %v1612 = vrcp.pop %v1606
        %v1613 = vrcp.pop %v1609
        %v1614 = vmul.f32 %v1591, %v1610
        %v1615 = vmul.f32 %v1593, %v1611
        %v1616 = vmul.f32 %v1595, %v1612
        %v1617 = vmul.f32 %v1597, %v1613
        %v1618 = vpack.c.bf16 %v1615, %v1614
        %v1619 = vpack.c.bf16 %v1617, %v1616
        %1622 = vrot.lane.b32.xlu0 %v1316, 96
        %v1623 = vpop.permute.xlu0 %1622
        %1624 = vrot.lane.b32.xlu0 %v1319, 96
        %v1625 = vpop.permute.xlu0 %1624
        %v1629 = vsel %vm1336, %v1618, 0
        %v1632 = vsel %vm1336, %v1619, 0
        %1634 = vmatprep.subr.bf16.mxu0 0
        %1635 = vmatpush1.bf16.msra.mxu0 0
        %1636 = vmatprep.subr.bf16.mxu0 0
        %1637 = vmatpush1.bf16.msra.mxu0 0
        %1638 = vmatprep.subr.bf16.mxu0 0
        %1639 = vmatpush1.bf16.msra.mxu0 0
        %1640 = vmatprep.subr.bf16.mxu0 0
        %1641 = vmatpush1.bf16.msra.mxu0 0
        %1642 = vmatprep.subr.bf16.mxu0 0
        %1643 = vmatpush1.bf16.msra.mxu0 0
        %1644 = vmatprep.subr.bf16.mxu0 0
        %1645 = vmatpush1.bf16.msra.mxu0 0
        %1646 = vmatprep.subr.bf16.mxu0 0
        %1647 = vmatpush1.bf16.msra.mxu0 %v1625
        %1648 = vmatprep.subr.bf16.mxu0 0
        %1649 = vmatpush1.bf16.msra.mxu0 %v1623
        %1650 = vmatprep.subr.bf16.mxu0 0
        %1651 = vmatpush2.bf16.msra.mxu0 0
        %1652 = vmatprep.subr.bf16.mxu0 0
        %1653 = vmatpush2.bf16.msra.mxu0 0
        %1654 = vmatprep.subr.bf16.mxu0 0
        %1655 = vmatpush2.bf16.msra.mxu0 0
        %1656 = vmatprep.subr.bf16.mxu0 0
        %1657 = vmatpush2.bf16.msra.mxu0 0
        %1658 = vmatprep.subr.bf16.mxu0 0
        %1659 = vmatpush2.bf16.msra.mxu0 0
        %1660 = vmatprep.subr.bf16.mxu0 0
        %1661 = vmatpush2.bf16.msra.mxu0 0
        %1662 = vmatprep.subr.bf16.mxu0 0
        %1663 = vmatpush2.bf16.msra.mxu0 0
        %1664 = vmatprep.subr.bf16.mxu0 0
        %1665 = vmatpush2.bf16.msra.mxu0 0
        %1666 = vmatprep.mubr.bf16.mxu0 0
        %1667 = vmatmul.mubr.bf16.gmra.mxu0 %v1629
        %v1668 = vpop.f32.mrf.mxu0
        %v1669 = vadd.f32 0.0, %v1668
        %v1670 = vpop.f32.mrf.mxu0
        %v1671 = vpop.f32.mrf.mxu0
        %v1672 = vadd.f32 0.0, %v1671
        %v1673 = vpop.f32.mrf.mxu0
        %1674 = vmatprep.mubr.bf16.mxu0 0
        %1675 = vmatmul.mubr.bf16.gmra.mxu0 %v1632
        %v1676 = vpop.f32.mrf.mxu0
        %v1677 = vadd.f32 0.0, %v1676
        %v1678 = vpop.f32.mrf.mxu0
        %v1679 = vpop.f32.mrf.mxu0
        %v1680 = vadd.f32 0.0, %v1679
        %v1681 = vpop.f32.mrf.mxu0
        %1682 = vdwg.mxu0
        %v1683 = vpack.c.bf16 %v1672, %v1669
        %v1684 = vpack.c.bf16 %v1680, %v1677
        %v1689 = vunpack.c.l.b16 %v1324
        %v1690 = vunpack.c.l.b16 %v1325
        %v1691 = vunpack.c.l.b16 %v1326
        %v1692 = vunpack.c.l.b16 %v1327
        %v1693 = vpack.c.b16 %v1690, %v1689
        %v1694 = vpack.c.b16 %v1692, %v1691
        %v1698 = vsel %vm1336, %v1683, 0
        %v1701 = vsel %vm1336, %v1684, 0
        %1703 = vmatprep.subr.bf16.mxu0 0
        %1704 = vmatpush1.bf16.msra.mxu0 0
        %1705 = vmatprep.subr.bf16.mxu0 0
        %1706 = vmatpush1.bf16.msra.mxu0 0
        %1707 = vmatprep.subr.bf16.mxu0 0
        %1708 = vmatpush1.bf16.msra.mxu0 0
        %1709 = vmatprep.subr.bf16.mxu0 0
        %1710 = vmatpush1.bf16.msra.mxu0 0
        %1711 = vmatprep.subr.bf16.mxu0 0
        %1712 = vmatpush1.bf16.msra.mxu0 0
        %1713 = vmatprep.subr.bf16.mxu0 0
        %1714 = vmatpush1.bf16.msra.mxu0 0
        %1715 = vmatprep.subr.bf16.mxu0 0
        %1716 = vmatpush1.bf16.msra.mxu0 %v1694
        %1717 = vmatprep.subr.bf16.mxu0 0
        %1718 = vmatpush1.bf16.msra.mxu0 %v1693
        %1719 = vmatprep.subr.bf16.mxu0 0
        %1720 = vmatpush2.bf16.msra.mxu0 0
        %1721 = vmatprep.subr.bf16.mxu0 0
        %1722 = vmatpush2.bf16.msra.mxu0 0
        %1723 = vmatprep.subr.bf16.mxu0 0
        %1724 = vmatpush2.bf16.msra.mxu0 0
        %1725 = vmatprep.subr.bf16.mxu0 0
        %1726 = vmatpush2.bf16.msra.mxu0 0
        %1727 = vmatprep.subr.bf16.mxu0 0
        %1728 = vmatpush2.bf16.msra.mxu0 0
        %1729 = vmatprep.subr.bf16.mxu0 0
        %1730 = vmatpush2.bf16.msra.mxu0 0
        %1731 = vmatprep.subr.bf16.mxu0 0
        %1732 = vmatpush2.bf16.msra.mxu0 0
        %1733 = vmatprep.subr.bf16.mxu0 0
        %1734 = vmatpush2.bf16.msra.mxu0 0
        %1735 = vmatprep.mubr.bf16.mxu0 0
        %1736 = vmatmul.mubr.bf16.gmra.mxu0 %v1698
        %v1737 = vpop.f32.mrf.mxu0
        %v1738 = vadd.f32 0.0, %v1737
        %v1739 = vpop.f32.mrf.mxu0
        %v1740 = vpop.f32.mrf.mxu0
        %v1741 = vadd.f32 0.0, %v1740
        %v1742 = vpop.f32.mrf.mxu0
        %1743 = vmatprep.mubr.bf16.mxu0 0
        %1744 = vmatmul.mubr.bf16.gmra.mxu0 %v1701
        %v1745 = vpop.f32.mrf.mxu0
        %v1746 = vadd.f32 0.0, %v1745
        %v1747 = vpop.f32.mrf.mxu0
        %v1748 = vpop.f32.mrf.mxu0
        %v1749 = vadd.f32 0.0, %v1748
        %v1750 = vpop.f32.mrf.mxu0
        %1751 = vdwg.mxu0
        %v1756 = vunpack.c.l.b16 %v1320
        %v1757 = vunpack.c.l.b16 %v1321
        %v1758 = vunpack.c.l.b16 %v1322
        %v1759 = vunpack.c.l.b16 %v1323
        %v1760 = vpack.c.b16 %v1757, %v1756
        %v1761 = vpack.c.b16 %v1759, %v1758
        %v1765 = vsel %vm1336, %v1499, 0
        %v1768 = vsel %vm1336, %v1500, 0
        %1770 = vmatprep.subr.bf16.mxu0 0
        %1771 = vmatpush1.bf16.msra.mxu0 0
        %1772 = vmatprep.subr.bf16.mxu0 0
        %1773 = vmatpush1.bf16.msra.mxu0 0
        %1774 = vmatprep.subr.bf16.mxu0 0
        %1775 = vmatpush1.bf16.msra.mxu0 0
        %1776 = vmatprep.subr.bf16.mxu0 0
        %1777 = vmatpush1.bf16.msra.mxu0 0
        %1778 = vmatprep.subr.bf16.mxu0 0
        %1779 = vmatpush1.bf16.msra.mxu0 0
        %1780 = vmatprep.subr.bf16.mxu0 0
        %1781 = vmatpush1.bf16.msra.mxu0 0
        %1782 = vmatprep.subr.bf16.mxu0 0
        %1783 = vmatpush1.bf16.msra.mxu0 %v1761
        %1784 = vmatprep.subr.bf16.mxu0 0
        %1785 = vmatpush1.bf16.msra.mxu0 %v1760
        %1786 = vmatprep.subr.bf16.mxu0 0
        %1787 = vmatpush2.bf16.msra.mxu0 0
        %1788 = vmatprep.subr.bf16.mxu0 0
        %1789 = vmatpush2.bf16.msra.mxu0 0
        %1790 = vmatprep.subr.bf16.mxu0 0
        %1791 = vmatpush2.bf16.msra.mxu0 0
        %1792 = vmatprep.subr.bf16.mxu0 0
        %1793 = vmatpush2.bf16.msra.mxu0 0
        %1794 = vmatprep.subr.bf16.mxu0 0
        %1795 = vmatpush2.bf16.msra.mxu0 0
        %1796 = vmatprep.subr.bf16.mxu0 0
        %1797 = vmatpush2.bf16.msra.mxu0 0
        %1798 = vmatprep.subr.bf16.mxu0 0
        %1799 = vmatpush2.bf16.msra.mxu0 0
        %1800 = vmatprep.subr.bf16.mxu0 0
        %1801 = vmatpush2.bf16.msra.mxu0 0
        %1802 = vmatprep.mubr.bf16.mxu0 0
        %1803 = vmatmul.mubr.bf16.gmra.mxu0 %v1765
        %v1804 = vpop.f32.mrf.mxu0
        %v1805 = vadd.f32 %v1738, %v1804
        %v1806 = vpop.f32.mrf.mxu0
        %v1807 = vpop.f32.mrf.mxu0
        %v1808 = vadd.f32 %v1741, %v1807
        %v1809 = vpop.f32.mrf.mxu0
        %1810 = vmatprep.mubr.bf16.mxu0 0
        %1811 = vmatmul.mubr.bf16.gmra.mxu0 %v1768
        %v1812 = vpop.f32.mrf.mxu0
        %v1813 = vadd.f32 %v1746, %v1812
        %v1814 = vpop.f32.mrf.mxu0
        %v1815 = vpop.f32.mrf.mxu0
        %v1816 = vadd.f32 %v1749, %v1815
        %v1817 = vpop.f32.mrf.mxu0
        %1818 = vdwg.mxu0
        %1819 = vrot.lane.b32.xlu0 %v1314, 64
        %v1820 = vpop.permute.xlu0 %1819
        %1821 = vrot.lane.b32.xlu0 %v1317, 64
        %v1822 = vpop.permute.xlu0 %1821
        %1823 = vrot.lane.b32.xlu0 %v1315, 64
        %v1824 = vpop.permute.xlu0 %1823
        %1825 = vrot.lane.b32.xlu0 %v1318, 64
        %v1826 = vpop.permute.xlu0 %1825
        %v1828 = vsel %vm1336, %v1820, 0
        %v1831 = vsel %vm1336, %v1822, 0
        %v1834 = vsel %vm1336, %v1824, 0
        %v1837 = vsel %vm1336, %v1826, 0
        %1839 = vmatprep.subr.bf16.mxu0 0
        %1840 = vmatpush1.bf16.xpose.msra.mxu0 0
        %1841 = vmatprep.subr.bf16.mxu0 0
        %1842 = vmatpush1.bf16.xpose.msra.mxu0 0
        %1843 = vmatprep.subr.bf16.mxu0 0
        %1844 = vmatpush1.bf16.xpose.msra.mxu0 0
        %1845 = vmatprep.subr.bf16.mxu0 0
        %1846 = vmatpush1.bf16.xpose.msra.mxu0 0
        %1847 = vmatprep.subr.bf16.mxu0 0
        %1848 = vmatpush1.bf16.xpose.msra.mxu0 0
        %1849 = vmatprep.subr.bf16.mxu0 0
        %1850 = vmatpush1.bf16.xpose.msra.mxu0 0
        %1851 = vmatprep.subr.bf16.mxu0 0
        %1852 = vmatpush1.bf16.xpose.msra.mxu0 %v1837
        %1853 = vmatprep.subr.bf16.mxu0 0
        %1854 = vmatpush1.bf16.xpose.msra.mxu0 %v1834
        %1855 = vmatprep.subr.bf16.mxu0 0
        %1856 = vmatpush2.bf16.xpose.msra.mxu0 0
        %1857 = vmatprep.subr.bf16.mxu0 0
        %1858 = vmatpush2.bf16.xpose.msra.mxu0 0
        %1859 = vmatprep.subr.bf16.mxu0 0
        %1860 = vmatpush2.bf16.xpose.msra.mxu0 0
        %1861 = vmatprep.subr.bf16.mxu0 0
        %1862 = vmatpush2.bf16.xpose.msra.mxu0 0
        %1863 = vmatprep.subr.bf16.mxu0 0
        %1864 = vmatpush2.bf16.xpose.msra.mxu0 0
        %1865 = vmatprep.subr.bf16.mxu0 0
        %1866 = vmatpush2.bf16.xpose.msra.mxu0 0
        %1867 = vmatprep.subr.bf16.mxu0 0
        %1868 = vmatpush2.bf16.xpose.msra.mxu0 0
        %1869 = vmatprep.subr.bf16.mxu0 0
        %1870 = vmatpush2.bf16.xpose.msra.mxu0 0
        %1871 = vmatprep.mubr.bf16.mxu0 0
        %1872 = vmatmul.mubr.bf16.gmra.mxu0 %v1828
        %v1873 = vpop.f32.mrf.mxu0
        %v1874 = vadd.f32 %v1029, %v1873
        %v1875 = vpop.f32.mrf.mxu0
        %v1876 = vpop.f32.mrf.mxu0
        %v1877 = vadd.f32 %v1030, %v1876
        %v1878 = vpop.f32.mrf.mxu0
        %1879 = vmatprep.mubr.bf16.mxu0 0
        %1880 = vmatmul.mubr.bf16.gmra.mxu0 %v1831
        %v1881 = vpop.f32.mrf.mxu0
        %v1882 = vadd.f32 %v1031, %v1881
        %v1883 = vpop.f32.mrf.mxu0
        %v1884 = vpop.f32.mrf.mxu0
        %v1885 = vadd.f32 %v1032, %v1884
        %v1886 = vpop.f32.mrf.mxu0
        %1887 = vdwg.mxu0
        %v1888 = vsel %vm1336, %v1874, -inf
        %1889 = vmax.xlane.f32.xlu0 %v1888
        %v1890 = vpop.xlane.xlu0 %1889
        %v1891 = vsel %vm1336, %v1877, -inf
        %1892 = vmax.xlane.f32.xlu0 %v1891
        %v1893 = vpop.xlane.xlu0 %1892
        %v1894 = vsel %vm1336, %v1882, -inf
        %1895 = vmax.xlane.f32.xlu0 %v1894
        %v1896 = vpop.xlane.xlu0 %1895
        %v1897 = vsel %vm1336, %v1885, -inf
        %1898 = vmax.xlane.f32.xlu0 %v1897
        %v1899 = vpop.xlane.xlu0 %1898
        %v1900 = vsub.f32 %v1874, %v1890
        %v1901 = vsub.f32 %v1877, %v1893
        %v1902 = vsub.f32 %v1882, %v1896
        %v1903 = vsub.f32 %v1885, %v1899
        %v1904 = vmul.f32 %v1900, 1.442695
        %v1905 = vpow.pop %v1904
        %v1906 = vmul.f32 %v1901, 1.442695
        %v1907 = vpow.pop %v1906
        %v1908 = vmul.f32 %v1902, 1.442695
        %v1909 = vpow.pop %v1908
        %v1910 = vmul.f32 %v1903, 1.442695
        %v1911 = vpow.pop %v1910
        %v1912 = vsel %vm1336, %v1905, 0.0
        %1913 = vadd.xlane.f32.xlu0 %v1912
        %v1914 = vpop.xlane.xlu0 %1913
        %v1915 = vsel %vm1336, %v1907, 0.0
        %1916 = vadd.xlane.f32.xlu0 %v1915
        %v1917 = vpop.xlane.xlu0 %1916
        %v1918 = vsel %vm1336, %v1909, 0.0
        %1919 = vadd.xlane.f32.xlu0 %v1918
        %v1920 = vpop.xlane.xlu0 %1919
        %v1921 = vsel %vm1336, %v1911, 0.0
        %1922 = vadd.xlane.f32.xlu0 %v1921
        %v1923 = vpop.xlane.xlu0 %1922
        %v1924 = vrcp.pop %v1914
        %v1925 = vrcp.pop %v1917
        %v1926 = vrcp.pop %v1920
        %v1927 = vrcp.pop %v1923
        %v1928 = vmul.f32 %v1905, %v1924
        %v1929 = vmul.f32 %v1907, %v1925
        %v1930 = vmul.f32 %v1909, %v1926
        %v1931 = vmul.f32 %v1911, %v1927
        %v1932 = vpack.c.bf16 %v1929, %v1928
        %v1933 = vpack.c.bf16 %v1931, %v1930
        %1934 = vrot.lane.b32.xlu0 %v1316, 64
        %v1935 = vpop.permute.xlu0 %1934
        %1936 = vrot.lane.b32.xlu0 %v1319, 64
        %v1937 = vpop.permute.xlu0 %1936
        %v1941 = vsel %vm1336, %v1932, 0
        %v1944 = vsel %vm1336, %v1933, 0
        %1946 = vmatprep.subr.bf16.mxu0 0
        %1947 = vmatpush1.bf16.msra.mxu0 0
        %1948 = vmatprep.subr.bf16.mxu0 0
        %1949 = vmatpush1.bf16.msra.mxu0 0
        %1950 = vmatprep.subr.bf16.mxu0 0
        %1951 = vmatpush1.bf16.msra.mxu0 0
        %1952 = vmatprep.subr.bf16.mxu0 0
        %1953 = vmatpush1.bf16.msra.mxu0 0
        %1954 = vmatprep.subr.bf16.mxu0 0
        %1955 = vmatpush1.bf16.msra.mxu0 0
        %1956 = vmatprep.subr.bf16.mxu0 0
        %1957 = vmatpush1.bf16.msra.mxu0 0
        %1958 = vmatprep.subr.bf16.mxu0 0
        %1959 = vmatpush1.bf16.msra.mxu0 %v1937
        %1960 = vmatprep.subr.bf16.mxu0 0
        %1961 = vmatpush1.bf16.msra.mxu0 %v1935
        %1962 = vmatprep.subr.bf16.mxu0 0
        %1963 = vmatpush2.bf16.msra.mxu0 0
        %1964 = vmatprep.subr.bf16.mxu0 0
        %1965 = vmatpush2.bf16.msra.mxu0 0
        %1966 = vmatprep.subr.bf16.mxu0 0
        %1967 = vmatpush2.bf16.msra.mxu0 0
        %1968 = vmatprep.subr.bf16.mxu0 0
        %1969 = vmatpush2.bf16.msra.mxu0 0
        %1970 = vmatprep.subr.bf16.mxu0 0
        %1971 = vmatpush2.bf16.msra.mxu0 0
        %1972 = vmatprep.subr.bf16.mxu0 0
        %1973 = vmatpush2.bf16.msra.mxu0 0
        %1974 = vmatprep.subr.bf16.mxu0 0
        %1975 = vmatpush2.bf16.msra.mxu0 0
        %1976 = vmatprep.subr.bf16.mxu0 0
        %1977 = vmatpush2.bf16.msra.mxu0 0
        %1978 = vmatprep.mubr.bf16.mxu0 0
        %1979 = vmatmul.mubr.bf16.gmra.mxu0 %v1941
        %v1980 = vpop.f32.mrf.mxu0
        %v1981 = vadd.f32 0.0, %v1980
        %v1982 = vpop.f32.mrf.mxu0
        %v1983 = vpop.f32.mrf.mxu0
        %v1984 = vadd.f32 0.0, %v1983
        %v1985 = vpop.f32.mrf.mxu0
        %1986 = vmatprep.mubr.bf16.mxu0 0
        %1987 = vmatmul.mubr.bf16.gmra.mxu0 %v1944
        %v1988 = vpop.f32.mrf.mxu0
        %v1989 = vadd.f32 0.0, %v1988
        %v1990 = vpop.f32.mrf.mxu0
        %v1991 = vpop.f32.mrf.mxu0
        %v1992 = vadd.f32 0.0, %v1991
        %v1993 = vpop.f32.mrf.mxu0
        %1994 = vdwg.mxu0
        %v1995 = vpack.c.bf16 %v1984, %v1981
        %v1996 = vpack.c.bf16 %v1992, %v1989
        %v2001 = vunpack.c.l.b16 %v1328
        %v2002 = vunpack.c.l.b16 %v1329
        %v2003 = vunpack.c.l.b16 %v1330
        %v2004 = vunpack.c.l.b16 %v1331
        %v2005 = vpack.c.b16 %v2002, %v2001
        %v2006 = vpack.c.b16 %v2004, %v2003
        %v2010 = vsel %vm1336, %v1995, 0
        %v2013 = vsel %vm1336, %v1996, 0
        %2015 = vmatprep.subr.bf16.mxu0 0
        %2016 = vmatpush1.bf16.msra.mxu0 0
        %2017 = vmatprep.subr.bf16.mxu0 0
        %2018 = vmatpush1.bf16.msra.mxu0 0
        %2019 = vmatprep.subr.bf16.mxu0 0
        %2020 = vmatpush1.bf16.msra.mxu0 0
        %2021 = vmatprep.subr.bf16.mxu0 0
        %2022 = vmatpush1.bf16.msra.mxu0 0
        %2023 = vmatprep.subr.bf16.mxu0 0
        %2024 = vmatpush1.bf16.msra.mxu0 0
        %2025 = vmatprep.subr.bf16.mxu0 0
        %2026 = vmatpush1.bf16.msra.mxu0 0
        %2027 = vmatprep.subr.bf16.mxu0 0
        %2028 = vmatpush1.bf16.msra.mxu0 %v2006
        %2029 = vmatprep.subr.bf16.mxu0 0
        %2030 = vmatpush1.bf16.msra.mxu0 %v2005
        %2031 = vmatprep.subr.bf16.mxu0 0
        %2032 = vmatpush2.bf16.msra.mxu0 0
        %2033 = vmatprep.subr.bf16.mxu0 0
        %2034 = vmatpush2.bf16.msra.mxu0 0
        %2035 = vmatprep.subr.bf16.mxu0 0
        %2036 = vmatpush2.bf16.msra.mxu0 0
        %2037 = vmatprep.subr.bf16.mxu0 0
        %2038 = vmatpush2.bf16.msra.mxu0 0
        %2039 = vmatprep.subr.bf16.mxu0 0
        %2040 = vmatpush2.bf16.msra.mxu0 0
        %2041 = vmatprep.subr.bf16.mxu0 0
        %2042 = vmatpush2.bf16.msra.mxu0 0
        %2043 = vmatprep.subr.bf16.mxu0 0
        %2044 = vmatpush2.bf16.msra.mxu0 0
        %2045 = vmatprep.subr.bf16.mxu0 0
        %2046 = vmatpush2.bf16.msra.mxu0 0
        %2047 = vmatprep.mubr.bf16.mxu0 0
        %2048 = vmatmul.mubr.bf16.gmra.mxu0 %v2010
        %v2049 = vpop.f32.mrf.mxu0
        %v2050 = vadd.f32 0.0, %v2049
        %v2051 = vpop.f32.mrf.mxu0
        %v2052 = vpop.f32.mrf.mxu0
        %v2053 = vadd.f32 0.0, %v2052
        %v2054 = vpop.f32.mrf.mxu0
        %2055 = vmatprep.mubr.bf16.mxu0 0
        %2056 = vmatmul.mubr.bf16.gmra.mxu0 %v2013
        %v2057 = vpop.f32.mrf.mxu0
        %v2058 = vadd.f32 0.0, %v2057
        %v2059 = vpop.f32.mrf.mxu0
        %v2060 = vpop.f32.mrf.mxu0
        %v2061 = vadd.f32 0.0, %v2060
        %v2062 = vpop.f32.mrf.mxu0
        %2063 = vdwg.mxu0
        %v2064 = vadd.f32 %v1805, %v2050
        %v2065 = vadd.f32 %v1808, %v2053
        %v2066 = vadd.f32 %v1813, %v2058
        %v2067 = vadd.f32 %v1816, %v2061
        %2068 = vrot.lane.b32.xlu0 %v1314, 32
        %v2069 = vpop.permute.xlu0 %2068
        %2070 = vrot.lane.b32.xlu0 %v1317, 32
        %v2071 = vpop.permute.xlu0 %2070
        %2072 = vrot.lane.b32.xlu0 %v1315, 32
        %v2073 = vpop.permute.xlu0 %2072
        %2074 = vrot.lane.b32.xlu0 %v1318, 32
        %v2075 = vpop.permute.xlu0 %2074
        %v2077 = vsel %vm1336, %v2069, 0
        %v2080 = vsel %vm1336, %v2071, 0
        %v2083 = vsel %vm1336, %v2073, 0
        %v2086 = vsel %vm1336, %v2075, 0
        %2088 = vmatprep.subr.bf16.mxu0 0
        %2089 = vmatpush1.bf16.xpose.msra.mxu0 0
        %2090 = vmatprep.subr.bf16.mxu0 0
        %2091 = vmatpush1.bf16.xpose.msra.mxu0 0
        %2092 = vmatprep.subr.bf16.mxu0 0
        %2093 = vmatpush1.bf16.xpose.msra.mxu0 0
        %2094 = vmatprep.subr.bf16.mxu0 0
        %2095 = vmatpush1.bf16.xpose.msra.mxu0 0
        %2096 = vmatprep.subr.bf16.mxu0 0
        %2097 = vmatpush1.bf16.xpose.msra.mxu0 0
        %2098 = vmatprep.subr.bf16.mxu0 0
        %2099 = vmatpush1.bf16.xpose.msra.mxu0 0
        %2100 = vmatprep.subr.bf16.mxu0 0
        %2101 = vmatpush1.bf16.xpose.msra.mxu0 %v2086
        %2102 = vmatprep.subr.bf16.mxu0 0
        %2103 = vmatpush1.bf16.xpose.msra.mxu0 %v2083
        %2104 = vmatprep.subr.bf16.mxu0 0
        %2105 = vmatpush2.bf16.xpose.msra.mxu0 0
        %2106 = vmatprep.subr.bf16.mxu0 0
        %2107 = vmatpush2.bf16.xpose.msra.mxu0 0
        %2108 = vmatprep.subr.bf16.mxu0 0
        %2109 = vmatpush2.bf16.xpose.msra.mxu0 0
        %2110 = vmatprep.subr.bf16.mxu0 0
        %2111 = vmatpush2.bf16.xpose.msra.mxu0 0
        %2112 = vmatprep.subr.bf16.mxu0 0
        %2113 = vmatpush2.bf16.xpose.msra.mxu0 0
        %2114 = vmatprep.subr.bf16.mxu0 0
        %2115 = vmatpush2.bf16.xpose.msra.mxu0 0
        %2116 = vmatprep.subr.bf16.mxu0 0
        %2117 = vmatpush2.bf16.xpose.msra.mxu0 0
        %2118 = vmatprep.subr.bf16.mxu0 0
        %2119 = vmatpush2.bf16.xpose.msra.mxu0 0
        %2120 = vmatprep.mubr.bf16.mxu0 0
        %2121 = vmatmul.mubr.bf16.gmra.mxu0 %v2077
        %v2122 = vpop.f32.mrf.mxu0
        %v2123 = vadd.f32 %v1029, %v2122
        %v2124 = vpop.f32.mrf.mxu0
        %v2125 = vpop.f32.mrf.mxu0
        %v2126 = vadd.f32 %v1030, %v2125
        %v2127 = vpop.f32.mrf.mxu0
        %2128 = vmatprep.mubr.bf16.mxu0 0
        %2129 = vmatmul.mubr.bf16.gmra.mxu0 %v2080
        %v2130 = vpop.f32.mrf.mxu0
        %v2131 = vadd.f32 %v1031, %v2130
        %v2132 = vpop.f32.mrf.mxu0
        %v2133 = vpop.f32.mrf.mxu0
        %v2134 = vadd.f32 %v1032, %v2133
        %v2135 = vpop.f32.mrf.mxu0
        %2136 = vdwg.mxu0
        %v2137 = vsel %vm1336, %v2123, -inf
        %2138 = vmax.xlane.f32.xlu0 %v2137
        %v2139 = vpop.xlane.xlu0 %2138
        %v2140 = vsel %vm1336, %v2126, -inf
        %2141 = vmax.xlane.f32.xlu0 %v2140
        %v2142 = vpop.xlane.xlu0 %2141
        %v2143 = vsel %vm1336, %v2131, -inf
        %2144 = vmax.xlane.f32.xlu0 %v2143
        %v2145 = vpop.xlane.xlu0 %2144
        %v2146 = vsel %vm1336, %v2134, -inf
        %2147 = vmax.xlane.f32.xlu0 %v2146
        %v2148 = vpop.xlane.xlu0 %2147
        %v2149 = vsub.f32 %v2123, %v2139
        %v2150 = vsub.f32 %v2126, %v2142
        %v2151 = vsub.f32 %v2131, %v2145
        %v2152 = vsub.f32 %v2134, %v2148
        %v2153 = vmul.f32 %v2149, 1.442695
        %v2154 = vpow.pop %v2153
        %v2155 = vmul.f32 %v2150, 1.442695
        %v2156 = vpow.pop %v2155
        %v2157 = vmul.f32 %v2151, 1.442695
        %v2158 = vpow.pop %v2157
        %v2159 = vmul.f32 %v2152, 1.442695
        %v2160 = vpow.pop %v2159
        %v2161 = vsel %vm1336, %v2154, 0.0
        %2162 = vadd.xlane.f32.xlu0 %v2161
        %v2163 = vpop.xlane.xlu0 %2162
        %v2164 = vsel %vm1336, %v2156, 0.0
        %2165 = vadd.xlane.f32.xlu0 %v2164
        %v2166 = vpop.xlane.xlu0 %2165
        %v2167 = vsel %vm1336, %v2158, 0.0
        %2168 = vadd.xlane.f32.xlu0 %v2167
        %v2169 = vpop.xlane.xlu0 %2168
        %v2170 = vsel %vm1336, %v2160, 0.0
        %2171 = vadd.xlane.f32.xlu0 %v2170
        %v2172 = vpop.xlane.xlu0 %2171
        %v2173 = vrcp.pop %v2163
        %v2174 = vrcp.pop %v2166
        %v2175 = vrcp.pop %v2169
        %v2176 = vrcp.pop %v2172
        %v2177 = vmul.f32 %v2154, %v2173
        %v2178 = vmul.f32 %v2156, %v2174
        %v2179 = vmul.f32 %v2158, %v2175
        %v2180 = vmul.f32 %v2160, %v2176
        %v2181 = vpack.c.bf16 %v2178, %v2177
        %v2182 = vpack.c.bf16 %v2180, %v2179
        %2183 = vrot.lane.b32.xlu0 %v1316, 32
        %v2184 = vpop.permute.xlu0 %2183
        %2185 = vrot.lane.b32.xlu0 %v1319, 32
        %v2186 = vpop.permute.xlu0 %2185
        %v2190 = vsel %vm1336, %v2181, 0
        %v2193 = vsel %vm1336, %v2182, 0
        %2195 = vmatprep.subr.bf16.mxu0 0
        %2196 = vmatpush1.bf16.msra.mxu0 0
        %2197 = vmatprep.subr.bf16.mxu0 0
        %2198 = vmatpush1.bf16.msra.mxu0 0
        %2199 = vmatprep.subr.bf16.mxu0 0
        %2200 = vmatpush1.bf16.msra.mxu0 0
        %2201 = vmatprep.subr.bf16.mxu0 0
        %2202 = vmatpush1.bf16.msra.mxu0 0
        %2203 = vmatprep.subr.bf16.mxu0 0
        %2204 = vmatpush1.bf16.msra.mxu0 0
        %2205 = vmatprep.subr.bf16.mxu0 0
        %2206 = vmatpush1.bf16.msra.mxu0 0
        %2207 = vmatprep.subr.bf16.mxu0 0
        %2208 = vmatpush1.bf16.msra.mxu0 %v2186
        %2209 = vmatprep.subr.bf16.mxu0 0
        %2210 = vmatpush1.bf16.msra.mxu0 %v2184
        %2211 = vmatprep.subr.bf16.mxu0 0
        %2212 = vmatpush2.bf16.msra.mxu0 0
        %2213 = vmatprep.subr.bf16.mxu0 0
        %2214 = vmatpush2.bf16.msra.mxu0 0
        %2215 = vmatprep.subr.bf16.mxu0 0
        %2216 = vmatpush2.bf16.msra.mxu0 0
        %2217 = vmatprep.subr.bf16.mxu0 0
        %2218 = vmatpush2.bf16.msra.mxu0 0
        %2219 = vmatprep.subr.bf16.mxu0 0
        %2220 = vmatpush2.bf16.msra.mxu0 0
        %2221 = vmatprep.subr.bf16.mxu0 0
        %2222 = vmatpush2.bf16.msra.mxu0 0
        %2223 = vmatprep.subr.bf16.mxu0 0
        %2224 = vmatpush2.bf16.msra.mxu0 0
        %2225 = vmatprep.subr.bf16.mxu0 0
        %2226 = vmatpush2.bf16.msra.mxu0 0
        %2227 = vmatprep.mubr.bf16.mxu0 0
        %2228 = vmatmul.mubr.bf16.gmra.mxu0 %v2190
        %v2229 = vpop.f32.mrf.mxu0
        %v2230 = vadd.f32 0.0, %v2229
        %v2231 = vpop.f32.mrf.mxu0
        %v2232 = vpop.f32.mrf.mxu0
        %v2233 = vadd.f32 0.0, %v2232
        %v2234 = vpop.f32.mrf.mxu0
        %2235 = vmatprep.mubr.bf16.mxu0 0
        %2236 = vmatmul.mubr.bf16.gmra.mxu0 %v2193
        %v2237 = vpop.f32.mrf.mxu0
        %v2238 = vadd.f32 0.0, %v2237
        %v2239 = vpop.f32.mrf.mxu0
        %v2240 = vpop.f32.mrf.mxu0
        %v2241 = vadd.f32 0.0, %v2240
        %v2242 = vpop.f32.mrf.mxu0
        %2243 = vdwg.mxu0
        %v2244 = vpack.c.bf16 %v2233, %v2230
        %v2245 = vpack.c.bf16 %v2241, %v2238
        %v2250 = vunpack.c.l.b16 %v1332
        %v2251 = vunpack.c.l.b16 %v1333
        %v2252 = vunpack.c.l.b16 %v1334
        %v2253 = vunpack.c.l.b16 %v1335
        %v2254 = vpack.c.b16 %v2251, %v2250
        %v2255 = vpack.c.b16 %v2253, %v2252
        %v2259 = vsel %vm1336, %v2244, 0
        %v2262 = vsel %vm1336, %v2245, 0
        %2264 = vmatprep.subr.bf16.mxu0 0
        %2265 = vmatpush1.bf16.msra.mxu0 0
        %2266 = vmatprep.subr.bf16.mxu0 0
        %2267 = vmatpush1.bf16.msra.mxu0 0
        %2268 = vmatprep.subr.bf16.mxu0 0
        %2269 = vmatpush1.bf16.msra.mxu0 0
        %2270 = vmatprep.subr.bf16.mxu0 0
        %2271 = vmatpush1.bf16.msra.mxu0 0
        %2272 = vmatprep.subr.bf16.mxu0 0
        %2273 = vmatpush1.bf16.msra.mxu0 0
        %2274 = vmatprep.subr.bf16.mxu0 0
        %2275 = vmatpush1.bf16.msra.mxu0 0
        %2276 = vmatprep.subr.bf16.mxu0 0
        %2277 = vmatpush1.bf16.msra.mxu0 %v2255
        %2278 = vmatprep.subr.bf16.mxu0 0
        %2279 = vmatpush1.bf16.msra.mxu0 %v2254
        %2280 = vmatprep.subr.bf16.mxu0 0
        %2281 = vmatpush2.bf16.msra.mxu0 0
        %2282 = vmatprep.subr.bf16.mxu0 0
        %2283 = vmatpush2.bf16.msra.mxu0 0
        %2284 = vmatprep.subr.bf16.mxu0 0
        %2285 = vmatpush2.bf16.msra.mxu0 0
        %2286 = vmatprep.subr.bf16.mxu0 0
        %2287 = vmatpush2.bf16.msra.mxu0 0
        %2288 = vmatprep.subr.bf16.mxu0 0
        %2289 = vmatpush2.bf16.msra.mxu0 0
        %2290 = vmatprep.subr.bf16.mxu0 0
        %2291 = vmatpush2.bf16.msra.mxu0 0
        %2292 = vmatprep.subr.bf16.mxu0 0
        %2293 = vmatpush2.bf16.msra.mxu0 0
        %2294 = vmatprep.subr.bf16.mxu0 0
        %2295 = vmatpush2.bf16.msra.mxu0 0
        %2296 = vmatprep.mubr.bf16.mxu0 0
        %2297 = vmatmul.mubr.bf16.gmra.mxu0 %v2259
        %v2298 = vpop.f32.mrf.mxu0
        %v2299 = vadd.f32 0.0, %v2298
        %v2300 = vpop.f32.mrf.mxu0
        %v2301 = vpop.f32.mrf.mxu0
        %v2302 = vadd.f32 0.0, %v2301
        %v2303 = vpop.f32.mrf.mxu0
        %2304 = vmatprep.mubr.bf16.mxu0 0
        %2305 = vmatmul.mubr.bf16.gmra.mxu0 %v2262
        %v2306 = vpop.f32.mrf.mxu0
        %v2307 = vadd.f32 0.0, %v2306
        %v2308 = vpop.f32.mrf.mxu0
        %v2309 = vpop.f32.mrf.mxu0
        %v2310 = vadd.f32 0.0, %v2309
        %v2311 = vpop.f32.mrf.mxu0
        %2312 = vdwg.mxu0
        %v2313 = vadd.f32 %v2064, %v2299
        %v2314 = vadd.f32 %v2065, %v2302
        %v2315 = vadd.f32 %v2066, %v2307
        %v2316 = vadd.f32 %v2067, %v2310
        %v2317 = vadd.f32 %v1025, %v2313
        %v2318 = vadd.f32 %v1026, %v2314
        %v2319 = vadd.f32 %v1027, %v2315
        %v2320 = vadd.f32 %v1028, %v2316
        %v2321 = vld [vmem:[%s925] sm:$0x1]
        %v2323 = vlaneseq
        %v2324 = vshrl.u32 %v2323, 7
        %v2325 = vsub.s32 0, %v2324
        %v2326 = vrot.slane %v2321, %v2325
        %v2328 = vadd.f32 %v2317, %v2326
        %v2329 = vadd.f32 %v2318, %v2326
        %v2330 = vadd.f32 %v2319, %v2326
        %v2331 = vadd.f32 %v2320, %v2326
        %v2332 = vld [vmem:[%s928] sm:$0x1]
        %v2333 = vld [vmem:[%s931] sm:$0x1]
        %2334 = vadd.xlane.f32.xlu0 %v2328
        %v2335 = vpop.xlane.xlu0 %2334
        %2336 = vadd.xlane.f32.xlu0 %v2329
        %v2337 = vpop.xlane.xlu0 %2336
        %2338 = vadd.xlane.f32.xlu0 %v2330
        %v2339 = vpop.xlane.xlu0 %2338
        %2340 = vadd.xlane.f32.xlu0 %v2331
        %v2341 = vpop.xlane.xlu0 %2340
        %v2342 = vrcp.pop 128.0
        %v2343 = vmul.f32 %v2335, %v2342
        %v2344 = vmul.f32 %v2337, %v2342
        %v2345 = vmul.f32 %v2339, %v2342
        %v2346 = vmul.f32 %v2341, %v2342
        %v2347 = vsub.f32 %v2328, %v2343
        %v2348 = vsub.f32 %v2329, %v2344
        %v2349 = vsub.f32 %v2330, %v2345
        %v2350 = vsub.f32 %v2331, %v2346
        %v2351 = vmul.f32 %v2347, %v2347
        %v2352 = vmul.f32 %v2348, %v2348
        %v2353 = vmul.f32 %v2349, %v2349
        %v2354 = vmul.f32 %v2350, %v2350
        %2355 = vadd.xlane.f32.xlu0 %v2351
        %v2356 = vpop.xlane.xlu0 %2355
        %2357 = vadd.xlane.f32.xlu0 %v2352
        %v2358 = vpop.xlane.xlu0 %2357
        %2359 = vadd.xlane.f32.xlu0 %v2353
        %v2360 = vpop.xlane.xlu0 %2359
        %2361 = vadd.xlane.f32.xlu0 %v2354
        %v2362 = vpop.xlane.xlu0 %2361
        %v2363 = vmul.f32 %v2356, %v2342
        %v2364 = vmul.f32 %v2358, %v2342
        %v2365 = vmul.f32 %v2360, %v2342
        %v2366 = vmul.f32 %v2362, %v2342
        %v2367 = vadd.f32 %v2363, 1e-05
        %v2368 = vadd.f32 %v2364, 1e-05
        %v2369 = vadd.f32 %v2365, 1e-05
        %v2370 = vadd.f32 %v2366, 1e-05
        %v2371 = vrsqrt.pop %v2367
        %v2372 = vrsqrt.pop %v2368
        %v2373 = vrsqrt.pop %v2369
        %v2374 = vrsqrt.pop %v2370
        %v2375 = vmul.f32 %v2347, %v2371
        %v2376 = vmul.f32 %v2348, %v2372
        %v2377 = vmul.f32 %v2349, %v2373
        %v2378 = vmul.f32 %v2350, %v2374
        %v2380 = vlaneseq
        %v2381 = vshrl.u32 %v2380, 7
        %v2382 = vsub.s32 0, %v2381
        %v2383 = vrot.slane %v2332, %v2382
        %v2385 = vmul.f32 %v2375, %v2383
        %v2386 = vmul.f32 %v2376, %v2383
        %v2387 = vmul.f32 %v2377, %v2383
        %v2388 = vmul.f32 %v2378, %v2383
        %v2390 = vlaneseq
        %v2391 = vshrl.u32 %v2390, 7
        %v2392 = vsub.s32 0, %v2391
        %v2393 = vrot.slane %v2333, %v2392
        %v2395 = vadd.f32 %v2385, %v2393
        %v2396 = vadd.f32 %v2386, %v2393
        %v2397 = vadd.f32 %v2387, %v2393
        %v2398 = vadd.f32 %v2388, %v2393
        %v2399 = vpack.c.bf16 %v2396, %v2395
        %v2400 = vpack.c.bf16 %v2398, %v2397
        %v2401 = vld [vmem:[%s809] sm:$0xff]
        %v2402 = vld [vmem:[%s809 + $0x8] sm:$0xff]
        %v2403 = vld [vmem:[%s809 + $0x10] sm:$0xff]
        %v2404 = vld [vmem:[%s809 + $0x18] sm:$0xff]
        %v2405 = vld [vmem:[%s809 + $0x20] sm:$0xff]
        %v2406 = vld [vmem:[%s809 + $0x28] sm:$0xff]
        %v2407 = vld [vmem:[%s809 + $0x30] sm:$0xff]
        %v2408 = vld [vmem:[%s809 + $0x38] sm:$0xff]
        %v2409 = vld [vmem:[%s809 + $0x40] sm:$0xff]
        %v2410 = vld [vmem:[%s809 + $0x48] sm:$0xff]
        %v2411 = vld [vmem:[%s809 + $0x50] sm:$0xff]
        %v2412 = vld [vmem:[%s809 + $0x58] sm:$0xff]
        %v2413 = vld [vmem:[%s809 + $0x60] sm:$0xff]
        %v2414 = vld [vmem:[%s809 + $0x68] sm:$0xff]
        %v2415 = vld [vmem:[%s809 + $0x70] sm:$0xff]
        %v2416 = vld [vmem:[%s809 + $0x78] sm:$0xff]
        %v2417 = vld [vmem:[%s935] sm:$0x3]
        %v2419 = vlaneseq
        %v2420 = vshrl.u32 %v2419, 7
        %v2421 = vsub.s32 0, %v2420
        %v2422 = vrot.slane %v2417, %v2421
        %v2423 = vlaneseq
        %v2424 = vshrl.u32 %v2423, 7
        %v2425 = vsub.s32 1, %v2424
        %v2426 = vrot.slane %v2417, %v2425
        %v2445 = vunpack.c.l.b16 %v2401
        %v2446 = vunpack.c.h.b16 %v2401
        %v2447 = vunpack.c.l.b16 %v2402
        %v2448 = vunpack.c.h.b16 %v2402
        %v2449 = vunpack.c.l.b16 %v2403
        %v2450 = vunpack.c.h.b16 %v2403
        %v2451 = vunpack.c.l.b16 %v2404
        %v2452 = vunpack.c.h.b16 %v2404
        %v2453 = vunpack.c.l.b16 %v2405
        %v2454 = vunpack.c.h.b16 %v2405
        %v2455 = vunpack.c.l.b16 %v2406
        %v2456 = vunpack.c.h.b16 %v2406
        %v2457 = vunpack.c.l.b16 %v2407
        %v2458 = vunpack.c.h.b16 %v2407
        %v2459 = vunpack.c.l.b16 %v2408
        %v2460 = vunpack.c.h.b16 %v2408
        %v2461 = vunpack.c.l.b16 %v2409
        %v2462 = vunpack.c.h.b16 %v2409
        %v2463 = vunpack.c.l.b16 %v2410
        %v2464 = vunpack.c.h.b16 %v2410
        %v2465 = vunpack.c.l.b16 %v2411
        %v2466 = vunpack.c.h.b16 %v2411
        %v2467 = vunpack.c.l.b16 %v2412
        %v2468 = vunpack.c.h.b16 %v2412
        %v2469 = vunpack.c.l.b16 %v2413
        %v2470 = vunpack.c.h.b16 %v2413
        %v2471 = vunpack.c.l.b16 %v2414
        %v2472 = vunpack.c.h.b16 %v2414
        %v2473 = vunpack.c.l.b16 %v2415
        %v2474 = vunpack.c.h.b16 %v2415
        %v2475 = vunpack.c.l.b16 %v2416
        %v2476 = vunpack.c.h.b16 %v2416
        %v2477 = vpack.c.b16 %v2447, %v2445
        %v2478 = vpack.c.b16 %v2448, %v2446
        %v2479 = vpack.c.b16 %v2451, %v2449
        %v2480 = vpack.c.b16 %v2452, %v2450
        %v2481 = vpack.c.b16 %v2455, %v2453
        %v2482 = vpack.c.b16 %v2456, %v2454
        %v2483 = vpack.c.b16 %v2459, %v2457
        %v2484 = vpack.c.b16 %v2460, %v2458
        %v2485 = vpack.c.b16 %v2463, %v2461
        %v2486 = vpack.c.b16 %v2464, %v2462
        %v2487 = vpack.c.b16 %v2467, %v2465
        %v2488 = vpack.c.b16 %v2468, %v2466
        %v2489 = vpack.c.b16 %v2471, %v2469
        %v2490 = vpack.c.b16 %v2472, %v2470
        %v2491 = vpack.c.b16 %v2475, %v2473
        %v2492 = vpack.c.b16 %v2476, %v2474
        %2509 = vmatprep.subr.bf16.mxu0 %v2492
        %2510 = vmatpush1.bf16.msra.mxu0 %v2491
        %2511 = vmatprep.subr.bf16.mxu0 %v2490
        %2512 = vmatpush1.bf16.msra.mxu0 %v2489
        %2513 = vmatprep.subr.bf16.mxu0 %v2488
        %2514 = vmatpush1.bf16.msra.mxu0 %v2487
        %2515 = vmatprep.subr.bf16.mxu0 %v2486
        %2516 = vmatpush1.bf16.msra.mxu0 %v2485
        %2517 = vmatprep.subr.bf16.mxu0 %v2484
        %2518 = vmatpush1.bf16.msra.mxu0 %v2483
        %2519 = vmatprep.subr.bf16.mxu0 %v2482
        %2520 = vmatpush1.bf16.msra.mxu0 %v2481
        %2521 = vmatprep.subr.bf16.mxu0 %v2480
        %2522 = vmatpush1.bf16.msra.mxu0 %v2479
        %2523 = vmatprep.subr.bf16.mxu0 %v2478
        %2524 = vmatpush1.bf16.msra.mxu0 %v2477
        %2525 = vmatprep.subr.bf16.mxu0 0
        %2526 = vmatpush2.bf16.msra.mxu0 0
        %2527 = vmatprep.subr.bf16.mxu0 0
        %2528 = vmatpush2.bf16.msra.mxu0 0
        %2529 = vmatprep.subr.bf16.mxu0 0
        %2530 = vmatpush2.bf16.msra.mxu0 0
        %2531 = vmatprep.subr.bf16.mxu0 0
        %2532 = vmatpush2.bf16.msra.mxu0 0
        %2533 = vmatprep.subr.bf16.mxu0 0
        %2534 = vmatpush2.bf16.msra.mxu0 0
        %2535 = vmatprep.subr.bf16.mxu0 0
        %2536 = vmatpush2.bf16.msra.mxu0 0
        %2537 = vmatprep.subr.bf16.mxu0 0
        %2538 = vmatpush2.bf16.msra.mxu0 0
        %2539 = vmatprep.subr.bf16.mxu0 0
        %2540 = vmatpush2.bf16.msra.mxu0 0
        %2541 = vmatprep.mubr.bf16.mxu0 0
        %2542 = vmatmul.mubr.bf16.gmra.mxu0 %v2399
        %v2543 = vpop.f32.mrf.mxu0
        %v2544 = vadd.f32 %v2422, %v2543
        %v2545 = vpop.f32.mrf.mxu0
        %v2546 = vadd.f32 %v2426, %v2545
        %v2547 = vpop.f32.mrf.mxu0
        %v2548 = vadd.f32 %v2422, %v2547
        %v2549 = vpop.f32.mrf.mxu0
        %v2550 = vadd.f32 %v2426, %v2549
        %2551 = vmatprep.mubr.bf16.mxu0 0
        %2552 = vmatmul.mubr.bf16.gmra.mxu0 %v2400
        %v2553 = vpop.f32.mrf.mxu0
        %v2554 = vadd.f32 %v2422, %v2553
        %v2555 = vpop.f32.mrf.mxu0
        %v2556 = vadd.f32 %v2426, %v2555
        %v2557 = vpop.f32.mrf.mxu0
        %v2558 = vadd.f32 %v2422, %v2557
        %v2559 = vpop.f32.mrf.mxu0
        %v2560 = vadd.f32 %v2426, %v2559
        %2561 = vdwg.mxu0
        %v2562 = vmul.f32 %v2544, 0.5
        %v2563 = vmul.f32 %v2546, 0.5
        %v2564 = vmul.f32 %v2548, 0.5
        %v2565 = vmul.f32 %v2550, 0.5
        %v2566 = vmul.f32 %v2554, 0.5
        %v2567 = vmul.f32 %v2556, 0.5
        %v2568 = vmul.f32 %v2558, 0.5
        %v2569 = vmul.f32 %v2560, 0.5
        %v2570 = vmul.f32 %v2544, 0.044715
        %v2571 = vmul.f32 %v2546, 0.044715
        %v2572 = vmul.f32 %v2548, 0.044715
        %v2573 = vmul.f32 %v2550, 0.044715
        %v2574 = vmul.f32 %v2554, 0.044715
        %v2575 = vmul.f32 %v2556, 0.044715
        %v2576 = vmul.f32 %v2558, 0.044715
        %v2577 = vmul.f32 %v2560, 0.044715
        %v2578 = vmul.f32 %v2570, %v2544
        %v2579 = vmul.f32 %v2571, %v2546
        %v2580 = vmul.f32 %v2572, %v2548
        %v2581 = vmul.f32 %v2573, %v2550
        %v2582 = vmul.f32 %v2574, %v2554
        %v2583 = vmul.f32 %v2575, %v2556
        %v2584 = vmul.f32 %v2576, %v2558
        %v2585 = vmul.f32 %v2577, %v2560
        %v2586 = vmul.f32 %v2578, %v2544
        %v2587 = vmul.f32 %v2579, %v2546
        %v2588 = vmul.f32 %v2580, %v2548
        %v2589 = vmul.f32 %v2581, %v2550
        %v2590 = vmul.f32 %v2582, %v2554
        %v2591 = vmul.f32 %v2583, %v2556
        %v2592 = vmul.f32 %v2584, %v2558
        %v2593 = vmul.f32 %v2585, %v2560
        %v2594 = vadd.f32 %v2544, %v2586
        %v2595 = vadd.f32 %v2546, %v2587
        %v2596 = vadd.f32 %v2548, %v2588
        %v2597 = vadd.f32 %v2550, %v2589
        %v2598 = vadd.f32 %v2554, %v2590
        %v2599 = vadd.f32 %v2556, %v2591
        %v2600 = vadd.f32 %v2558, %v2592
        %v2601 = vadd.f32 %v2560, %v2593
        %v2602 = vmul.f32 %v2594, 0.7978846
        %v2603 = vmul.f32 %v2595, 0.7978846
        %v2604 = vmul.f32 %v2596, 0.7978846
        %v2605 = vmul.f32 %v2597, 0.7978846
        %v2606 = vmul.f32 %v2598, 0.7978846
        %v2607 = vmul.f32 %v2599, 0.7978846
        %v2608 = vmul.f32 %v2600, 0.7978846
        %v2609 = vmul.f32 %v2601, 0.7978846
        %v2610 = vtanh.pop %v2602
        %v2611 = vtanh.pop %v2603
        %v2612 = vtanh.pop %v2604
        %v2613 = vtanh.pop %v2605
        %v2614 = vtanh.pop %v2606
        %v2615 = vtanh.pop %v2607
        %v2616 = vtanh.pop %v2608
        %v2617 = vtanh.pop %v2609
        %v2618 = vadd.f32 %v2610, 1.0
        %v2619 = vadd.f32 %v2611, 1.0
        %v2620 = vadd.f32 %v2612, 1.0
        %v2621 = vadd.f32 %v2613, 1.0
        %v2622 = vadd.f32 %v2614, 1.0
        %v2623 = vadd.f32 %v2615, 1.0
        %v2624 = vadd.f32 %v2616, 1.0
        %v2625 = vadd.f32 %v2617, 1.0
        %v2626 = vmul.f32 %v2562, %v2618
        %v2627 = vmul.f32 %v2563, %v2619
        %v2628 = vmul.f32 %v2564, %v2620
        %v2629 = vmul.f32 %v2565, %v2621
        %v2630 = vmul.f32 %v2566, %v2622
        %v2631 = vmul.f32 %v2567, %v2623
        %v2632 = vmul.f32 %v2568, %v2624
        %v2633 = vmul.f32 %v2569, %v2625
        %v2634 = vpack.c.bf16 %v2628, %v2626
        %v2635 = vpack.c.bf16 %v2629, %v2627
        %v2636 = vpack.c.bf16 %v2632, %v2630
        %v2637 = vpack.c.bf16 %v2633, %v2631
        %v2638 = vld [vmem:[%s818] sm:$0xf]
        %v2639 = vld [vmem:[%s818 + $0x4] sm:$0xf]
        %v2640 = vld [vmem:[%s818 + $0x8] sm:$0xf]
        %v2641 = vld [vmem:[%s818 + $0xc] sm:$0xf]
        %v2642 = vld [vmem:[%s818 + $0x10] sm:$0xf]
        %v2643 = vld [vmem:[%s818 + $0x14] sm:$0xf]
        %v2644 = vld [vmem:[%s818 + $0x18] sm:$0xf]
        %v2645 = vld [vmem:[%s818 + $0x1c] sm:$0xf]
        %v2646 = vld [vmem:[%s818 + $0x20] sm:$0xf]
        %v2647 = vld [vmem:[%s818 + $0x24] sm:$0xf]
        %v2648 = vld [vmem:[%s818 + $0x28] sm:$0xf]
        %v2649 = vld [vmem:[%s818 + $0x2c] sm:$0xf]
        %v2650 = vld [vmem:[%s818 + $0x30] sm:$0xf]
        %v2651 = vld [vmem:[%s818 + $0x34] sm:$0xf]
        %v2652 = vld [vmem:[%s818 + $0x38] sm:$0xf]
        %v2653 = vld [vmem:[%s818 + $0x3c] sm:$0xf]
        %v2654 = vld [vmem:[%s818 + $0x40] sm:$0xf]
        %v2655 = vld [vmem:[%s818 + $0x44] sm:$0xf]
        %v2656 = vld [vmem:[%s818 + $0x48] sm:$0xf]
        %v2657 = vld [vmem:[%s818 + $0x4c] sm:$0xf]
        %v2658 = vld [vmem:[%s818 + $0x50] sm:$0xf]
        %v2659 = vld [vmem:[%s818 + $0x54] sm:$0xf]
        %v2660 = vld [vmem:[%s818 + $0x58] sm:$0xf]
        %v2661 = vld [vmem:[%s818 + $0x5c] sm:$0xf]
        %v2662 = vld [vmem:[%s818 + $0x60] sm:$0xf]
        %v2663 = vld [vmem:[%s818 + $0x64] sm:$0xf]
        %v2664 = vld [vmem:[%s818 + $0x68] sm:$0xf]
        %v2665 = vld [vmem:[%s818 + $0x6c] sm:$0xf]
        %v2666 = vld [vmem:[%s818 + $0x70] sm:$0xf]
        %v2667 = vld [vmem:[%s818 + $0x74] sm:$0xf]
        %v2668 = vld [vmem:[%s818 + $0x78] sm:$0xf]
        %v2669 = vld [vmem:[%s818 + $0x7c] sm:$0xf]
        %v2670 = vld [vmem:[%s938] sm:$0x1]
        %v2672 = vlaneseq
        %v2673 = vshrl.u32 %v2672, 7
        %v2674 = vsub.s32 0, %v2673
        %v2675 = vrot.slane %v2670, %v2674
        %v2709 = vunpack.c.l.b16 %v2638
        %v2710 = vunpack.c.l.b16 %v2639
        %v2711 = vunpack.c.l.b16 %v2640
        %v2712 = vunpack.c.l.b16 %v2641
        %v2713 = vunpack.c.l.b16 %v2642
        %v2714 = vunpack.c.l.b16 %v2643
        %v2715 = vunpack.c.l.b16 %v2644
        %v2716 = vunpack.c.l.b16 %v2645
        %v2717 = vunpack.c.l.b16 %v2646
        %v2718 = vunpack.c.l.b16 %v2647
        %v2719 = vunpack.c.l.b16 %v2648
        %v2720 = vunpack.c.l.b16 %v2649
        %v2721 = vunpack.c.l.b16 %v2650
        %v2722 = vunpack.c.l.b16 %v2651
        %v2723 = vunpack.c.l.b16 %v2652
        %v2724 = vunpack.c.l.b16 %v2653
        %v2725 = vunpack.c.l.b16 %v2654
        %v2726 = vunpack.c.l.b16 %v2655
        %v2727 = vunpack.c.l.b16 %v2656
        %v2728 = vunpack.c.l.b16 %v2657
        %v2729 = vunpack.c.l.b16 %v2658
        %v2730 = vunpack.c.l.b16 %v2659
        %v2731 = vunpack.c.l.b16 %v2660
        %v2732 = vunpack.c.l.b16 %v2661
        %v2733 = vunpack.c.l.b16 %v2662
        %v2734 = vunpack.c.l.b16 %v2663
        %v2735 = vunpack.c.l.b16 %v2664
        %v2736 = vunpack.c.l.b16 %v2665
        %v2737 = vunpack.c.l.b16 %v2666
        %v2738 = vunpack.c.l.b16 %v2667
        %v2739 = vunpack.c.l.b16 %v2668
        %v2740 = vunpack.c.l.b16 %v2669
        %v2741 = vpack.c.b16 %v2710, %v2709
        %v2742 = vpack.c.b16 %v2712, %v2711
        %v2743 = vpack.c.b16 %v2714, %v2713
        %v2744 = vpack.c.b16 %v2716, %v2715
        %v2745 = vpack.c.b16 %v2718, %v2717
        %v2746 = vpack.c.b16 %v2720, %v2719
        %v2747 = vpack.c.b16 %v2722, %v2721
        %v2748 = vpack.c.b16 %v2724, %v2723
        %v2749 = vpack.c.b16 %v2726, %v2725
        %v2750 = vpack.c.b16 %v2728, %v2727
        %v2751 = vpack.c.b16 %v2730, %v2729
        %v2752 = vpack.c.b16 %v2732, %v2731
        %v2753 = vpack.c.b16 %v2734, %v2733
        %v2754 = vpack.c.b16 %v2736, %v2735
        %v2755 = vpack.c.b16 %v2738, %v2737
        %v2756 = vpack.c.b16 %v2740, %v2739
        %2773 = vmatprep.subr.bf16.mxu0 0
        %2774 = vmatpush1.bf16.msra.mxu0 %v2748
        %2775 = vmatprep.subr.bf16.mxu0 0
        %2776 = vmatpush1.bf16.msra.mxu0 %v2747
        %2777 = vmatprep.subr.bf16.mxu0 0
        %2778 = vmatpush1.bf16.msra.mxu0 %v2746
        %2779 = vmatprep.subr.bf16.mxu0 0
        %2780 = vmatpush1.bf16.msra.mxu0 %v2745
        %2781 = vmatprep.subr.bf16.mxu0 0
        %2782 = vmatpush1.bf16.msra.mxu0 %v2744
        %2783 = vmatprep.subr.bf16.mxu0 0
        %2784 = vmatpush1.bf16.msra.mxu0 %v2743
        %2785 = vmatprep.subr.bf16.mxu0 0
        %2786 = vmatpush1.bf16.msra.mxu0 %v2742
        %2787 = vmatprep.subr.bf16.mxu0 0
        %2788 = vmatpush1.bf16.msra.mxu0 %v2741
        %2789 = vmatprep.subr.bf16.mxu0 0
        %2790 = vmatpush2.bf16.msra.mxu0 %v2756
        %2791 = vmatprep.subr.bf16.mxu0 0
        %2792 = vmatpush2.bf16.msra.mxu0 %v2755
        %2793 = vmatprep.subr.bf16.mxu0 0
        %2794 = vmatpush2.bf16.msra.mxu0 %v2754
        %2795 = vmatprep.subr.bf16.mxu0 0
        %2796 = vmatpush2.bf16.msra.mxu0 %v2753
        %2797 = vmatprep.subr.bf16.mxu0 0
        %2798 = vmatpush2.bf16.msra.mxu0 %v2752
        %2799 = vmatprep.subr.bf16.mxu0 0
        %2800 = vmatpush2.bf16.msra.mxu0 %v2751
        %2801 = vmatprep.subr.bf16.mxu0 0
        %2802 = vmatpush2.bf16.msra.mxu0 %v2750
        %2803 = vmatprep.subr.bf16.mxu0 0
        %2804 = vmatpush2.bf16.msra.mxu0 %v2749
        %2805 = vmatprep.mubr.bf16.mxu0 %v2635
        %2806 = vmatmul.mubr.bf16.gmra.mxu0 %v2634
        %v2807 = vpop.f32.mrf.mxu0
        %v2808 = vadd.f32 %v2675, %v2807
        %v2809 = vpop.f32.mrf.mxu0
        %v2810 = vpop.f32.mrf.mxu0
        %v2811 = vadd.f32 %v2675, %v2810
        %v2812 = vpop.f32.mrf.mxu0
        %2813 = vmatprep.mubr.bf16.mxu0 %v2637
        %2814 = vmatmul.mubr.bf16.gmra.mxu0 %v2636
        %v2815 = vpop.f32.mrf.mxu0
        %v2816 = vadd.f32 %v2675, %v2815
        %v2817 = vpop.f32.mrf.mxu0
        %v2818 = vpop.f32.mrf.mxu0
        %v2819 = vadd.f32 %v2675, %v2818
        %v2820 = vpop.f32.mrf.mxu0
        %2821 = vdwg.mxu0
        %v2822 = vadd.f32 %v2395, %v2808
        %v2823 = vadd.f32 %v2396, %v2811
        %v2824 = vadd.f32 %v2397, %v2816
        %v2825 = vadd.f32 %v2398, %v2819
        %v2826 = vld [vmem:[%s941] sm:$0x1]
        %v2827 = vld [vmem:[%s944] sm:$0x1]
        %2828 = vadd.xlane.f32.xlu0 %v2822
        %v2829 = vpop.xlane.xlu0 %2828
        %2830 = vadd.xlane.f32.xlu0 %v2823
        %v2831 = vpop.xlane.xlu0 %2830
        %2832 = vadd.xlane.f32.xlu0 %v2824
        %v2833 = vpop.xlane.xlu0 %2832
        %2834 = vadd.xlane.f32.xlu0 %v2825
        %v2835 = vpop.xlane.xlu0 %2834
        %v2836 = vmul.f32 %v2829, %v2342
        %v2837 = vmul.f32 %v2831, %v2342
        %v2838 = vmul.f32 %v2833, %v2342
        %v2839 = vmul.f32 %v2835, %v2342
        %v2840 = vsub.f32 %v2822, %v2836
        %v2841 = vsub.f32 %v2823, %v2837
        %v2842 = vsub.f32 %v2824, %v2838
        %v2843 = vsub.f32 %v2825, %v2839
        %v2844 = vmul.f32 %v2840, %v2840
        %v2845 = vmul.f32 %v2841, %v2841
        %v2846 = vmul.f32 %v2842, %v2842
        %v2847 = vmul.f32 %v2843, %v2843
        %2848 = vadd.xlane.f32.xlu0 %v2844
        %v2849 = vpop.xlane.xlu0 %2848
        %2850 = vadd.xlane.f32.xlu0 %v2845
        %v2851 = vpop.xlane.xlu0 %2850
        %2852 = vadd.xlane.f32.xlu0 %v2846
        %v2853 = vpop.xlane.xlu0 %2852
        %2854 = vadd.xlane.f32.xlu0 %v2847
        %v2855 = vpop.xlane.xlu0 %2854
        %v2856 = vmul.f32 %v2849, %v2342
        %v2857 = vmul.f32 %v2851, %v2342
        %v2858 = vmul.f32 %v2853, %v2342
        %v2859 = vmul.f32 %v2855, %v2342
        %v2860 = vadd.f32 %v2856, 1e-05
        %v2861 = vadd.f32 %v2857, 1e-05
        %v2862 = vadd.f32 %v2858, 1e-05
        %v2863 = vadd.f32 %v2859, 1e-05
        %v2864 = vrsqrt.pop %v2860
        %v2865 = vrsqrt.pop %v2861
        %v2866 = vrsqrt.pop %v2862
        %v2867 = vrsqrt.pop %v2863
        %v2868 = vmul.f32 %v2840, %v2864
        %v2869 = vmul.f32 %v2841, %v2865
        %v2870 = vmul.f32 %v2842, %v2866
        %v2871 = vmul.f32 %v2843, %v2867
        %v2873 = vlaneseq
        %v2874 = vshrl.u32 %v2873, 7
        %v2875 = vsub.s32 0, %v2874
        %v2876 = vrot.slane %v2826, %v2875
        %v2878 = vmul.f32 %v2868, %v2876
        %v2879 = vmul.f32 %v2869, %v2876
        %v2880 = vmul.f32 %v2870, %v2876
        %v2881 = vmul.f32 %v2871, %v2876
        %v2883 = vlaneseq
        %v2884 = vshrl.u32 %v2883, 7
        %v2885 = vsub.s32 0, %v2884
        %v2886 = vrot.slane %v2827, %v2885
        %v2888 = vadd.f32 %v2878, %v2886
        %v2889 = vadd.f32 %v2879, %v2886
        %v2890 = vadd.f32 %v2880, %v2886
        %v2891 = vadd.f32 %v2881, %v2886
        %2892 = vst [vmem:[#allocation2] sm:$0xff] %v2888
        %2893 = vst [vmem:[#allocation2 + $0x8] sm:$0xff] %v2889
        %2894 = vst [vmem:[#allocation2 + $0x10] sm:$0xff] %v2890
        %2895 = vst [vmem:[#allocation2 + $0x18] sm:$0xff] %v2891
        %p2896 = scmp.eq.s32.totalorder %s35, 1
        // Predicated region
        $region145: #{tpu_custom_call.1} parent=99 // pred_check
          %p2897 = pneg %p2896
        $region146: #{tpu_custom_call.1} parent=99 // pred_check_branch
          %2899 = sbr.rel (%p2897) target = $region148
        $region147: #{tpu_custom_call.1} parent=99 // pred_region
          %v2901 = vrot.slane %v2890, 7
          %vm2903 = vcmask 1040384
          %v2904 = vsel %vm2903, %v2888, %v2901
          %v2905 = vpack.c.bf16 %v2904, %v2904
          %v2906 = vld [vmem:[#allocation15] sm:$0xf]
          %v2907 = vld [vmem:[#allocation15 + $0x4] sm:$0xf]
          %v2908 = vld [vmem:[#allocation15 + $0x8] sm:$0xf]
          %v2909 = vld [vmem:[#allocation15 + $0xc] sm:$0xf]
          %v2910 = vld [vmem:[#allocation15 + $0x10] sm:$0xf]
          %v2911 = vld [vmem:[#allocation15 + $0x14] sm:$0xf]
          %v2912 = vld [vmem:[#allocation15 + $0x18] sm:$0xf]
          %v2913 = vld [vmem:[#allocation15 + $0x1c] sm:$0xf]
          %v2914 = vld [vmem:[#allocation15 + $0x20] sm:$0xf]
          %v2915 = vld [vmem:[#allocation15 + $0x24] sm:$0xf]
          %v2916 = vld [vmem:[#allocation15 + $0x28] sm:$0xf]
          %v2917 = vld [vmem:[#allocation15 + $0x2c] sm:$0xf]
          %v2918 = vld [vmem:[#allocation15 + $0x30] sm:$0xf]
          %v2919 = vld [vmem:[#allocation15 + $0x34] sm:$0xf]
          %v2920 = vld [vmem:[#allocation15 + $0x38] sm:$0xf]
          %v2921 = vld [vmem:[#allocation15 + $0x3c] sm:$0xf]
          %v2922 = vld [vmem:[%s17] sm:$0x1]
          %v2924 = vlaneseq
          %v2925 = vshrl.u32 %v2924, 7
          %v2926 = vsub.s32 0, %v2925
          %v2927 = vrot.slane %v2922, %v2926
          %v2945 = vunpack.c.l.b16 %v2906
          %v2946 = vunpack.c.l.b16 %v2907
          %v2947 = vunpack.c.l.b16 %v2908
          %v2948 = vunpack.c.l.b16 %v2909
          %v2949 = vunpack.c.l.b16 %v2910
          %v2950 = vunpack.c.l.b16 %v2911
          %v2951 = vunpack.c.l.b16 %v2912
          %v2952 = vunpack.c.l.b16 %v2913
          %v2953 = vunpack.c.l.b16 %v2914
          %v2954 = vunpack.c.l.b16 %v2915
          %v2955 = vunpack.c.l.b16 %v2916
          %v2956 = vunpack.c.l.b16 %v2917
          %v2957 = vunpack.c.l.b16 %v2918
          %v2958 = vunpack.c.l.b16 %v2919
          %v2959 = vunpack.c.l.b16 %v2920
          %v2960 = vunpack.c.l.b16 %v2921
          %v2961 = vpack.c.b16 %v2946, %v2945
          %v2962 = vpack.c.b16 %v2948, %v2947
          %v2963 = vpack.c.b16 %v2950, %v2949
          %v2964 = vpack.c.b16 %v2952, %v2951
          %v2965 = vpack.c.b16 %v2954, %v2953
          %v2966 = vpack.c.b16 %v2956, %v2955
          %v2967 = vpack.c.b16 %v2958, %v2957
          %v2968 = vpack.c.b16 %v2960, %v2959
          %2977 = vmatprep.subr.bf16.mxu0 0
          %2978 = vmatpush1.bf16.msra.mxu0 %v2968
          %2979 = vmatprep.subr.bf16.mxu0 0
          %2980 = vmatpush1.bf16.msra.mxu0 %v2967
          %2981 = vmatprep.subr.bf16.mxu0 0
          %2982 = vmatpush1.bf16.msra.mxu0 %v2966
          %2983 = vmatprep.subr.bf16.mxu0 0
          %2984 = vmatpush1.bf16.msra.mxu0 %v2965
          %2985 = vmatprep.subr.bf16.mxu0 0
          %2986 = vmatpush1.bf16.msra.mxu0 %v2964
          %2987 = vmatprep.subr.bf16.mxu0 0
          %2988 = vmatpush1.bf16.msra.mxu0 %v2963
          %2989 = vmatprep.subr.bf16.mxu0 0
          %2990 = vmatpush1.bf16.msra.mxu0 %v2962
          %2991 = vmatprep.subr.bf16.mxu0 0
          %2992 = vmatpush1.bf16.msra.mxu0 %v2961
          %2993 = vmatprep.subr.bf16.mxu0 0
          %2994 = vmatpush2.bf16.msra.mxu0 0
          %2995 = vmatprep.subr.bf16.mxu0 0
          %2996 = vmatpush2.bf16.msra.mxu0 0
          %2997 = vmatprep.subr.bf16.mxu0 0
          %2998 = vmatpush2.bf16.msra.mxu0 0
          %2999 = vmatprep.subr.bf16.mxu0 0
          %3000 = vmatpush2.bf16.msra.mxu0 0
          %3001 = vmatprep.subr.bf16.mxu0 0
          %3002 = vmatpush2.bf16.msra.mxu0 0
          %3003 = vmatprep.subr.bf16.mxu0 0
          %3004 = vmatpush2.bf16.msra.mxu0 0
          %3005 = vmatprep.subr.bf16.mxu0 0
          %3006 = vmatpush2.bf16.msra.mxu0 0
          %3007 = vmatprep.subr.bf16.mxu0 0
          %3008 = vmatpush2.bf16.msra.mxu0 0
          %3009 = vmatprep.mubr.bf16.mxu0 0
          %3010 = vmatmul.mubr.bf16.gmra.mxu0 %v2905
          %v3011 = vpop.f32.mrf.mxu0
          %v3012 = vadd.f32 %v2927, %v3011
          %v3013 = vpop.f32.mrf.mxu0
          %v3014 = vpop.f32.mrf.mxu0
          %v3015 = vpop.f32.mrf.mxu0
          %3016 = vdwg.mxu0
          %v3017 = vtanh.pop %v3012
          %v3018 = vpack.c.bf16 %v3017, %v3017
          %v3019 = vld [vmem:[#allocation16] sm:$0xf]
          %v3020 = vld [vmem:[#allocation16 + $0x4] sm:$0xf]
          %v3021 = vld [vmem:[#allocation16 + $0x8] sm:$0xf]
          %v3022 = vld [vmem:[#allocation16 + $0xc] sm:$0xf]
          %v3023 = vld [vmem:[#allocation16 + $0x10] sm:$0xf]
          %v3024 = vld [vmem:[#allocation16 + $0x14] sm:$0xf]
          %v3025 = vld [vmem:[#allocation16 + $0x18] sm:$0xf]
          %v3026 = vld [vmem:[#allocation16 + $0x1c] sm:$0xf]
          %v3027 = vld [vmem:[#allocation16 + $0x20] sm:$0xf]
          %v3028 = vld [vmem:[#allocation16 + $0x24] sm:$0xf]
          %v3029 = vld [vmem:[#allocation16 + $0x28] sm:$0xf]
          %v3030 = vld [vmem:[#allocation16 + $0x2c] sm:$0xf]
          %v3031 = vld [vmem:[#allocation16 + $0x30] sm:$0xf]
          %v3032 = vld [vmem:[#allocation16 + $0x34] sm:$0xf]
          %v3033 = vld [vmem:[#allocation16 + $0x38] sm:$0xf]
          %v3034 = vld [vmem:[#allocation16 + $0x3c] sm:$0xf]
          %v3035 = vld [vmem:[%s19] sm:$0x1]
          %v3037 = vlaneseq
          %v3038 = vshrl.u32 %v3037, 7
          %v3039 = vsub.s32 0, %v3038
          %v3040 = vrot.slane %v3035, %v3039
          %v3058 = vunpack.c.l.b16 %v3019
          %v3059 = vunpack.c.l.b16 %v3020
          %v3060 = vunpack.c.l.b16 %v3021
          %v3061 = vunpack.c.l.b16 %v3022
          %v3062 = vunpack.c.l.b16 %v3023
          %v3063 = vunpack.c.l.b16 %v3024
          %v3064 = vunpack.c.l.b16 %v3025
          %v3065 = vunpack.c.l.b16 %v3026
          %v3066 = vunpack.c.l.b16 %v3027
          %v3067 = vunpack.c.l.b16 %v3028
          %v3068 = vunpack.c.l.b16 %v3029
          %v3069 = vunpack.c.l.b16 %v3030
          %v3070 = vunpack.c.l.b16 %v3031
          %v3071 = vunpack.c.l.b16 %v3032
          %v3072 = vunpack.c.l.b16 %v3033
          %v3073 = vunpack.c.l.b16 %v3034
          %v3074 = vpack.c.b16 %v3059, %v3058
          %v3075 = vpack.c.b16 %v3061, %v3060
          %v3076 = vpack.c.b16 %v3063, %v3062
          %v3077 = vpack.c.b16 %v3065, %v3064
          %v3078 = vpack.c.b16 %v3067, %v3066
          %v3079 = vpack.c.b16 %v3069, %v3068
          %v3080 = vpack.c.b16 %v3071, %v3070
          %v3081 = vpack.c.b16 %v3073, %v3072
          %3090 = vmatprep.subr.bf16.mxu0 0
          %3091 = vmatpush1.bf16.msra.mxu0 %v3081
          %3092 = vmatprep.subr.bf16.mxu0 0
          %3093 = vmatpush1.bf16.msra.mxu0 %v3080
          %3094 = vmatprep.subr.bf16.mxu0 0
          %3095 = vmatpush1.bf16.msra.mxu0 %v3079
          %3096 = vmatprep.subr.bf16.mxu0 0
          %3097 = vmatpush1.bf16.msra.mxu0 %v3078
          %3098 = vmatprep.subr.bf16.mxu0 0
          %3099 = vmatpush1.bf16.msra.mxu0 %v3077
          %3100 = vmatprep.subr.bf16.mxu0 0
          %3101 = vmatpush1.bf16.msra.mxu0 %v3076
          %3102 = vmatprep.subr.bf16.mxu0 0
          %3103 = vmatpush1.bf16.msra.mxu0 %v3075
          %3104 = vmatprep.subr.bf16.mxu0 0
          %3105 = vmatpush1.bf16.msra.mxu0 %v3074
          %3106 = vmatprep.subr.bf16.mxu0 0
          %3107 = vmatpush2.bf16.msra.mxu0 0
          %3108 = vmatprep.subr.bf16.mxu0 0
          %3109 = vmatpush2.bf16.msra.mxu0 0
          %3110 = vmatprep.subr.bf16.mxu0 0
          %3111 = vmatpush2.bf16.msra.mxu0 0
          %3112 = vmatprep.subr.bf16.mxu0 0
          %3113 = vmatpush2.bf16.msra.mxu0 0
          %3114 = vmatprep.subr.bf16.mxu0 0
          %3115 = vmatpush2.bf16.msra.mxu0 0
          %3116 = vmatprep.subr.bf16.mxu0 0
          %3117 = vmatpush2.bf16.msra.mxu0 0
          %3118 = vmatprep.subr.bf16.mxu0 0
          %3119 = vmatpush2.bf16.msra.mxu0 0
          %3120 = vmatprep.subr.bf16.mxu0 0
          %3121 = vmatpush2.bf16.msra.mxu0 0
          %3122 = vmatprep.mubr.bf16.mxu0 0
          %3123 = vmatmul.mubr.bf16.gmra.mxu0 %v3018
          %v3124 = vpop.f32.mrf.mxu0
          %v3125 = vadd.f32 %v3040, %v3124
          %v3126 = vpop.f32.mrf.mxu0
          %v3127 = vpop.f32.mrf.mxu0
          %v3128 = vpop.f32.mrf.mxu0
          %3129 = vdwg.mxu0
          %3130 = vst [vmem:[#allocation17] sm:$0x3] %v3125
        $region148: #{tpu_custom_call.1} parent=99 // pred_fallthru
          _
        // Predicated region
        $region149: #{tpu_custom_call.1} parent=99 // pred_check
          %p3131 = pneg %p528
        $region150: #{tpu_custom_call.1} parent=99 // pred_check_branch
          %3133 = sbr.rel (%p3131) target = $region152
        $region151: #{tpu_custom_call.1} parent=99 // pred_region
          %s3135 = ssub.s32 32, 32
          %3136 = vsyncadd [#allocation5], %s3135
          %s3138 = sshll.u32 [#allocation17], 4
          %s3139 = int_to_ptr.vmem [resolvable:$true] %s3138
          %3141 = dma.vmem_to_hbm [thread:$0]  %s3139, 32, %s20, [#allocation5]
        $region152: #{tpu_custom_call.1} parent=99 // pred_fallthru
          _
        // Predicated region
        $region153: #{tpu_custom_call.1} parent=99 // pred_check
          %p3142 = pneg %p528
        $region154: #{tpu_custom_call.1} parent=99 // pred_check_branch
          %3144 = sbr.rel (%p3142) target = $region156
        $region155: #{tpu_custom_call.1} parent=99 // pred_region
          %3145 = dma.done [#allocation5], 32
        $region156: #{tpu_custom_call.1} parent=99 // pred_fallthru
          _
      $region100: #{tpu_custom_call.1} parent=5 // pred_fallthru
        _
      %p3146 = scmp.le.s32.totalorder 2, %s30
      // Predicated region
      $region157: #{tpu_custom_call.1} parent=5 // pred_check
        %p3147 = pneg %p3146
      $region158: #{tpu_custom_call.1} parent=5 // pred_check_branch
        %3149 = sbr.rel (%p3147) target = $region160
      $region159: #{tpu_custom_call.1} parent=5 // pred_region
        %s3150 = ssub.s32 %s30, 2
      $region160: #{tpu_custom_call.1} parent=5 // pred_fallthru
        _
    $region6: #{tpu_custom_call.1} parent=1 // loop_footer
      %s34 = sadd.s32 1, %s30
    $region7: #{tpu_custom_call.1} parent=1 // loop_footer_branch
      %29 = sbr.rel target = $region3
    $region8: #{tpu_custom_call.1} parent=1 // loop_exit
      _
    %3151 = vsyncpa [#allocation4], 1
    %s3152 = scalar_lea.sflag [#allocation4], 1
    %3153 = vsyncpa %s3152, 1
    %3154 = vsyncpa [#allocation7], 1
    %3155 = vsyncpa [#allocation10], 1
    %3156 = vsyncpa [#allocation5], 1
    %s3157 = scalar_lea.sflag [#allocation5], 1
    %3158 = vsyncpa %s3157, 1

</llo_original>
